<compile_context>
chip_gen: v6e
topology: v6e:2x2x1
jax: 0.10.0
libtpu: 0.0.40
codegen_flags: <defaults>
</compile_context>

<pallas_src>
import jax
import jax.numpy as jnp
from jax.experimental import pallas as pl
from jax.experimental.pallas import tpu as pltpu

TILE_B = 256  # batch rows per grid step (>=128 so the 300x300 matmuls are MXU-bound)


def ann_kernel(x_ref, w1_ref, b1_ref, w2_ref, b2_ref,
               w3_ref, b3_ref, w4_ref, b4_ref, out_ref):
    # Activations kept in f32; cast to bf16 only at the MXU input.
    x = x_ref[...]                                                   # (TB, 18) f32

    # fc1 + tanh
    h = jnp.dot(x.astype(jnp.bfloat16), w1_ref[...],
                preferred_element_type=jnp.float32) + b1_ref[...]
    h = jnp.tanh(h)                                                  # (TB, 300) f32

    # fc2 + tanh
    h = jnp.dot(h.astype(jnp.bfloat16), w2_ref[...],
                preferred_element_type=jnp.float32) + b2_ref[...]
    h = jnp.tanh(h)                                                  # (TB, 300) f32

    # fc3 + tanh
    h = jnp.dot(h.astype(jnp.bfloat16), w3_ref[...],
                preferred_element_type=jnp.float32) + b3_ref[...]
    h = jnp.tanh(h)                                                  # (TB, 300) f32

    # fc4
    logits = jnp.dot(h.astype(jnp.bfloat16), w4_ref[...],
                     preferred_element_type=jnp.float32) + b4_ref[...]   # (TB, 2) f32

    # softmax over dim=1 (feature axis), numerically stable
    m = jnp.max(logits, axis=1, keepdims=True)
    e = jnp.exp(logits - m)
    s = jnp.sum(e, axis=1, keepdims=True)
    out_ref[...] = e / s


def ann_forward(x, params, tile_b=TILE_B):
    w1, b1, w2, b2, w3, b3, w4, b4 = params
    B, F = x.shape
    grid = (pl.cdiv(B, tile_b),)

    const = lambda i: (0, 0)          # weights/biases: same block every step -> stay resident
    batch = lambda i: (i, 0)          # activations: march over the batch

    in_specs = [
        pl.BlockSpec((tile_b, F), batch),
        pl.BlockSpec(w1.shape, const), pl.BlockSpec(b1.shape, const),
        pl.BlockSpec(w2.shape, const), pl.BlockSpec(b2.shape, const),
        pl.BlockSpec(w3.shape, const), pl.BlockSpec(b3.shape, const),
        pl.BlockSpec(w4.shape, const), pl.BlockSpec(b4.shape, const),
    ]
    out_specs = pl.BlockSpec((tile_b, 2), batch)

    return pl.pallas_call(
        ann_kernel,
        out_shape=jax.ShapeDtypeStruct((B, 2), jnp.float32),
        grid=grid,
        in_specs=in_specs,
        out_specs=out_specs,
        compiler_params=pltpu.CompilerParams(
            dimension_semantics=("parallel",),     # shard batch across v7x's 2 TCs
            vmem_limit_bytes=32 * 1024 * 1024,     # explicit budget, safe on v7x 64 MiB
        ),
    )(x, w1, b1, w2, b2, w3, b3, w4, b4)


def init_params(key):
    """Deterministic init mimicking PyTorch Linear default (uniform +/- 1/sqrt(fan_in)).

    Weights are stored in bf16 (halves weight DMA, native MXU dtype); biases stay f32
    since they add directly into the f32 accumulator.
    """
    dims = [(18, 300), (300, 300), (300, 300), (300, 2)]
    params = []
    keys = jax.random.split(key, 2 * len(dims))
    for i, (fan_in, fan_out) in enumerate(dims):
        bound = 1.0 / (fan_in ** 0.5)
        w = jax.random.uniform(keys[2 * i], (fan_in, fan_out),
                               minval=-bound, maxval=bound, dtype=jnp.float32)
        b = jax.random.uniform(keys[2 * i + 1], (1, fan_out),
                               minval=-bound, maxval=bound, dtype=jnp.float32)
        params.extend([w.astype(jnp.bfloat16), b])
    return tuple(params)


if __name__ == "__main__":
    key = jax.random.PRNGKey(0)
    k_x, k_p = jax.random.split(key)

    B = 512                           # two grid steps at TILE_B=256
    x = jax.random.normal(k_x, (B, 18), dtype=jnp.float32)
    params = init_params(k_p)

    out = ann_forward(x, params)
    out = jax.block_until_ready(out)

    # Reference check in plain JAX using the same bf16 weights (cast to f32 for the
    # reference matmuls). Kernel does bf16 x bf16 -> f32-accumulate, so tolerance is
    # loosened relative to a pure-f32 comparison.
    w1, b1, w2, b2, w3, b3, w4, b4 = params
    w1f, w2f, w3f, w4f = (w.astype(jnp.float32) for w in (w1, w2, w3, w4))
    h = jnp.tanh(x @ w1f + b1)
    h = jnp.tanh(h @ w2f + b2)
    h = jnp.tanh(h @ w3f + b3)
    logits = h @ w4f + b4
    ref = jax.nn.softmax(logits, axis=1)

    assert out.shape == (B, 2)
    assert jnp.allclose(out, ref, atol=2e-2, rtol=2e-2)
    assert jnp.allclose(jnp.sum(out, axis=1), 1.0, atol=1e-5)

    print("KERNEL_OK")
</pallas_src>

<mosaic_0001>
module attributes {stable_mosaic.version = 11 : i64} {
  func.func @ann_kernel(%arg0: i32, %arg1: memref<256x18xf32, #tpu.memory_space<vmem>>, %arg2: memref<18x300xbf16, #tpu.memory_space<vmem>>, %arg3: memref<1x300xf32, #tpu.memory_space<vmem>>, %arg4: memref<300x300xbf16, #tpu.memory_space<vmem>>, %arg5: memref<1x300xf32, #tpu.memory_space<vmem>>, %arg6: memref<300x300xbf16, #tpu.memory_space<vmem>>, %arg7: memref<1x300xf32, #tpu.memory_space<vmem>>, %arg8: memref<300x2xbf16, #tpu.memory_space<vmem>>, %arg9: memref<1x2xf32, #tpu.memory_space<vmem>>, %arg10: memref<256x2xf32, #tpu.memory_space<vmem>>) attributes {dimension_semantics = [#tpu.dimension_semantics<parallel>], iteration_bounds = array<i64: 2>, scalar_prefetch = 0 : i64, scratch_operands = 0 : i64, tpu.core_type = #tpu.core_type<tc>, window_params = [{transform_indices = @transform_0, window_bounds = array<i64: 256, 18>}, {pipeline_mode = #tpu.pipeline_mode<synchronous>, transform_indices = @transform_1, window_bounds = array<i64: 18, 300>}, {pipeline_mode = #tpu.pipeline_mode<synchronous>, transform_indices = @transform_2, window_bounds = array<i64: 1, 300>}, {pipeline_mode = #tpu.pipeline_mode<synchronous>, transform_indices = @transform_3, window_bounds = array<i64: 300, 300>}, {pipeline_mode = #tpu.pipeline_mode<synchronous>, transform_indices = @transform_4, window_bounds = array<i64: 1, 300>}, {pipeline_mode = #tpu.pipeline_mode<synchronous>, transform_indices = @transform_5, window_bounds = array<i64: 300, 300>}, {pipeline_mode = #tpu.pipeline_mode<synchronous>, transform_indices = @transform_6, window_bounds = array<i64: 1, 300>}, {pipeline_mode = #tpu.pipeline_mode<synchronous>, transform_indices = @transform_7, window_bounds = array<i64: 300, 2>}, {pipeline_mode = #tpu.pipeline_mode<synchronous>, transform_indices = @transform_8, window_bounds = array<i64: 1, 2>}, {transform_indices = @transform_9, window_bounds = array<i64: 256, 2>}]} {
    %c0 = arith.constant 0 : index
    %c0_0 = arith.constant 0 : index
    %0 = vector.load %arg1[%c0, %c0_0] : memref<256x18xf32, #tpu.memory_space<vmem>>, vector<256x18xf32>
    %1 = arith.truncf %0 : vector<256x18xf32> to vector<256x18xbf16>
    %c0_1 = arith.constant 0 : index
    %c0_2 = arith.constant 0 : index
    %2 = vector.load %arg2[%c0_1, %c0_2] : memref<18x300xbf16, #tpu.memory_space<vmem>>, vector<18x300xbf16>
    %cst = arith.constant dense<0.000000e+00> : vector<256x300xf32>
    %3 = tpu.matmul %1, %2, %cst {dimension_numbers = #tpu.dot_dimension_numbers<[1], [0], [0], [1], [0, 0, 1, 1], [], []>} : vector<256x18xbf16>, vector<18x300xbf16>, vector<256x300xf32> -> vector<256x300xf32>
    %c0_3 = arith.constant 0 : index
    %c0_4 = arith.constant 0 : index
    %4 = vector.load %arg3[%c0_3, %c0_4] : memref<1x300xf32, #tpu.memory_space<vmem>>, vector<1x300xf32>
    %5 = vector.broadcast %4 : vector<1x300xf32> to vector<256x300xf32>
    %6 = arith.addf %3, %5 : vector<256x300xf32>
    %7 = math.tanh %6 : vector<256x300xf32>
    %8 = arith.truncf %7 : vector<256x300xf32> to vector<256x300xbf16>
    %c0_5 = arith.constant 0 : index
    %c0_6 = arith.constant 0 : index
    %9 = vector.load %arg4[%c0_5, %c0_6] : memref<300x300xbf16, #tpu.memory_space<vmem>>, vector<300x300xbf16>
    %cst_7 = arith.constant dense<0.000000e+00> : vector<256x300xf32>
    %10 = tpu.matmul %8, %9, %cst_7 {dimension_numbers = #tpu.dot_dimension_numbers<[1], [0], [0], [1], [0, 0, 1, 1], [], []>} : vector<256x300xbf16>, vector<300x300xbf16>, vector<256x300xf32> -> vector<256x300xf32>
    %c0_8 = arith.constant 0 : index
    %c0_9 = arith.constant 0 : index
    %11 = vector.load %arg5[%c0_8, %c0_9] : memref<1x300xf32, #tpu.memory_space<vmem>>, vector<1x300xf32>
    %12 = vector.broadcast %11 : vector<1x300xf32> to vector<256x300xf32>
    %13 = arith.addf %10, %12 : vector<256x300xf32>
    %14 = math.tanh %13 : vector<256x300xf32>
    %15 = arith.truncf %14 : vector<256x300xf32> to vector<256x300xbf16>
    %c0_10 = arith.constant 0 : index
    %c0_11 = arith.constant 0 : index
    %16 = vector.load %arg6[%c0_10, %c0_11] : memref<300x300xbf16, #tpu.memory_space<vmem>>, vector<300x300xbf16>
    %cst_12 = arith.constant dense<0.000000e+00> : vector<256x300xf32>
    %17 = tpu.matmul %15, %16, %cst_12 {dimension_numbers = #tpu.dot_dimension_numbers<[1], [0], [0], [1], [0, 0, 1, 1], [], []>} : vector<256x300xbf16>, vector<300x300xbf16>, vector<256x300xf32> -> vector<256x300xf32>
    %c0_13 = arith.constant 0 : index
    %c0_14 = arith.constant 0 : index
    %18 = vector.load %arg7[%c0_13, %c0_14] : memref<1x300xf32, #tpu.memory_space<vmem>>, vector<1x300xf32>
    %19 = vector.broadcast %18 : vector<1x300xf32> to vector<256x300xf32>
    %20 = arith.addf %17, %19 : vector<256x300xf32>
    %21 = math.tanh %20 : vector<256x300xf32>
    %22 = arith.truncf %21 : vector<256x300xf32> to vector<256x300xbf16>
    %c0_15 = arith.constant 0 : index
    %c0_16 = arith.constant 0 : index
    %23 = vector.load %arg8[%c0_15, %c0_16] : memref<300x2xbf16, #tpu.memory_space<vmem>>, vector<300x2xbf16>
    %cst_17 = arith.constant dense<0.000000e+00> : vector<256x2xf32>
    %24 = tpu.matmul %22, %23, %cst_17 {dimension_numbers = #tpu.dot_dimension_numbers<[1], [0], [0], [1], [0, 0, 1, 1], [], []>} : vector<256x300xbf16>, vector<300x2xbf16>, vector<256x2xf32> -> vector<256x2xf32>
    %c0_18 = arith.constant 0 : index
    %c0_19 = arith.constant 0 : index
    %25 = vector.load %arg9[%c0_18, %c0_19] : memref<1x2xf32, #tpu.memory_space<vmem>>, vector<1x2xf32>
    %26 = vector.broadcast %25 : vector<1x2xf32> to vector<256x2xf32>
    %27 = arith.addf %24, %26 : vector<256x2xf32>
    %cst_20 = arith.constant dense<0xFF800000> : vector<256xf32>
    %28 = vector.multi_reduction <maximumf>, %27, %cst_20 [1] : vector<256x2xf32> to vector<256xf32>
    %29 = vector.shape_cast %28 : vector<256xf32> to vector<256x1xf32>
    %30 = vector.broadcast %29 : vector<256x1xf32> to vector<256x2xf32>
    %31 = arith.subf %27, %30 : vector<256x2xf32>
    %32 = math.exp %31 : vector<256x2xf32>
    %cst_21 = arith.constant dense<0.000000e+00> : vector<256xf32>
    %33 = vector.multi_reduction <add>, %32, %cst_21 [1] : vector<256x2xf32> to vector<256xf32>
    %34 = vector.shape_cast %33 : vector<256xf32> to vector<256x1xf32>
    %35 = vector.broadcast %34 : vector<256x1xf32> to vector<256x2xf32>
    %36 = arith.divf %32, %35 : vector<256x2xf32>
    %c0_22 = arith.constant 0 : index
    %c0_23 = arith.constant 0 : index
    %37 = vector.load %arg10[%c0_22, %c0_23] : memref<256x2xf32, #tpu.memory_space<vmem>>, vector<256x2xf32>
    tpu.vector_store %arg10[%c0_22, %c0_23], %36 {strides = array<i32>} : memref<256x2xf32, #tpu.memory_space<vmem>>, vector<256x2xf32>,
    return
  }
  func.func @transform_0(%arg0: i32) -> (i32, i32) {
    %c0_i32 = arith.constant 0 : i32
    %c0_i32_0 = arith.constant 0 : i32
    return %arg0, %c0_i32 : i32, i32
  }
  func.func @transform_1(%arg0: i32) -> (i32, i32) {
    %c0_i32 = arith.constant 0 : i32
    %c0_i32_0 = arith.constant 0 : i32
    %c0_i32_1 = arith.constant 0 : i32
    return %c0_i32, %c0_i32_0 : i32, i32
  }
  func.func @transform_2(%arg0: i32) -> (i32, i32) {
    %c0_i32 = arith.constant 0 : i32
    %c0_i32_0 = arith.constant 0 : i32
    %c0_i32_1 = arith.constant 0 : i32
    return %c0_i32, %c0_i32_0 : i32, i32
  }
  func.func @transform_3(%arg0: i32) -> (i32, i32) {
    %c0_i32 = arith.constant 0 : i32
    %c0_i32_0 = arith.constant 0 : i32
    %c0_i32_1 = arith.constant 0 : i32
    return %c0_i32, %c0_i32_0 : i32, i32
  }
  func.func @transform_4(%arg0: i32) -> (i32, i32) {
    %c0_i32 = arith.constant 0 : i32
    %c0_i32_0 = arith.constant 0 : i32
    %c0_i32_1 = arith.constant 0 : i32
    return %c0_i32, %c0_i32_0 : i32, i32
  }
  func.func @transform_5(%arg0: i32) -> (i32, i32) {
    %c0_i32 = arith.constant 0 : i32
    %c0_i32_0 = arith.constant 0 : i32
    %c0_i32_1 = arith.constant 0 : i32
    return %c0_i32, %c0_i32_0 : i32, i32
  }
  func.func @transform_6(%arg0: i32) -> (i32, i32) {
    %c0_i32 = arith.constant 0 : i32
    %c0_i32_0 = arith.constant 0 : i32
    %c0_i32_1 = arith.constant 0 : i32
    return %c0_i32, %c0_i32_0 : i32, i32
  }
  func.func @transform_7(%arg0: i32) -> (i32, i32) {
    %c0_i32 = arith.constant 0 : i32
    %c0_i32_0 = arith.constant 0 : i32
    %c0_i32_1 = arith.constant 0 : i32
    return %c0_i32, %c0_i32_0 : i32, i32
  }
  func.func @transform_8(%arg0: i32) -> (i32, i32) {
    %c0_i32 = arith.constant 0 : i32
    %c0_i32_0 = arith.constant 0 : i32
    %c0_i32_1 = arith.constant 0 : i32
    return %c0_i32, %c0_i32_0 : i32, i32
  }
  func.func @transform_9(%arg0: i32) -> (i32, i32) {
    %c0_i32 = arith.constant 0 : i32
    %c0_i32_0 = arith.constant 0 : i32
    return %arg0, %c0_i32 : i32, i32
  }
}

</mosaic_0001>

<llo_original>
// kernel: tpu_custom_call.1
$region0: #{tpu_custom_call.1}
  #allocation0 [shape = 'u32[]', space=smem, size = 0x4, offset = 0x4, fixed_abs, tag = 'smem constant byte address 0x4 - core index']
  #allocation1 [shape = 'u32[144,128]{1,0:T(1,128)}', space=vmem, size = 0x12000, scoped, tag = 'internal scratch']
  %s0 = inlined_call_operand.vmem [shape: f32[512,18], index: 0, kind: input, shape index: {}]
  %s1 = inlined_call_operand.vmem [shape: bf16[18,300], index: 1, kind: input, shape index: {}]
  %s2 = inlined_call_operand.vmem [shape: f32[1,300], index: 2, kind: input, shape index: {}]
  %s3 = inlined_call_operand.vmem [shape: bf16[300,300], index: 3, kind: input, shape index: {}]
  %s4 = inlined_call_operand.vmem [shape: f32[1,300], index: 4, kind: input, shape index: {}]
  %s5 = inlined_call_operand.hbm [shape: bf16[300,300], index: 5, kind: input, shape index: {}]
  %s6 = inlined_call_operand.vmem [shape: f32[1,300], index: 6, kind: input, shape index: {}]
  %s7 = inlined_call_operand.vmem [shape: bf16[300,2], index: 7, kind: input, shape index: {}]
  %s8 = inlined_call_operand.vmem [shape: f32[1,2], index: 8, kind: input, shape index: {}]
  %s9 = inlined_call_operand.vmem [shape: f32[512,2], index: 9, kind: output, shape index: {}]
  %s10 = sld [smem:[#allocation0]]
  $region73: #{tpu_custom_call.1} parent=0
    _
  %s12 = ssub.s32 1, %s10
  %s13 = scalar_select 0, %s12, %s10
  $region1: #{tpu_custom_call.1} parent=0
    #allocation2 [shape = 'u8[233472]{0}', space=vmem, size = 0x39000, scoped, tag = 'input window, operand 5, single buffered']
    #allocation3 [shape = 's32[2]{0}', space=sflag, size = 0x8, scoped, tag = 'scoped memory for tpu_custom_call.1']
    %14 = vsyncpa [#allocation3], 0
    loop: start=0, step=1, limit=4
    $region2: #{tpu_custom_call.1} parent=1 // loop_pre_header
      _
    $region3: #{tpu_custom_call.1} parent=1 // loop_header
      %s16 = sphi 0, %s20
      %p17 = scmp.ge.s32.totalorder %s16, 4
      %s26 = sphi 0, %s28
      %s29 = sphi 0, %s26
      %s30 = sphi 0, %s29
      %s46 = sphi 0, %s30
      %s50 = sphi 0, %s50
      %s52 = sphi 0, %s50
      %s53 = sphi 0, %s52
      %s67 = sphi 0, %s53
      %s71 = sphi 0, %s71
      %s73 = sphi 0, %s71
      %s74 = sphi 0, %s73
      %s88 = sphi 0, %s74
      %s92 = sphi 0, %s92
      %s94 = sphi 0, %s92
      %s95 = sphi 0, %s94
      %s109 = sphi 0, %s95
      %s113 = sphi 0, %s113
      %s115 = sphi 0, %s113
      %s116 = sphi 0, %s115
      %s130 = sphi 0, %s116
      %s134 = sphi 0, %s134
      %s136 = sphi 0, %s134
      %s137 = sphi 0, %s136
      %s151 = sphi 0, %s137
      %s155 = sphi 0, %s155
      %s157 = sphi 0, %s155
      %s158 = sphi 0, %s157
      %s172 = sphi 0, %s158
      %s176 = sphi 0, %s176
      %s178 = sphi 0, %s176
      %s179 = sphi 0, %s178
      %s193 = sphi 0, %s179
      %s197 = sphi 0, %s197
      %s199 = sphi 0, %s197
      %s200 = sphi 0, %s199
      %s214 = sphi 0, %s200
      %s220 = sphi 0, %s222
      %s223 = sphi 0, %s220
      %s224 = sphi 0, %s223
      %s240 = sphi 0, %s224
    $region4: #{tpu_custom_call.1} parent=1 // loop_header_branch
      %19 = sbr.rel (%p17) target = $region8
    $region5: #{tpu_custom_call.1} parent=1 // loop_body
      %s21 = ssub.s32 %s16, 1
      %s22 = ssub.s32 %s16, 2
      %s23 = sadd.s32 %s16, 1
      %s24 = ssub.s32 %s16, %s23
      %p25 = scmp.eq.s32.totalorder %s24, 0
      %s27 = sadd.s32 %s26, 1
      %s28 = scalar_select %p25, %s26, %s27
      %p31 = pneg %p25
      %p32 = scmp.eq.s32.totalorder %s16, 1
      %p33 = por %p31, %p32
      %p34 = scmp.ne.s32.totalorder %s26, %s29
      %p35 = scmp.eq.s32.totalorder %s16, 0
      %p36 = por %p34, %p35
      %p37 = scmp.ne.s32.totalorder %s26, %s29
      %p38 = scmp.eq.s32.totalorder %s21, 1
      %p39 = por %p37, %p38
      %p40 = scmp.ne.s32.totalorder %s29, %s30
      %p41 = scmp.eq.s32.totalorder %s21, 0
      %p42 = por %p40, %p41
      %p43 = scmp.ne.s32.totalorder %s29, %s30
      %p44 = scmp.eq.s32.totalorder %s22, 1
      %p45 = por %p43, %p44
      %p47 = scmp.ne.s32.totalorder %s30, %s46
      %p48 = scmp.eq.s32.totalorder %s22, 0
      %p49 = por %p47, %p48
      %s51 = sadd.s32 %s50, 1
      %p54 = scmp.eq.s32.totalorder %s16, 1
      %p55 = scmp.ne.s32.totalorder %s50, %s52
      %p56 = scmp.eq.s32.totalorder %s16, 0
      %p57 = por %p55, %p56
      %p58 = scmp.ne.s32.totalorder %s50, %s52
      %p59 = scmp.eq.s32.totalorder %s21, 1
      %p60 = por %p58, %p59
      %p61 = scmp.ne.s32.totalorder %s52, %s53
      %p62 = scmp.eq.s32.totalorder %s21, 0
      %p63 = por %p61, %p62
      %p64 = scmp.ne.s32.totalorder %s52, %s53
      %p65 = scmp.eq.s32.totalorder %s22, 1
      %p66 = por %p64, %p65
      %p68 = scmp.ne.s32.totalorder %s53, %s67
      %p69 = scmp.eq.s32.totalorder %s22, 0
      %p70 = por %p68, %p69
      %s72 = sadd.s32 %s71, 1
      %p75 = scmp.eq.s32.totalorder %s16, 1
      %p76 = scmp.ne.s32.totalorder %s71, %s73
      %p77 = scmp.eq.s32.totalorder %s16, 0
      %p78 = por %p76, %p77
      %p79 = scmp.ne.s32.totalorder %s71, %s73
      %p80 = scmp.eq.s32.totalorder %s21, 1
      %p81 = por %p79, %p80
      %p82 = scmp.ne.s32.totalorder %s73, %s74
      %p83 = scmp.eq.s32.totalorder %s21, 0
      %p84 = por %p82, %p83
      %p85 = scmp.ne.s32.totalorder %s73, %s74
      %p86 = scmp.eq.s32.totalorder %s22, 1
      %p87 = por %p85, %p86
      %p89 = scmp.ne.s32.totalorder %s74, %s88
      %p90 = scmp.eq.s32.totalorder %s22, 0
      %p91 = por %p89, %p90
      %s93 = sadd.s32 %s92, 1
      %p96 = scmp.eq.s32.totalorder %s16, 1
      %p97 = scmp.ne.s32.totalorder %s92, %s94
      %p98 = scmp.eq.s32.totalorder %s16, 0
      %p99 = por %p97, %p98
      %p100 = scmp.ne.s32.totalorder %s92, %s94
      %p101 = scmp.eq.s32.totalorder %s21, 1
      %p102 = por %p100, %p101
      %p103 = scmp.ne.s32.totalorder %s94, %s95
      %p104 = scmp.eq.s32.totalorder %s21, 0
      %p105 = por %p103, %p104
      %p106 = scmp.ne.s32.totalorder %s94, %s95
      %p107 = scmp.eq.s32.totalorder %s22, 1
      %p108 = por %p106, %p107
      %p110 = scmp.ne.s32.totalorder %s95, %s109
      %p111 = scmp.eq.s32.totalorder %s22, 0
      %p112 = por %p110, %p111
      %s114 = sadd.s32 %s113, 1
      %p117 = scmp.eq.s32.totalorder %s16, 1
      %p118 = scmp.ne.s32.totalorder %s113, %s115
      %p119 = scmp.eq.s32.totalorder %s16, 0
      %p120 = por %p118, %p119
      %p121 = scmp.ne.s32.totalorder %s113, %s115
      %p122 = scmp.eq.s32.totalorder %s21, 1
      %p123 = por %p121, %p122
      %p124 = scmp.ne.s32.totalorder %s115, %s116
      %p125 = scmp.eq.s32.totalorder %s21, 0
      %p126 = por %p124, %p125
      %p127 = scmp.ne.s32.totalorder %s115, %s116
      %p128 = scmp.eq.s32.totalorder %s22, 1
      %p129 = por %p127, %p128
      %p131 = scmp.ne.s32.totalorder %s116, %s130
      %p132 = scmp.eq.s32.totalorder %s22, 0
      %p133 = por %p131, %p132
      %s135 = sadd.s32 %s134, 1
      %p138 = scmp.eq.s32.totalorder %s16, 1
      %p139 = scmp.ne.s32.totalorder %s134, %s136
      %p140 = scmp.eq.s32.totalorder %s16, 0
      %p141 = por %p139, %p140
      %p142 = scmp.ne.s32.totalorder %s134, %s136
      %p143 = scmp.eq.s32.totalorder %s21, 1
      %p144 = por %p142, %p143
      %p145 = scmp.ne.s32.totalorder %s136, %s137
      %p146 = scmp.eq.s32.totalorder %s21, 0
      %p147 = por %p145, %p146
      %p148 = scmp.ne.s32.totalorder %s136, %s137
      %p149 = scmp.eq.s32.totalorder %s22, 1
      %p150 = por %p148, %p149
      %p152 = scmp.ne.s32.totalorder %s137, %s151
      %p153 = scmp.eq.s32.totalorder %s22, 0
      %p154 = por %p152, %p153
      %s156 = sadd.s32 %s155, 1
      %p159 = scmp.eq.s32.totalorder %s16, 1
      %p160 = scmp.ne.s32.totalorder %s155, %s157
      %p161 = scmp.eq.s32.totalorder %s16, 0
      %p162 = por %p160, %p161
      %p163 = scmp.ne.s32.totalorder %s155, %s157
      %p164 = scmp.eq.s32.totalorder %s21, 1
      %p165 = por %p163, %p164
      %p166 = scmp.ne.s32.totalorder %s157, %s158
      %p167 = scmp.eq.s32.totalorder %s21, 0
      %p168 = por %p166, %p167
      %p169 = scmp.ne.s32.totalorder %s157, %s158
      %p170 = scmp.eq.s32.totalorder %s22, 1
      %p171 = por %p169, %p170
      %p173 = scmp.ne.s32.totalorder %s158, %s172
      %p174 = scmp.eq.s32.totalorder %s22, 0
      %p175 = por %p173, %p174
      %s177 = sadd.s32 %s176, 1
      %p180 = scmp.eq.s32.totalorder %s16, 1
      %p181 = scmp.ne.s32.totalorder %s176, %s178
      %p182 = scmp.eq.s32.totalorder %s16, 0
      %p183 = por %p181, %p182
      %p184 = scmp.ne.s32.totalorder %s176, %s178
      %p185 = scmp.eq.s32.totalorder %s21, 1
      %p186 = por %p184, %p185
      %p187 = scmp.ne.s32.totalorder %s178, %s179
      %p188 = scmp.eq.s32.totalorder %s21, 0
      %p189 = por %p187, %p188
      %p190 = scmp.ne.s32.totalorder %s178, %s179
      %p191 = scmp.eq.s32.totalorder %s22, 1
      %p192 = por %p190, %p191
      %p194 = scmp.ne.s32.totalorder %s179, %s193
      %p195 = scmp.eq.s32.totalorder %s22, 0
      %p196 = por %p194, %p195
      %s198 = sadd.s32 %s197, 1
      %p201 = scmp.eq.s32.totalorder %s16, 1
      %p202 = scmp.ne.s32.totalorder %s197, %s199
      %p203 = scmp.eq.s32.totalorder %s16, 0
      %p204 = por %p202, %p203
      %p205 = scmp.ne.s32.totalorder %s197, %s199
      %p206 = scmp.eq.s32.totalorder %s21, 1
      %p207 = por %p205, %p206
      %p208 = scmp.ne.s32.totalorder %s199, %s200
      %p209 = scmp.eq.s32.totalorder %s21, 0
      %p210 = por %p208, %p209
      %p211 = scmp.ne.s32.totalorder %s199, %s200
      %p212 = scmp.eq.s32.totalorder %s22, 1
      %p213 = por %p211, %p212
      %p215 = scmp.ne.s32.totalorder %s200, %s214
      %p216 = scmp.eq.s32.totalorder %s22, 0
      %p217 = por %p215, %p216
      %s218 = ssub.s32 %s16, %s23
      %p219 = scmp.eq.s32.totalorder %s218, 0
      %s221 = sadd.s32 %s220, 1
      %s222 = scalar_select %p219, %s220, %s221
      %p225 = pneg %p219
      %p226 = scmp.eq.s32.totalorder %s16, 1
      %p227 = por %p225, %p226
      %p228 = scmp.ne.s32.totalorder %s220, %s223
      %p229 = scmp.eq.s32.totalorder %s16, 0
      %p230 = por %p228, %p229
      %p231 = scmp.ne.s32.totalorder %s220, %s223
      %p232 = scmp.eq.s32.totalorder %s21, 1
      %p233 = por %p231, %p232
      %p234 = scmp.ne.s32.totalorder %s223, %s224
      %p235 = scmp.eq.s32.totalorder %s21, 0
      %p236 = por %p234, %p235
      %p237 = scmp.ne.s32.totalorder %s223, %s224
      %p238 = scmp.eq.s32.totalorder %s22, 1
      %p239 = por %p237, %p238
      %p241 = scmp.ne.s32.totalorder %s224, %s240
      %p242 = scmp.eq.s32.totalorder %s22, 0
      %p243 = por %p241, %p242
      %p244 = scmp.le.s32.totalorder 1, %s16
      %p245 = scmp.lt.s32.totalorder %s16, 3
      %p246 = pnand %p244, %p245
      %p247 = pneg %p246
      // Predicated region
      $region9: #{tpu_custom_call.1} parent=5 // pred_check
        _
      $region10: #{tpu_custom_call.1} parent=5 // pred_check_branch
        %249 = sbr.rel (%p246) target = $region12
      $region11: #{tpu_custom_call.1} parent=5 // pred_region
        %s250 = ssub.s32 %s16, 1
        // Predicated region
        $region13: #{tpu_custom_call.1} parent=11 // pred_check
          %p251 = pneg %p63
        $region14: #{tpu_custom_call.1} parent=11 // pred_check_branch
          %253 = sbr.rel (%p251) target = $region16
        $region15: #{tpu_custom_call.1} parent=11 // pred_region
          _
        $region16: #{tpu_custom_call.1} parent=11 // pred_fallthru
          _
        // Predicated region
        $region17: #{tpu_custom_call.1} parent=11 // pred_check
          %p254 = pneg %p84
        $region18: #{tpu_custom_call.1} parent=11 // pred_check_branch
          %256 = sbr.rel (%p254) target = $region20
        $region19: #{tpu_custom_call.1} parent=11 // pred_region
          _
        $region20: #{tpu_custom_call.1} parent=11 // pred_fallthru
          _
        // Predicated region
        $region21: #{tpu_custom_call.1} parent=11 // pred_check
          %p257 = pneg %p105
        $region22: #{tpu_custom_call.1} parent=11 // pred_check_branch
          %259 = sbr.rel (%p257) target = $region24
        $region23: #{tpu_custom_call.1} parent=11 // pred_region
          _
        $region24: #{tpu_custom_call.1} parent=11 // pred_fallthru
          _
        // Predicated region
        $region25: #{tpu_custom_call.1} parent=11 // pred_check
          %p260 = pneg %p126
        $region26: #{tpu_custom_call.1} parent=11 // pred_check_branch
          %262 = sbr.rel (%p260) target = $region28
        $region27: #{tpu_custom_call.1} parent=11 // pred_region
          _
        $region28: #{tpu_custom_call.1} parent=11 // pred_fallthru
          _
        // Predicated region
        $region29: #{tpu_custom_call.1} parent=11 // pred_check
          %p263 = pneg %p147
        $region30: #{tpu_custom_call.1} parent=11 // pred_check_branch
          %265 = sbr.rel (%p263) target = $region32
        $region31: #{tpu_custom_call.1} parent=11 // pred_region
          %s267 = ssub.s32 7296, 7296
          %268 = vsyncadd [#allocation3], %s267
          %s269 = sshll.u32 [#allocation2], 4
          %s270 = int_to_ptr.vmem [resolvable:$true] %s269
          %275 = dma.hbm_to_vmem [thread:$0]  %s5, 7296, %s270, [#allocation3], 192, 192, 12
        $region32: #{tpu_custom_call.1} parent=11 // pred_fallthru
          _
        // Predicated region
        $region33: #{tpu_custom_call.1} parent=11 // pred_check
          %p276 = pneg %p168
        $region34: #{tpu_custom_call.1} parent=11 // pred_check_branch
          %278 = sbr.rel (%p276) target = $region36
        $region35: #{tpu_custom_call.1} parent=11 // pred_region
          _
        $region36: #{tpu_custom_call.1} parent=11 // pred_fallthru
          _
        // Predicated region
        $region37: #{tpu_custom_call.1} parent=11 // pred_check
          %p279 = pneg %p189
        $region38: #{tpu_custom_call.1} parent=11 // pred_check_branch
          %281 = sbr.rel (%p279) target = $region40
        $region39: #{tpu_custom_call.1} parent=11 // pred_region
          _
        $region40: #{tpu_custom_call.1} parent=11 // pred_fallthru
          _
        // Predicated region
        $region41: #{tpu_custom_call.1} parent=11 // pred_check
          %p282 = pneg %p210
        $region42: #{tpu_custom_call.1} parent=11 // pred_check_branch
          %284 = sbr.rel (%p282) target = $region44
        $region43: #{tpu_custom_call.1} parent=11 // pred_region
          _
        $region44: #{tpu_custom_call.1} parent=11 // pred_fallthru
          _
      $region12: #{tpu_custom_call.1} parent=5 // pred_fallthru
        _
      %p285 = scmp.lt.s32.totalorder %s16, 2
      // Predicated region
      $region45: #{tpu_custom_call.1} parent=5 // pred_check
        %p286 = pneg %p285
      $region46: #{tpu_custom_call.1} parent=5 // pred_check_branch
        %288 = sbr.rel (%p286) target = $region48
      $region47: #{tpu_custom_call.1} parent=5 // pred_region
        // Predicated region
        $region49: #{tpu_custom_call.1} parent=47 // pred_check
          %p289 = pneg %p36
        $region50: #{tpu_custom_call.1} parent=47 // pred_check_branch
          %291 = sbr.rel (%p289) target = $region52
        $region51: #{tpu_custom_call.1} parent=47 // pred_region
          %s292 = smul.u32 32, %s16
          %p293 = scmp.lt.s32.totalorder %s292, 63
          %s294 = scalar_select %p293, %s292, 63
          %s295 = smul.addr %s294, 8
          %s296 = scalar_lea.vmem %s0, %s295
          %s297 = smul.u32 32, %s16
        $region52: #{tpu_custom_call.1} parent=47 // pred_fallthru
          _
      $region48: #{tpu_custom_call.1} parent=5 // pred_fallthru
        _
      %p298 = scmp.le.s32.totalorder 1, %s16
      %p299 = scmp.lt.s32.totalorder %s16, 3
      %p300 = pnand %p298, %p299
      %p301 = pneg %p300
      // Predicated region
      $region53: #{tpu_custom_call.1} parent=5 // pred_check
        _
      $region54: #{tpu_custom_call.1} parent=5 // pred_check_branch
        %303 = sbr.rel (%p300) target = $region56
      $region55: #{tpu_custom_call.1} parent=5 // pred_region
        %s304 = ssub.s32 %s16, 1
        // Predicated region
        $region57: #{tpu_custom_call.1} parent=55 // pred_check
          %p305 = pneg %p147
        $region58: #{tpu_custom_call.1} parent=55 // pred_check_branch
          %307 = sbr.rel (%p305) target = $region60
        $region59: #{tpu_custom_call.1} parent=55 // pred_region
          %308 = dma.done [#allocation3], 7296
        $region60: #{tpu_custom_call.1} parent=55 // pred_fallthru
          _
        %s309 = smul.u32 32, %s21
        %p310 = scmp.lt.s32.totalorder %s309, 63
        %s311 = scalar_select %p310, %s309, 63
        %s312 = smul.addr %s311, 8
        %s313 = scalar_lea.vmem %s0, %s312
        %p314 = pneg %p42
        %p315 = pneg %p39
        %p316 = pneg %p63
        %p317 = pneg %p60
        %p318 = pneg %p84
        %p319 = pneg %p81
        %p320 = pneg %p105
        %p321 = pneg %p102
        %p322 = pneg %p126
        %p323 = pneg %p123
        %p324 = pneg %p147
        %p325 = pneg %p144
        %p326 = pneg %p168
        %p327 = pneg %p165
        %p328 = pneg %p189
        %p329 = pneg %p186
        %p330 = pneg %p210
        %p331 = pneg %p207
        %p332 = pneg %p236
        %p333 = pneg %p233
        %s334 = smul.u32 32, %s21
        %p335 = scmp.lt.s32.totalorder %s334, 63
        %s336 = scalar_select %p335, %s334, 63
        %s337 = smul.addr %s336, 8
        %s338 = scalar_lea.vmem %s9, %s337
        %s339 = smul.u32 32, %s21
        %p340 = scmp.lt.s32.totalorder %s339, 63
        %s341 = scalar_select %p340, %s339, 63
        %s342 = smul.addr %s341, 8
        %s343 = scalar_lea.vmem %s0, %s342
        %s344 = smul.u32 32, %s21
        %s345 = smul.u32 32, %s21
        %p346 = scmp.lt.s32.totalorder %s345, 63
        %s347 = scalar_select %p346, %s345, 63
        %s348 = smul.addr %s347, 8
        %s349 = scalar_lea.vmem %s9, %s348
        %s350 = smul.u32 32, %s21
        %v352 = vld [vmem:[%s343] sm:$0xff]
        %v353 = vld [vmem:[%s343 + $0x8] sm:$0xff]
        %v354 = vld [vmem:[%s343 + $0x10] sm:$0xff]
        %v355 = vld [vmem:[%s343 + $0x18] sm:$0xff]
        %v356 = vld [vmem:[%s343 + $0x20] sm:$0xff]
        %v357 = vld [vmem:[%s343 + $0x28] sm:$0xff]
        %v358 = vld [vmem:[%s343 + $0x30] sm:$0xff]
        %v359 = vld [vmem:[%s343 + $0x38] sm:$0xff]
        %v360 = vld [vmem:[%s343 + $0x40] sm:$0xff]
        %v361 = vld [vmem:[%s343 + $0x48] sm:$0xff]
        %v362 = vld [vmem:[%s343 + $0x50] sm:$0xff]
        %v363 = vld [vmem:[%s343 + $0x58] sm:$0xff]
        %v364 = vld [vmem:[%s343 + $0x60] sm:$0xff]
        %v365 = vld [vmem:[%s343 + $0x68] sm:$0xff]
        %v366 = vld [vmem:[%s343 + $0x70] sm:$0xff]
        %v367 = vld [vmem:[%s343 + $0x78] sm:$0xff]
        %v368 = vld [vmem:[%s343 + $0x80] sm:$0xff]
        %v369 = vld [vmem:[%s343 + $0x88] sm:$0xff]
        %v370 = vld [vmem:[%s343 + $0x90] sm:$0xff]
        %v371 = vld [vmem:[%s343 + $0x98] sm:$0xff]
        %v372 = vld [vmem:[%s343 + $0xa0] sm:$0xff]
        %v373 = vld [vmem:[%s343 + $0xa8] sm:$0xff]
        %v374 = vld [vmem:[%s343 + $0xb0] sm:$0xff]
        %v375 = vld [vmem:[%s343 + $0xb8] sm:$0xff]
        %v376 = vld [vmem:[%s343 + $0xc0] sm:$0xff]
        %v377 = vld [vmem:[%s343 + $0xc8] sm:$0xff]
        %v378 = vld [vmem:[%s343 + $0xd0] sm:$0xff]
        %v379 = vld [vmem:[%s343 + $0xd8] sm:$0xff]
        %v380 = vld [vmem:[%s343 + $0xe0] sm:$0xff]
        %v381 = vld [vmem:[%s343 + $0xe8] sm:$0xff]
        %v382 = vld [vmem:[%s343 + $0xf0] sm:$0xff]
        %v383 = vld [vmem:[%s343 + $0xf8] sm:$0xff]
        %v384 = vpack.c.bf16 %v353, %v352
        %v385 = vpack.c.bf16 %v355, %v354
        %v386 = vpack.c.bf16 %v357, %v356
        %v387 = vpack.c.bf16 %v359, %v358
        %v388 = vpack.c.bf16 %v361, %v360
        %v389 = vpack.c.bf16 %v363, %v362
        %v390 = vpack.c.bf16 %v365, %v364
        %v391 = vpack.c.bf16 %v367, %v366
        %v392 = vpack.c.bf16 %v369, %v368
        %v393 = vpack.c.bf16 %v371, %v370
        %v394 = vpack.c.bf16 %v373, %v372
        %v395 = vpack.c.bf16 %v375, %v374
        %v396 = vpack.c.bf16 %v377, %v376
        %v397 = vpack.c.bf16 %v379, %v378
        %v398 = vpack.c.bf16 %v381, %v380
        %v399 = vpack.c.bf16 %v383, %v382
        %v400 = vld [vmem:[%s1] sm:$0xff]
        %v401 = vld [vmem:[%s1 + $0x8] sm:$0xf]
        %v402 = vld [vmem:[%s1 + $0xc] sm:$0xff]
        %v403 = vld [vmem:[%s1 + $0x14] sm:$0xf]
        %v404 = vld [vmem:[%s1 + $0x18] sm:$0x11]
        %v405 = vld [vmem:[%s1 + $0x20] sm:$0x1]
        %v406 = vld [vmem:[%s2] sm:$0x7]
        %v408 = vlaneseq
        %v409 = vshrl.u32 %v408, 7
        %v410 = vsub.s32 0, %v409
        %v411 = vrot.slane %v406, %v410
        %v412 = vlaneseq
        %v413 = vshrl.u32 %v412, 7
        %v414 = vsub.s32 1, %v413
        %v415 = vrot.slane %v406, %v414
        %v416 = vlaneseq
        %v417 = vshrl.u32 %v416, 7
        %v418 = vsub.s32 2, %v417
        %v419 = vrot.slane %v406, %v418
        %v429 = vunpack.c.l.b16 %v400
        %v430 = vunpack.c.h.b16 %v400
        %v431 = vunpack.c.l.b16 %v401
        %v432 = vunpack.c.l.b16 %v402
        %v433 = vunpack.c.h.b16 %v402
        %v434 = vunpack.c.l.b16 %v403
        %v435 = vunpack.c.l.b16 %v404
        %v436 = vunpack.c.h.b16 %v404
        %v437 = vunpack.c.l.b16 %v405
        %v438 = vpack.c.b16 %v432, %v429
        %v439 = vpack.c.b16 %v433, %v430
        %v440 = vpack.c.b16 %v434, %v431
        %v441 = vpack.c.b16 %v435, %v435
        %v442 = vpack.c.b16 %v436, %v436
        %v443 = vpack.c.b16 %v437, %v437
        %vm447 = vcmask 146432
        %v449 = vsel %vm447, %v384, 0
        %v452 = vsel %vm447, %v385, 0
        %v455 = vsel %vm447, %v386, 0
        %v458 = vsel %vm447, %v387, 0
        %v461 = vsel %vm447, %v388, 0
        %v464 = vsel %vm447, %v389, 0
        %v467 = vsel %vm447, %v390, 0
        %v470 = vsel %vm447, %v391, 0
        %v473 = vsel %vm447, %v392, 0
        %v476 = vsel %vm447, %v393, 0
        %v479 = vsel %vm447, %v394, 0
        %v482 = vsel %vm447, %v395, 0
        %v485 = vsel %vm447, %v396, 0
        %v488 = vsel %vm447, %v397, 0
        %v491 = vsel %vm447, %v398, 0
        %v494 = vsel %vm447, %v399, 0
        %vm496 = vcmask 1040384
        %v498 = vsel %vm496, %v441, 0
        %v501 = vsel %vm496, %v442, 0
        %v504 = vsel %vm496, %v443, 0
        %506 = vmatprep.subr.bf16.mxu0 0
        %507 = vmatpush1.bf16.msra.mxu0 0
        %508 = vmatprep.subr.bf16.mxu0 0
        %509 = vmatpush1.bf16.msra.mxu0 0
        %510 = vmatprep.subr.bf16.mxu0 0
        %511 = vmatpush1.bf16.msra.mxu0 0
        %512 = vmatprep.subr.bf16.mxu0 0
        %513 = vmatpush1.bf16.msra.mxu0 0
        %514 = vmatprep.subr.bf16.mxu0 0
        %515 = vmatpush1.bf16.msra.mxu0 0
        %516 = vmatprep.subr.bf16.mxu0 0
        %517 = vmatpush1.bf16.msra.mxu0 0
        %518 = vmatprep.subr.bf16.mxu0 %v501
        %519 = vmatpush1.bf16.msra.mxu0 %v498
        %520 = vmatprep.subr.bf16.mxu0 %v439
        %521 = vmatpush1.bf16.msra.mxu0 %v438
        %522 = vmatprep.subr.bf16.mxu0 0
        %523 = vmatpush2.bf16.msra.mxu0 0
        %524 = vmatprep.subr.bf16.mxu0 0
        %525 = vmatpush2.bf16.msra.mxu0 0
        %526 = vmatprep.subr.bf16.mxu0 0
        %527 = vmatpush2.bf16.msra.mxu0 0
        %528 = vmatprep.subr.bf16.mxu0 0
        %529 = vmatpush2.bf16.msra.mxu0 0
        %530 = vmatprep.subr.bf16.mxu0 0
        %531 = vmatpush2.bf16.msra.mxu0 0
        %532 = vmatprep.subr.bf16.mxu0 0
        %533 = vmatpush2.bf16.msra.mxu0 0
        %534 = vmatprep.subr.bf16.mxu0 0
        %535 = vmatpush2.bf16.msra.mxu0 0
        %536 = vmatprep.subr.bf16.mxu0 0
        %537 = vmatpush2.bf16.msra.mxu0 0
        %538 = vmatprep.mubr.bf16.mxu0 0
        %539 = vmatmul.mubr.bf16.gmra.mxu0 %v449
        %v540 = vpop.f32.mrf.mxu0
        %v541 = vadd.f32 %v411, %v540
        %v542 = vpop.f32.mrf.mxu0
        %v543 = vadd.f32 %v415, %v542
        %v544 = vpop.f32.mrf.mxu0
        %v545 = vadd.f32 %v411, %v544
        %v546 = vpop.f32.mrf.mxu0
        %v547 = vadd.f32 %v415, %v546
        %548 = vmatprep.mubr.bf16.mxu0 0
        %549 = vmatmul.mubr.bf16.gmra.mxu0 %v452
        %v550 = vpop.f32.mrf.mxu0
        %v551 = vadd.f32 %v411, %v550
        %v552 = vpop.f32.mrf.mxu0
        %v553 = vadd.f32 %v415, %v552
        %v554 = vpop.f32.mrf.mxu0
        %v555 = vadd.f32 %v411, %v554
        %v556 = vpop.f32.mrf.mxu0
        %v557 = vadd.f32 %v415, %v556
        %558 = vmatprep.mubr.bf16.mxu0 0
        %559 = vmatmul.mubr.bf16.gmra.mxu0 %v455
        %v560 = vpop.f32.mrf.mxu0
        %v561 = vadd.f32 %v411, %v560
        %v562 = vpop.f32.mrf.mxu0
        %v563 = vadd.f32 %v415, %v562
        %v564 = vpop.f32.mrf.mxu0
        %v565 = vadd.f32 %v411, %v564
        %v566 = vpop.f32.mrf.mxu0
        %v567 = vadd.f32 %v415, %v566
        %568 = vmatprep.mubr.bf16.mxu0 0
        %569 = vmatmul.mubr.bf16.gmra.mxu0 %v458
        %v570 = vpop.f32.mrf.mxu0
        %v571 = vadd.f32 %v411, %v570
        %v572 = vpop.f32.mrf.mxu0
        %v573 = vadd.f32 %v415, %v572
        %v574 = vpop.f32.mrf.mxu0
        %v575 = vadd.f32 %v411, %v574
        %v576 = vpop.f32.mrf.mxu0
        %v577 = vadd.f32 %v415, %v576
        %578 = vmatprep.mubr.bf16.mxu0 0
        %579 = vmatmul.mubr.bf16.gmra.mxu0 %v461
        %v580 = vpop.f32.mrf.mxu0
        %v581 = vadd.f32 %v411, %v580
        %v582 = vpop.f32.mrf.mxu0
        %v583 = vadd.f32 %v415, %v582
        %v584 = vpop.f32.mrf.mxu0
        %v585 = vadd.f32 %v411, %v584
        %v586 = vpop.f32.mrf.mxu0
        %v587 = vadd.f32 %v415, %v586
        %588 = vmatprep.mubr.bf16.mxu0 0
        %589 = vmatmul.mubr.bf16.gmra.mxu0 %v464
        %v590 = vpop.f32.mrf.mxu0
        %v591 = vadd.f32 %v411, %v590
        %v592 = vpop.f32.mrf.mxu0
        %v593 = vadd.f32 %v415, %v592
        %v594 = vpop.f32.mrf.mxu0
        %v595 = vadd.f32 %v411, %v594
        %v596 = vpop.f32.mrf.mxu0
        %v597 = vadd.f32 %v415, %v596
        %598 = vmatprep.mubr.bf16.mxu0 0
        %599 = vmatmul.mubr.bf16.gmra.mxu0 %v467
        %v600 = vpop.f32.mrf.mxu0
        %v601 = vadd.f32 %v411, %v600
        %v602 = vpop.f32.mrf.mxu0
        %v603 = vadd.f32 %v415, %v602
        %v604 = vpop.f32.mrf.mxu0
        %v605 = vadd.f32 %v411, %v604
        %v606 = vpop.f32.mrf.mxu0
        %v607 = vadd.f32 %v415, %v606
        %608 = vmatprep.mubr.bf16.mxu0 0
        %609 = vmatmul.mubr.bf16.gmra.mxu0 %v470
        %v610 = vpop.f32.mrf.mxu0
        %v611 = vadd.f32 %v411, %v610
        %v612 = vpop.f32.mrf.mxu0
        %v613 = vadd.f32 %v415, %v612
        %v614 = vpop.f32.mrf.mxu0
        %v615 = vadd.f32 %v411, %v614
        %v616 = vpop.f32.mrf.mxu0
        %v617 = vadd.f32 %v415, %v616
        %618 = vmatprep.mubr.bf16.mxu0 0
        %619 = vmatmul.mubr.bf16.gmra.mxu0 %v473
        %v620 = vpop.f32.mrf.mxu0
        %v621 = vadd.f32 %v411, %v620
        %v622 = vpop.f32.mrf.mxu0
        %v623 = vadd.f32 %v415, %v622
        %v624 = vpop.f32.mrf.mxu0
        %v625 = vadd.f32 %v411, %v624
        %v626 = vpop.f32.mrf.mxu0
        %v627 = vadd.f32 %v415, %v626
        %628 = vmatprep.mubr.bf16.mxu0 0
        %629 = vmatmul.mubr.bf16.gmra.mxu0 %v476
        %v630 = vpop.f32.mrf.mxu0
        %v631 = vadd.f32 %v411, %v630
        %v632 = vpop.f32.mrf.mxu0
        %v633 = vadd.f32 %v415, %v632
        %v634 = vpop.f32.mrf.mxu0
        %v635 = vadd.f32 %v411, %v634
        %v636 = vpop.f32.mrf.mxu0
        %v637 = vadd.f32 %v415, %v636
        %638 = vmatprep.mubr.bf16.mxu0 0
        %639 = vmatmul.mubr.bf16.gmra.mxu0 %v479
        %v640 = vpop.f32.mrf.mxu0
        %v641 = vadd.f32 %v411, %v640
        %v642 = vpop.f32.mrf.mxu0
        %v643 = vadd.f32 %v415, %v642
        %v644 = vpop.f32.mrf.mxu0
        %v645 = vadd.f32 %v411, %v644
        %v646 = vpop.f32.mrf.mxu0
        %v647 = vadd.f32 %v415, %v646
        %648 = vmatprep.mubr.bf16.mxu0 0
        %649 = vmatmul.mubr.bf16.gmra.mxu0 %v482
        %v650 = vpop.f32.mrf.mxu0
        %v651 = vadd.f32 %v411, %v650
        %v652 = vpop.f32.mrf.mxu0
        %v653 = vadd.f32 %v415, %v652
        %v654 = vpop.f32.mrf.mxu0
        %v655 = vadd.f32 %v411, %v654
        %v656 = vpop.f32.mrf.mxu0
        %v657 = vadd.f32 %v415, %v656
        %658 = vmatprep.mubr.bf16.mxu0 0
        %659 = vmatmul.mubr.bf16.gmra.mxu0 %v485
        %v660 = vpop.f32.mrf.mxu0
        %v661 = vadd.f32 %v411, %v660
        %v662 = vpop.f32.mrf.mxu0
        %v663 = vadd.f32 %v415, %v662
        %v664 = vpop.f32.mrf.mxu0
        %v665 = vadd.f32 %v411, %v664
        %v666 = vpop.f32.mrf.mxu0
        %v667 = vadd.f32 %v415, %v666
        %668 = vmatprep.mubr.bf16.mxu0 0
        %669 = vmatmul.mubr.bf16.gmra.mxu0 %v488
        %v670 = vpop.f32.mrf.mxu0
        %v671 = vadd.f32 %v411, %v670
        %v672 = vpop.f32.mrf.mxu0
        %v673 = vadd.f32 %v415, %v672
        %v674 = vpop.f32.mrf.mxu0
        %v675 = vadd.f32 %v411, %v674
        %v676 = vpop.f32.mrf.mxu0
        %v677 = vadd.f32 %v415, %v676
        %678 = vmatprep.mubr.bf16.mxu0 0
        %679 = vmatmul.mubr.bf16.gmra.mxu0 %v491
        %v680 = vpop.f32.mrf.mxu0
        %v681 = vadd.f32 %v411, %v680
        %v682 = vpop.f32.mrf.mxu0
        %v683 = vadd.f32 %v415, %v682
        %v684 = vpop.f32.mrf.mxu0
        %v685 = vadd.f32 %v411, %v684
        %v686 = vpop.f32.mrf.mxu0
        %v687 = vadd.f32 %v415, %v686
        %688 = vmatprep.mubr.bf16.mxu0 0
        %689 = vmatmul.mubr.bf16.gmra.mxu0 %v494
        %v690 = vpop.f32.mrf.mxu0
        %v691 = vadd.f32 %v411, %v690
        %v692 = vpop.f32.mrf.mxu0
        %v693 = vadd.f32 %v415, %v692
        %v694 = vpop.f32.mrf.mxu0
        %v695 = vadd.f32 %v411, %v694
        %v696 = vpop.f32.mrf.mxu0
        %v697 = vadd.f32 %v415, %v696
        %698 = vdwg.mxu0
        %699 = vmatprep.subr.bf16.mxu0 0
        %700 = vmatpush1.bf16.msra.mxu0 0
        %701 = vmatprep.subr.bf16.mxu0 0
        %702 = vmatpush1.bf16.msra.mxu0 0
        %703 = vmatprep.subr.bf16.mxu0 0
        %704 = vmatpush1.bf16.msra.mxu0 0
        %705 = vmatprep.subr.bf16.mxu0 0
        %706 = vmatpush1.bf16.msra.mxu0 0
        %707 = vmatprep.subr.bf16.mxu0 0
        %708 = vmatpush1.bf16.msra.mxu0 0
        %709 = vmatprep.subr.bf16.mxu0 0
        %710 = vmatpush1.bf16.msra.mxu0 0
        %711 = vmatprep.subr.bf16.mxu0 0
        %712 = vmatpush1.bf16.msra.mxu0 %v504
        %713 = vmatprep.subr.bf16.mxu0 0
        %714 = vmatpush1.bf16.msra.mxu0 %v440
        %715 = vmatprep.subr.bf16.mxu0 0
        %716 = vmatpush2.bf16.msra.mxu0 0
        %717 = vmatprep.subr.bf16.mxu0 0
        %718 = vmatpush2.bf16.msra.mxu0 0
        %719 = vmatprep.subr.bf16.mxu0 0
        %720 = vmatpush2.bf16.msra.mxu0 0
        %721 = vmatprep.subr.bf16.mxu0 0
        %722 = vmatpush2.bf16.msra.mxu0 0
        %723 = vmatprep.subr.bf16.mxu0 0
        %724 = vmatpush2.bf16.msra.mxu0 0
        %725 = vmatprep.subr.bf16.mxu0 0
        %726 = vmatpush2.bf16.msra.mxu0 0
        %727 = vmatprep.subr.bf16.mxu0 0
        %728 = vmatpush2.bf16.msra.mxu0 0
        %729 = vmatprep.subr.bf16.mxu0 0
        %730 = vmatpush2.bf16.msra.mxu0 0
        %731 = vmatprep.mubr.bf16.mxu0 0
        %732 = vmatmul.mubr.bf16.gmra.mxu0 %v449
        %v733 = vpop.f32.mrf.mxu0
        %v734 = vadd.f32 %v419, %v733
        %v735 = vpop.f32.mrf.mxu0
        %v736 = vpop.f32.mrf.mxu0
        %v737 = vadd.f32 %v419, %v736
        %v738 = vpop.f32.mrf.mxu0
        %739 = vmatprep.mubr.bf16.mxu0 0
        %740 = vmatmul.mubr.bf16.gmra.mxu0 %v452
        %v741 = vpop.f32.mrf.mxu0
        %v742 = vadd.f32 %v419, %v741
        %v743 = vpop.f32.mrf.mxu0
        %v744 = vpop.f32.mrf.mxu0
        %v745 = vadd.f32 %v419, %v744
        %v746 = vpop.f32.mrf.mxu0
        %747 = vmatprep.mubr.bf16.mxu0 0
        %748 = vmatmul.mubr.bf16.gmra.mxu0 %v455
        %v749 = vpop.f32.mrf.mxu0
        %v750 = vadd.f32 %v419, %v749
        %v751 = vpop.f32.mrf.mxu0
        %v752 = vpop.f32.mrf.mxu0
        %v753 = vadd.f32 %v419, %v752
        %v754 = vpop.f32.mrf.mxu0
        %755 = vmatprep.mubr.bf16.mxu0 0
        %756 = vmatmul.mubr.bf16.gmra.mxu0 %v458
        %v757 = vpop.f32.mrf.mxu0
        %v758 = vadd.f32 %v419, %v757
        %v759 = vpop.f32.mrf.mxu0
        %v760 = vpop.f32.mrf.mxu0
        %v761 = vadd.f32 %v419, %v760
        %v762 = vpop.f32.mrf.mxu0
        %763 = vmatprep.mubr.bf16.mxu0 0
        %764 = vmatmul.mubr.bf16.gmra.mxu0 %v461
        %v765 = vpop.f32.mrf.mxu0
        %v766 = vadd.f32 %v419, %v765
        %v767 = vpop.f32.mrf.mxu0
        %v768 = vpop.f32.mrf.mxu0
        %v769 = vadd.f32 %v419, %v768
        %v770 = vpop.f32.mrf.mxu0
        %771 = vmatprep.mubr.bf16.mxu0 0
        %772 = vmatmul.mubr.bf16.gmra.mxu0 %v464
        %v773 = vpop.f32.mrf.mxu0
        %v774 = vadd.f32 %v419, %v773
        %v775 = vpop.f32.mrf.mxu0
        %v776 = vpop.f32.mrf.mxu0
        %v777 = vadd.f32 %v419, %v776
        %v778 = vpop.f32.mrf.mxu0
        %779 = vmatprep.mubr.bf16.mxu0 0
        %780 = vmatmul.mubr.bf16.gmra.mxu0 %v467
        %v781 = vpop.f32.mrf.mxu0
        %v782 = vadd.f32 %v419, %v781
        %v783 = vpop.f32.mrf.mxu0
        %v784 = vpop.f32.mrf.mxu0
        %v785 = vadd.f32 %v419, %v784
        %v786 = vpop.f32.mrf.mxu0
        %787 = vmatprep.mubr.bf16.mxu0 0
        %788 = vmatmul.mubr.bf16.gmra.mxu0 %v470
        %v789 = vpop.f32.mrf.mxu0
        %v790 = vadd.f32 %v419, %v789
        %v791 = vpop.f32.mrf.mxu0
        %v792 = vpop.f32.mrf.mxu0
        %v793 = vadd.f32 %v419, %v792
        %v794 = vpop.f32.mrf.mxu0
        %795 = vmatprep.mubr.bf16.mxu0 0
        %796 = vmatmul.mubr.bf16.gmra.mxu0 %v473
        %v797 = vpop.f32.mrf.mxu0
        %v798 = vadd.f32 %v419, %v797
        %v799 = vpop.f32.mrf.mxu0
        %v800 = vpop.f32.mrf.mxu0
        %v801 = vadd.f32 %v419, %v800
        %v802 = vpop.f32.mrf.mxu0
        %803 = vmatprep.mubr.bf16.mxu0 0
        %804 = vmatmul.mubr.bf16.gmra.mxu0 %v476
        %v805 = vpop.f32.mrf.mxu0
        %v806 = vadd.f32 %v419, %v805
        %v807 = vpop.f32.mrf.mxu0
        %v808 = vpop.f32.mrf.mxu0
        %v809 = vadd.f32 %v419, %v808
        %v810 = vpop.f32.mrf.mxu0
        %811 = vmatprep.mubr.bf16.mxu0 0
        %812 = vmatmul.mubr.bf16.gmra.mxu0 %v479
        %v813 = vpop.f32.mrf.mxu0
        %v814 = vadd.f32 %v419, %v813
        %v815 = vpop.f32.mrf.mxu0
        %v816 = vpop.f32.mrf.mxu0
        %v817 = vadd.f32 %v419, %v816
        %v818 = vpop.f32.mrf.mxu0
        %819 = vmatprep.mubr.bf16.mxu0 0
        %820 = vmatmul.mubr.bf16.gmra.mxu0 %v482
        %v821 = vpop.f32.mrf.mxu0
        %v822 = vadd.f32 %v419, %v821
        %v823 = vpop.f32.mrf.mxu0
        %v824 = vpop.f32.mrf.mxu0
        %v825 = vadd.f32 %v419, %v824
        %v826 = vpop.f32.mrf.mxu0
        %827 = vmatprep.mubr.bf16.mxu0 0
        %828 = vmatmul.mubr.bf16.gmra.mxu0 %v485
        %v829 = vpop.f32.mrf.mxu0
        %v830 = vadd.f32 %v419, %v829
        %v831 = vpop.f32.mrf.mxu0
        %v832 = vpop.f32.mrf.mxu0
        %v833 = vadd.f32 %v419, %v832
        %v834 = vpop.f32.mrf.mxu0
        %835 = vmatprep.mubr.bf16.mxu0 0
        %836 = vmatmul.mubr.bf16.gmra.mxu0 %v488
        %v837 = vpop.f32.mrf.mxu0
        %v838 = vadd.f32 %v419, %v837
        %v839 = vpop.f32.mrf.mxu0
        %v840 = vpop.f32.mrf.mxu0
        %v841 = vadd.f32 %v419, %v840
        %v842 = vpop.f32.mrf.mxu0
        %843 = vmatprep.mubr.bf16.mxu0 0
        %844 = vmatmul.mubr.bf16.gmra.mxu0 %v491
        %v845 = vpop.f32.mrf.mxu0
        %v846 = vadd.f32 %v419, %v845
        %v847 = vpop.f32.mrf.mxu0
        %v848 = vpop.f32.mrf.mxu0
        %v849 = vadd.f32 %v419, %v848
        %v850 = vpop.f32.mrf.mxu0
        %851 = vmatprep.mubr.bf16.mxu0 0
        %852 = vmatmul.mubr.bf16.gmra.mxu0 %v494
        %v853 = vpop.f32.mrf.mxu0
        %v854 = vadd.f32 %v419, %v853
        %v855 = vpop.f32.mrf.mxu0
        %v856 = vpop.f32.mrf.mxu0
        %v857 = vadd.f32 %v419, %v856
        %v858 = vpop.f32.mrf.mxu0
        %859 = vdwg.mxu0
        %v860 = vtanh.pop %v541
        %v861 = vtanh.pop %v543
        %v862 = vtanh.pop %v734
        %v863 = vtanh.pop %v545
        %v864 = vtanh.pop %v547
        %v865 = vtanh.pop %v737
        %v866 = vtanh.pop %v551
        %v867 = vtanh.pop %v553
        %v868 = vtanh.pop %v742
        %v869 = vtanh.pop %v555
        %v870 = vtanh.pop %v557
        %v871 = vtanh.pop %v745
        %v872 = vtanh.pop %v561
        %v873 = vtanh.pop %v563
        %v874 = vtanh.pop %v750
        %v875 = vtanh.pop %v565
        %v876 = vtanh.pop %v567
        %v877 = vtanh.pop %v753
        %v878 = vtanh.pop %v571
        %v879 = vtanh.pop %v573
        %v880 = vtanh.pop %v758
        %v881 = vtanh.pop %v575
        %v882 = vtanh.pop %v577
        %v883 = vtanh.pop %v761
        %v884 = vtanh.pop %v581
        %v885 = vtanh.pop %v583
        %v886 = vtanh.pop %v766
        %v887 = vtanh.pop %v585
        %v888 = vtanh.pop %v587
        %v889 = vtanh.pop %v769
        %v890 = vtanh.pop %v591
        %v891 = vtanh.pop %v593
        %v892 = vtanh.pop %v774
        %v893 = vtanh.pop %v595
        %v894 = vtanh.pop %v597
        %v895 = vtanh.pop %v777
        %v896 = vtanh.pop %v601
        %v897 = vtanh.pop %v603
        %v898 = vtanh.pop %v782
        %v899 = vtanh.pop %v605
        %v900 = vtanh.pop %v607
        %v901 = vtanh.pop %v785
        %v902 = vtanh.pop %v611
        %v903 = vtanh.pop %v613
        %v904 = vtanh.pop %v790
        %v905 = vtanh.pop %v615
        %v906 = vtanh.pop %v617
        %v907 = vtanh.pop %v793
        %v908 = vtanh.pop %v621
        %v909 = vtanh.pop %v623
        %v910 = vtanh.pop %v798
        %v911 = vtanh.pop %v625
        %v912 = vtanh.pop %v627
        %v913 = vtanh.pop %v801
        %v914 = vtanh.pop %v631
        %v915 = vtanh.pop %v633
        %v916 = vtanh.pop %v806
        %v917 = vtanh.pop %v635
        %v918 = vtanh.pop %v637
        %v919 = vtanh.pop %v809
        %v920 = vtanh.pop %v641
        %v921 = vtanh.pop %v643
        %v922 = vtanh.pop %v814
        %v923 = vtanh.pop %v645
        %v924 = vtanh.pop %v647
        %v925 = vtanh.pop %v817
        %v926 = vtanh.pop %v651
        %v927 = vtanh.pop %v653
        %v928 = vtanh.pop %v822
        %v929 = vtanh.pop %v655
        %v930 = vtanh.pop %v657
        %v931 = vtanh.pop %v825
        %v932 = vtanh.pop %v661
        %v933 = vtanh.pop %v663
        %v934 = vtanh.pop %v830
        %v935 = vtanh.pop %v665
        %v936 = vtanh.pop %v667
        %v937 = vtanh.pop %v833
        %v938 = vtanh.pop %v671
        %v939 = vtanh.pop %v673
        %v940 = vtanh.pop %v838
        %v941 = vtanh.pop %v675
        %v942 = vtanh.pop %v677
        %v943 = vtanh.pop %v841
        %v944 = vtanh.pop %v681
        %v945 = vtanh.pop %v683
        %v946 = vtanh.pop %v846
        %v947 = vtanh.pop %v685
        %v948 = vtanh.pop %v687
        %v949 = vtanh.pop %v849
        %v950 = vtanh.pop %v691
        %v951 = vtanh.pop %v693
        %v952 = vtanh.pop %v854
        %v953 = vtanh.pop %v695
        %v954 = vtanh.pop %v697
        %v955 = vtanh.pop %v857
        %v956 = vpack.c.bf16 %v863, %v860
        %v957 = vpack.c.bf16 %v864, %v861
        %v958 = vpack.c.bf16 %v865, %v862
        %v959 = vpack.c.bf16 %v869, %v866
        %v960 = vpack.c.bf16 %v870, %v867
        %v961 = vpack.c.bf16 %v871, %v868
        %v962 = vpack.c.bf16 %v875, %v872
        %v963 = vpack.c.bf16 %v876, %v873
        %v964 = vpack.c.bf16 %v877, %v874
        %v965 = vpack.c.bf16 %v881, %v878
        %v966 = vpack.c.bf16 %v882, %v879
        %v967 = vpack.c.bf16 %v883, %v880
        %v968 = vpack.c.bf16 %v887, %v884
        %v969 = vpack.c.bf16 %v888, %v885
        %v970 = vpack.c.bf16 %v889, %v886
        %v971 = vpack.c.bf16 %v893, %v890
        %v972 = vpack.c.bf16 %v894, %v891
        %v973 = vpack.c.bf16 %v895, %v892
        %v974 = vpack.c.bf16 %v899, %v896
        %v975 = vpack.c.bf16 %v900, %v897
        %v976 = vpack.c.bf16 %v901, %v898
        %v977 = vpack.c.bf16 %v905, %v902
        %v978 = vpack.c.bf16 %v906, %v903
        %v979 = vpack.c.bf16 %v907, %v904
        %v980 = vpack.c.bf16 %v911, %v908
        %v981 = vpack.c.bf16 %v912, %v909
        %v982 = vpack.c.bf16 %v913, %v910
        %v983 = vpack.c.bf16 %v917, %v914
        %v984 = vpack.c.bf16 %v918, %v915
        %v985 = vpack.c.bf16 %v919, %v916
        %v986 = vpack.c.bf16 %v923, %v920
        %v987 = vpack.c.bf16 %v924, %v921
        %v988 = vpack.c.bf16 %v925, %v922
        %v989 = vpack.c.bf16 %v929, %v926
        %v990 = vpack.c.bf16 %v930, %v927
        %v991 = vpack.c.bf16 %v931, %v928
        %v992 = vpack.c.bf16 %v935, %v932
        %v993 = vpack.c.bf16 %v936, %v933
        %v994 = vpack.c.bf16 %v937, %v934
        %v995 = vpack.c.bf16 %v941, %v938
        %v996 = vpack.c.bf16 %v942, %v939
        %v997 = vpack.c.bf16 %v943, %v940
        %v998 = vpack.c.bf16 %v947, %v944
        %v999 = vpack.c.bf16 %v948, %v945
        %v1000 = vpack.c.bf16 %v949, %v946
        %v1001 = vpack.c.bf16 %v953, %v950
        %v1002 = vpack.c.bf16 %v954, %v951
        %v1003 = vpack.c.bf16 %v955, %v952
        %v1004 = vld [vmem:[%s3] sm:$0xff]
        %v1005 = vld [vmem:[%s3 + $0x8] sm:$0xf]
        %v1006 = vld [vmem:[%s3 + $0xc] sm:$0xff]
        %v1007 = vld [vmem:[%s3 + $0x14] sm:$0xf]
        %v1008 = vld [vmem:[%s3 + $0x18] sm:$0xff]
        %v1009 = vld [vmem:[%s3 + $0x20] sm:$0xf]
        %v1010 = vld [vmem:[%s3 + $0x24] sm:$0xff]
        %v1011 = vld [vmem:[%s3 + $0x2c] sm:$0xf]
        %v1012 = vld [vmem:[%s3 + $0x30] sm:$0xff]
        %v1013 = vld [vmem:[%s3 + $0x38] sm:$0xf]
        %v1014 = vld [vmem:[%s3 + $0x3c] sm:$0xff]
        %v1015 = vld [vmem:[%s3 + $0x44] sm:$0xf]
        %v1016 = vld [vmem:[%s3 + $0x48] sm:$0xff]
        %v1017 = vld [vmem:[%s3 + $0x50] sm:$0xf]
        %v1018 = vld [vmem:[%s3 + $0x54] sm:$0xff]
        %v1019 = vld [vmem:[%s3 + $0x5c] sm:$0xf]
        %v1020 = vld [vmem:[%s3 + $0x60] sm:$0xff]
        %v1021 = vld [vmem:[%s3 + $0x68] sm:$0xf]
        %v1022 = vld [vmem:[%s3 + $0x6c] sm:$0xff]
        %v1023 = vld [vmem:[%s3 + $0x74] sm:$0xf]
        %v1024 = vld [vmem:[%s3 + $0x78] sm:$0xff]
        %v1025 = vld [vmem:[%s3 + $0x80] sm:$0xf]
        %v1026 = vld [vmem:[%s3 + $0x84] sm:$0xff]
        %v1027 = vld [vmem:[%s3 + $0x8c] sm:$0xf]
        %v1028 = vld [vmem:[%s3 + $0x90] sm:$0xff]
        %v1029 = vld [vmem:[%s3 + $0x98] sm:$0xf]
        %v1030 = vld [vmem:[%s3 + $0x9c] sm:$0xff]
        %v1031 = vld [vmem:[%s3 + $0xa4] sm:$0xf]
        %v1032 = vld [vmem:[%s3 + $0xa8] sm:$0xff]
        %v1033 = vld [vmem:[%s3 + $0xb0] sm:$0xf]
        %v1034 = vld [vmem:[%s3 + $0xb4] sm:$0xff]
        %v1035 = vld [vmem:[%s3 + $0xbc] sm:$0xf]
        %v1036 = vld [vmem:[%s3 + $0xc0] sm:$0xff]
        %v1037 = vld [vmem:[%s3 + $0xc8] sm:$0xf]
        %v1038 = vld [vmem:[%s3 + $0xcc] sm:$0xff]
        %v1039 = vld [vmem:[%s3 + $0xd4] sm:$0xf]
        %v1040 = vld [vmem:[%s3 + $0xd8] sm:$0xff]
        %v1041 = vld [vmem:[%s3 + $0xe0] sm:$0xf]
        %v1042 = vld [vmem:[%s3 + $0xe4] sm:$0xff]
        %v1043 = vld [vmem:[%s3 + $0xec] sm:$0xf]
        %v1044 = vld [vmem:[%s3 + $0xf0] sm:$0xff]
        %v1045 = vld [vmem:[%s3 + $0xf8] sm:$0xf]
        %v1046 = vld [vmem:[%s3 + $0xfc] sm:$0xff]
        %v1047 = vld [vmem:[%s3 + $0x104] sm:$0xf]
        %v1048 = vld [vmem:[%s3 + $0x108] sm:$0xff]
        %v1049 = vld [vmem:[%s3 + $0x110] sm:$0xf]
        %v1050 = vld [vmem:[%s3 + $0x114] sm:$0xff]
        %v1051 = vld [vmem:[%s3 + $0x11c] sm:$0xf]
        %v1052 = vld [vmem:[%s3 + $0x120] sm:$0xff]
        %v1053 = vld [vmem:[%s3 + $0x128] sm:$0xf]
        %v1054 = vld [vmem:[%s3 + $0x12c] sm:$0xff]
        %v1055 = vld [vmem:[%s3 + $0x134] sm:$0xf]
        %v1056 = vld [vmem:[%s3 + $0x138] sm:$0xff]
        %v1057 = vld [vmem:[%s3 + $0x140] sm:$0xf]
        %v1058 = vld [vmem:[%s3 + $0x144] sm:$0xff]
        %v1059 = vld [vmem:[%s3 + $0x14c] sm:$0xf]
        %v1060 = vld [vmem:[%s3 + $0x150] sm:$0xff]
        %v1061 = vld [vmem:[%s3 + $0x158] sm:$0xf]
        %v1062 = vld [vmem:[%s3 + $0x15c] sm:$0xff]
        %v1063 = vld [vmem:[%s3 + $0x164] sm:$0xf]
        %v1064 = vld [vmem:[%s3 + $0x168] sm:$0xff]
        %v1065 = vld [vmem:[%s3 + $0x170] sm:$0xf]
        %v1066 = vld [vmem:[%s3 + $0x174] sm:$0xff]
        %v1067 = vld [vmem:[%s3 + $0x17c] sm:$0xf]
        %v1068 = vld [vmem:[%s3 + $0x180] sm:$0xff]
        %v1069 = vld [vmem:[%s3 + $0x188] sm:$0xf]
        %v1070 = vld [vmem:[%s3 + $0x18c] sm:$0xff]
        %v1071 = vld [vmem:[%s3 + $0x194] sm:$0xf]
        %v1072 = vld [vmem:[%s3 + $0x198] sm:$0xff]
        %v1073 = vld [vmem:[%s3 + $0x1a0] sm:$0xf]
        %v1074 = vld [vmem:[%s3 + $0x1a4] sm:$0xff]
        %v1075 = vld [vmem:[%s3 + $0x1ac] sm:$0xf]
        %v1076 = vld [vmem:[%s3 + $0x1b0] sm:$0xff]
        %v1077 = vld [vmem:[%s3 + $0x1b8] sm:$0xf]
        %v1078 = vld [vmem:[%s3 + $0x1bc] sm:$0x33]
        %v1079 = vld [vmem:[%s3 + $0x1c4] sm:$0x3]
        %v1080 = vld [vmem:[%s4] sm:$0x7]
        %v1082 = vlaneseq
        %v1083 = vshrl.u32 %v1082, 7
        %v1084 = vsub.s32 0, %v1083
        %v1085 = vrot.slane %v1080, %v1084
        %v1086 = vlaneseq
        %v1087 = vshrl.u32 %v1086, 7
        %v1088 = vsub.s32 1, %v1087
        %v1089 = vrot.slane %v1080, %v1088
        %v1090 = vlaneseq
        %v1091 = vshrl.u32 %v1090, 7
        %v1092 = vsub.s32 2, %v1091
        %v1093 = vrot.slane %v1080, %v1092
        %v1173 = vunpack.c.l.b16 %v1004
        %v1174 = vunpack.c.h.b16 %v1004
        %v1175 = vunpack.c.l.b16 %v1005
        %v1176 = vunpack.c.l.b16 %v1006
        %v1177 = vunpack.c.h.b16 %v1006
        %v1178 = vunpack.c.l.b16 %v1007
        %v1179 = vunpack.c.l.b16 %v1008
        %v1180 = vunpack.c.h.b16 %v1008
        %v1181 = vunpack.c.l.b16 %v1009
        %v1182 = vunpack.c.l.b16 %v1010
        %v1183 = vunpack.c.h.b16 %v1010
        %v1184 = vunpack.c.l.b16 %v1011
        %v1185 = vunpack.c.l.b16 %v1012
        %v1186 = vunpack.c.h.b16 %v1012
        %v1187 = vunpack.c.l.b16 %v1013
        %v1188 = vunpack.c.l.b16 %v1014
        %v1189 = vunpack.c.h.b16 %v1014
        %v1190 = vunpack.c.l.b16 %v1015
        %v1191 = vunpack.c.l.b16 %v1016
        %v1192 = vunpack.c.h.b16 %v1016
        %v1193 = vunpack.c.l.b16 %v1017
        %v1194 = vunpack.c.l.b16 %v1018
        %v1195 = vunpack.c.h.b16 %v1018
        %v1196 = vunpack.c.l.b16 %v1019
        %v1197 = vunpack.c.l.b16 %v1020
        %v1198 = vunpack.c.h.b16 %v1020
        %v1199 = vunpack.c.l.b16 %v1021
        %v1200 = vunpack.c.l.b16 %v1022
        %v1201 = vunpack.c.h.b16 %v1022
        %v1202 = vunpack.c.l.b16 %v1023
        %v1203 = vunpack.c.l.b16 %v1024
        %v1204 = vunpack.c.h.b16 %v1024
        %v1205 = vunpack.c.l.b16 %v1025
        %v1206 = vunpack.c.l.b16 %v1026
        %v1207 = vunpack.c.h.b16 %v1026
        %v1208 = vunpack.c.l.b16 %v1027
        %v1209 = vunpack.c.l.b16 %v1028
        %v1210 = vunpack.c.h.b16 %v1028
        %v1211 = vunpack.c.l.b16 %v1029
        %v1212 = vunpack.c.l.b16 %v1030
        %v1213 = vunpack.c.h.b16 %v1030
        %v1214 = vunpack.c.l.b16 %v1031
        %v1215 = vunpack.c.l.b16 %v1032
        %v1216 = vunpack.c.h.b16 %v1032
        %v1217 = vunpack.c.l.b16 %v1033
        %v1218 = vunpack.c.l.b16 %v1034
        %v1219 = vunpack.c.h.b16 %v1034
        %v1220 = vunpack.c.l.b16 %v1035
        %v1221 = vunpack.c.l.b16 %v1036
        %v1222 = vunpack.c.h.b16 %v1036
        %v1223 = vunpack.c.l.b16 %v1037
        %v1224 = vunpack.c.l.b16 %v1038
        %v1225 = vunpack.c.h.b16 %v1038
        %v1226 = vunpack.c.l.b16 %v1039
        %v1227 = vunpack.c.l.b16 %v1040
        %v1228 = vunpack.c.h.b16 %v1040
        %v1229 = vunpack.c.l.b16 %v1041
        %v1230 = vunpack.c.l.b16 %v1042
        %v1231 = vunpack.c.h.b16 %v1042
        %v1232 = vunpack.c.l.b16 %v1043
        %v1233 = vunpack.c.l.b16 %v1044
        %v1234 = vunpack.c.h.b16 %v1044
        %v1235 = vunpack.c.l.b16 %v1045
        %v1236 = vunpack.c.l.b16 %v1046
        %v1237 = vunpack.c.h.b16 %v1046
        %v1238 = vunpack.c.l.b16 %v1047
        %v1239 = vunpack.c.l.b16 %v1048
        %v1240 = vunpack.c.h.b16 %v1048
        %v1241 = vunpack.c.l.b16 %v1049
        %v1242 = vunpack.c.l.b16 %v1050
        %v1243 = vunpack.c.h.b16 %v1050
        %v1244 = vunpack.c.l.b16 %v1051
        %v1245 = vunpack.c.l.b16 %v1052
        %v1246 = vunpack.c.h.b16 %v1052
        %v1247 = vunpack.c.l.b16 %v1053
        %v1248 = vunpack.c.l.b16 %v1054
        %v1249 = vunpack.c.h.b16 %v1054
        %v1250 = vunpack.c.l.b16 %v1055
        %v1251 = vunpack.c.l.b16 %v1056
        %v1252 = vunpack.c.h.b16 %v1056
        %v1253 = vunpack.c.l.b16 %v1057
        %v1254 = vunpack.c.l.b16 %v1058
        %v1255 = vunpack.c.h.b16 %v1058
        %v1256 = vunpack.c.l.b16 %v1059
        %v1257 = vunpack.c.l.b16 %v1060
        %v1258 = vunpack.c.h.b16 %v1060
        %v1259 = vunpack.c.l.b16 %v1061
        %v1260 = vunpack.c.l.b16 %v1062
        %v1261 = vunpack.c.h.b16 %v1062
        %v1262 = vunpack.c.l.b16 %v1063
        %v1263 = vunpack.c.l.b16 %v1064
        %v1264 = vunpack.c.h.b16 %v1064
        %v1265 = vunpack.c.l.b16 %v1065
        %v1266 = vunpack.c.l.b16 %v1066
        %v1267 = vunpack.c.h.b16 %v1066
        %v1268 = vunpack.c.l.b16 %v1067
        %v1269 = vunpack.c.l.b16 %v1068
        %v1270 = vunpack.c.h.b16 %v1068
        %v1271 = vunpack.c.l.b16 %v1069
        %v1272 = vunpack.c.l.b16 %v1070
        %v1273 = vunpack.c.h.b16 %v1070
        %v1274 = vunpack.c.l.b16 %v1071
        %v1275 = vunpack.c.l.b16 %v1072
        %v1276 = vunpack.c.h.b16 %v1072
        %v1277 = vunpack.c.l.b16 %v1073
        %v1278 = vunpack.c.l.b16 %v1074
        %v1279 = vunpack.c.h.b16 %v1074
        %v1280 = vunpack.c.l.b16 %v1075
        %v1281 = vunpack.c.l.b16 %v1076
        %v1282 = vunpack.c.h.b16 %v1076
        %v1283 = vunpack.c.l.b16 %v1077
        %v1284 = vunpack.c.l.b16 %v1078
        %v1285 = vunpack.c.h.b16 %v1078
        %v1286 = vunpack.c.l.b16 %v1079
        %v1287 = vpack.c.b16 %v1176, %v1173
        %v1288 = vpack.c.b16 %v1177, %v1174
        %v1289 = vpack.c.b16 %v1178, %v1175
        %v1290 = vpack.c.b16 %v1182, %v1179
        %v1291 = vpack.c.b16 %v1183, %v1180
        %v1292 = vpack.c.b16 %v1184, %v1181
        %v1293 = vpack.c.b16 %v1188, %v1185
        %v1294 = vpack.c.b16 %v1189, %v1186
        %v1295 = vpack.c.b16 %v1190, %v1187
        %v1296 = vpack.c.b16 %v1194, %v1191
        %v1297 = vpack.c.b16 %v1195, %v1192
        %v1298 = vpack.c.b16 %v1196, %v1193
        %v1299 = vpack.c.b16 %v1200, %v1197
        %v1300 = vpack.c.b16 %v1201, %v1198
        %v1301 = vpack.c.b16 %v1202, %v1199
        %v1302 = vpack.c.b16 %v1206, %v1203
        %v1303 = vpack.c.b16 %v1207, %v1204
        %v1304 = vpack.c.b16 %v1208, %v1205
        %v1305 = vpack.c.b16 %v1212, %v1209
        %v1306 = vpack.c.b16 %v1213, %v1210
        %v1307 = vpack.c.b16 %v1214, %v1211
        %v1308 = vpack.c.b16 %v1218, %v1215
        %v1309 = vpack.c.b16 %v1219, %v1216
        %v1310 = vpack.c.b16 %v1220, %v1217
        %v1311 = vpack.c.b16 %v1224, %v1221
        %v1312 = vpack.c.b16 %v1225, %v1222
        %v1313 = vpack.c.b16 %v1226, %v1223
        %v1314 = vpack.c.b16 %v1230, %v1227
        %v1315 = vpack.c.b16 %v1231, %v1228
        %v1316 = vpack.c.b16 %v1232, %v1229
        %v1317 = vpack.c.b16 %v1236, %v1233
        %v1318 = vpack.c.b16 %v1237, %v1234
        %v1319 = vpack.c.b16 %v1238, %v1235
        %v1320 = vpack.c.b16 %v1242, %v1239
        %v1321 = vpack.c.b16 %v1243, %v1240
        %v1322 = vpack.c.b16 %v1244, %v1241
        %v1323 = vpack.c.b16 %v1248, %v1245
        %v1324 = vpack.c.b16 %v1249, %v1246
        %v1325 = vpack.c.b16 %v1250, %v1247
        %v1326 = vpack.c.b16 %v1254, %v1251
        %v1327 = vpack.c.b16 %v1255, %v1252
        %v1328 = vpack.c.b16 %v1256, %v1253
        %v1329 = vpack.c.b16 %v1260, %v1257
        %v1330 = vpack.c.b16 %v1261, %v1258
        %v1331 = vpack.c.b16 %v1262, %v1259
        %v1332 = vpack.c.b16 %v1266, %v1263
        %v1333 = vpack.c.b16 %v1267, %v1264
        %v1334 = vpack.c.b16 %v1268, %v1265
        %v1335 = vpack.c.b16 %v1272, %v1269
        %v1336 = vpack.c.b16 %v1273, %v1270
        %v1337 = vpack.c.b16 %v1274, %v1271
        %v1338 = vpack.c.b16 %v1278, %v1275
        %v1339 = vpack.c.b16 %v1279, %v1276
        %v1340 = vpack.c.b16 %v1280, %v1277
        %v1341 = vpack.c.b16 %v1284, %v1281
        %v1342 = vpack.c.b16 %v1285, %v1282
        %v1343 = vpack.c.b16 %v1286, %v1283
        %vm1398 = vcmask 359424
        %v1400 = vsel %vm1398, %v958, 0
        %v1403 = vsel %vm1398, %v961, 0
        %v1406 = vsel %vm1398, %v964, 0
        %v1409 = vsel %vm1398, %v967, 0
        %v1412 = vsel %vm1398, %v970, 0
        %v1415 = vsel %vm1398, %v973, 0
        %v1418 = vsel %vm1398, %v976, 0
        %v1421 = vsel %vm1398, %v979, 0
        %v1424 = vsel %vm1398, %v982, 0
        %v1427 = vsel %vm1398, %v985, 0
        %v1430 = vsel %vm1398, %v988, 0
        %v1433 = vsel %vm1398, %v991, 0
        %v1436 = vsel %vm1398, %v994, 0
        %v1439 = vsel %vm1398, %v997, 0
        %v1442 = vsel %vm1398, %v1000, 0
        %v1445 = vsel %vm1398, %v1003, 0
        %vm1447 = vcmask 1045504
        %v1449 = vsel %vm1447, %v1341, 0
        %v1452 = vsel %vm1447, %v1342, 0
        %v1455 = vsel %vm1447, %v1343, 0
        %1457 = vmatprep.subr.bf16.mxu0 %v1309
        %1458 = vmatpush1.bf16.msra.mxu0 %v1308
        %1459 = vmatprep.subr.bf16.mxu0 %v1306
        %1460 = vmatpush1.bf16.msra.mxu0 %v1305
        %1461 = vmatprep.subr.bf16.mxu0 %v1303
        %1462 = vmatpush1.bf16.msra.mxu0 %v1302
        %1463 = vmatprep.subr.bf16.mxu0 %v1300
        %1464 = vmatpush1.bf16.msra.mxu0 %v1299
        %1465 = vmatprep.subr.bf16.mxu0 %v1297
        %1466 = vmatpush1.bf16.msra.mxu0 %v1296
        %1467 = vmatprep.subr.bf16.mxu0 %v1294
        %1468 = vmatpush1.bf16.msra.mxu0 %v1293
        %1469 = vmatprep.subr.bf16.mxu0 %v1291
        %1470 = vmatpush1.bf16.msra.mxu0 %v1290
        %1471 = vmatprep.subr.bf16.mxu0 %v1288
        %1472 = vmatpush1.bf16.msra.mxu0 %v1287
        %1473 = vmatprep.subr.bf16.mxu0 %v1333
        %1474 = vmatpush2.bf16.msra.mxu0 %v1332
        %1475 = vmatprep.subr.bf16.mxu0 %v1330
        %1476 = vmatpush2.bf16.msra.mxu0 %v1329
        %1477 = vmatprep.subr.bf16.mxu0 %v1327
        %1478 = vmatpush2.bf16.msra.mxu0 %v1326
        %1479 = vmatprep.subr.bf16.mxu0 %v1324
        %1480 = vmatpush2.bf16.msra.mxu0 %v1323
        %1481 = vmatprep.subr.bf16.mxu0 %v1321
        %1482 = vmatpush2.bf16.msra.mxu0 %v1320
        %1483 = vmatprep.subr.bf16.mxu0 %v1318
        %1484 = vmatpush2.bf16.msra.mxu0 %v1317
        %1485 = vmatprep.subr.bf16.mxu0 %v1315
        %1486 = vmatpush2.bf16.msra.mxu0 %v1314
        %1487 = vmatprep.subr.bf16.mxu0 %v1312
        %1488 = vmatpush2.bf16.msra.mxu0 %v1311
        %1489 = vmatprep.mubr.bf16.mxu0 %v957
        %1490 = vmatmul.mubr.bf16.gmra.mxu0 %v956
        %v1491 = vpop.f32.mrf.mxu0
        %v1492 = vadd.f32 %v1085, %v1491
        %v1493 = vpop.f32.mrf.mxu0
        %v1494 = vadd.f32 %v1089, %v1493
        %v1495 = vpop.f32.mrf.mxu0
        %v1496 = vadd.f32 %v1085, %v1495
        %v1497 = vpop.f32.mrf.mxu0
        %v1498 = vadd.f32 %v1089, %v1497
        %1499 = vmatprep.mubr.bf16.mxu0 %v960
        %1500 = vmatmul.mubr.bf16.gmra.mxu0 %v959
        %v1501 = vpop.f32.mrf.mxu0
        %v1502 = vadd.f32 %v1085, %v1501
        %v1503 = vpop.f32.mrf.mxu0
        %v1504 = vadd.f32 %v1089, %v1503
        %v1505 = vpop.f32.mrf.mxu0
        %v1506 = vadd.f32 %v1085, %v1505
        %v1507 = vpop.f32.mrf.mxu0
        %v1508 = vadd.f32 %v1089, %v1507
        %1509 = vmatprep.mubr.bf16.mxu0 %v963
        %1510 = vmatmul.mubr.bf16.gmra.mxu0 %v962
        %v1511 = vpop.f32.mrf.mxu0
        %v1512 = vadd.f32 %v1085, %v1511
        %v1513 = vpop.f32.mrf.mxu0
        %v1514 = vadd.f32 %v1089, %v1513
        %v1515 = vpop.f32.mrf.mxu0
        %v1516 = vadd.f32 %v1085, %v1515
        %v1517 = vpop.f32.mrf.mxu0
        %v1518 = vadd.f32 %v1089, %v1517
        %1519 = vmatprep.mubr.bf16.mxu0 %v966
        %1520 = vmatmul.mubr.bf16.gmra.mxu0 %v965
        %v1521 = vpop.f32.mrf.mxu0
        %v1522 = vadd.f32 %v1085, %v1521
        %v1523 = vpop.f32.mrf.mxu0
        %v1524 = vadd.f32 %v1089, %v1523
        %v1525 = vpop.f32.mrf.mxu0
        %v1526 = vadd.f32 %v1085, %v1525
        %v1527 = vpop.f32.mrf.mxu0
        %v1528 = vadd.f32 %v1089, %v1527
        %1529 = vmatprep.mubr.bf16.mxu0 %v969
        %1530 = vmatmul.mubr.bf16.gmra.mxu0 %v968
        %v1531 = vpop.f32.mrf.mxu0
        %v1532 = vadd.f32 %v1085, %v1531
        %v1533 = vpop.f32.mrf.mxu0
        %v1534 = vadd.f32 %v1089, %v1533
        %v1535 = vpop.f32.mrf.mxu0
        %v1536 = vadd.f32 %v1085, %v1535
        %v1537 = vpop.f32.mrf.mxu0
        %v1538 = vadd.f32 %v1089, %v1537
        %1539 = vmatprep.mubr.bf16.mxu0 %v972
        %1540 = vmatmul.mubr.bf16.gmra.mxu0 %v971
        %v1541 = vpop.f32.mrf.mxu0
        %v1542 = vadd.f32 %v1085, %v1541
        %v1543 = vpop.f32.mrf.mxu0
        %v1544 = vadd.f32 %v1089, %v1543
        %v1545 = vpop.f32.mrf.mxu0
        %v1546 = vadd.f32 %v1085, %v1545
        %v1547 = vpop.f32.mrf.mxu0
        %v1548 = vadd.f32 %v1089, %v1547
        %1549 = vmatprep.mubr.bf16.mxu0 %v975
        %1550 = vmatmul.mubr.bf16.gmra.mxu0 %v974
        %v1551 = vpop.f32.mrf.mxu0
        %v1552 = vadd.f32 %v1085, %v1551
        %v1553 = vpop.f32.mrf.mxu0
        %v1554 = vadd.f32 %v1089, %v1553
        %v1555 = vpop.f32.mrf.mxu0
        %v1556 = vadd.f32 %v1085, %v1555
        %v1557 = vpop.f32.mrf.mxu0
        %v1558 = vadd.f32 %v1089, %v1557
        %1559 = vmatprep.mubr.bf16.mxu0 %v978
        %1560 = vmatmul.mubr.bf16.gmra.mxu0 %v977
        %v1561 = vpop.f32.mrf.mxu0
        %v1562 = vadd.f32 %v1085, %v1561
        %v1563 = vpop.f32.mrf.mxu0
        %v1564 = vadd.f32 %v1089, %v1563
        %v1565 = vpop.f32.mrf.mxu0
        %v1566 = vadd.f32 %v1085, %v1565
        %v1567 = vpop.f32.mrf.mxu0
        %v1568 = vadd.f32 %v1089, %v1567
        %1569 = vmatprep.mubr.bf16.mxu0 %v981
        %1570 = vmatmul.mubr.bf16.gmra.mxu0 %v980
        %v1571 = vpop.f32.mrf.mxu0
        %v1572 = vadd.f32 %v1085, %v1571
        %v1573 = vpop.f32.mrf.mxu0
        %v1574 = vadd.f32 %v1089, %v1573
        %v1575 = vpop.f32.mrf.mxu0
        %v1576 = vadd.f32 %v1085, %v1575
        %v1577 = vpop.f32.mrf.mxu0
        %v1578 = vadd.f32 %v1089, %v1577
        %1579 = vmatprep.mubr.bf16.mxu0 %v984
        %1580 = vmatmul.mubr.bf16.gmra.mxu0 %v983
        %v1581 = vpop.f32.mrf.mxu0
        %v1582 = vadd.f32 %v1085, %v1581
        %v1583 = vpop.f32.mrf.mxu0
        %v1584 = vadd.f32 %v1089, %v1583
        %v1585 = vpop.f32.mrf.mxu0
        %v1586 = vadd.f32 %v1085, %v1585
        %v1587 = vpop.f32.mrf.mxu0
        %v1588 = vadd.f32 %v1089, %v1587
        %1589 = vmatprep.mubr.bf16.mxu0 %v987
        %1590 = vmatmul.mubr.bf16.gmra.mxu0 %v986
        %v1591 = vpop.f32.mrf.mxu0
        %v1592 = vadd.f32 %v1085, %v1591
        %v1593 = vpop.f32.mrf.mxu0
        %v1594 = vadd.f32 %v1089, %v1593
        %v1595 = vpop.f32.mrf.mxu0
        %v1596 = vadd.f32 %v1085, %v1595
        %v1597 = vpop.f32.mrf.mxu0
        %v1598 = vadd.f32 %v1089, %v1597
        %1599 = vmatprep.mubr.bf16.mxu0 %v990
        %1600 = vmatmul.mubr.bf16.gmra.mxu0 %v989
        %v1601 = vpop.f32.mrf.mxu0
        %v1602 = vadd.f32 %v1085, %v1601
        %v1603 = vpop.f32.mrf.mxu0
        %v1604 = vadd.f32 %v1089, %v1603
        %v1605 = vpop.f32.mrf.mxu0
        %v1606 = vadd.f32 %v1085, %v1605
        %v1607 = vpop.f32.mrf.mxu0
        %v1608 = vadd.f32 %v1089, %v1607
        %1609 = vmatprep.mubr.bf16.mxu0 %v993
        %1610 = vmatmul.mubr.bf16.gmra.mxu0 %v992
        %v1611 = vpop.f32.mrf.mxu0
        %v1612 = vadd.f32 %v1085, %v1611
        %v1613 = vpop.f32.mrf.mxu0
        %v1614 = vadd.f32 %v1089, %v1613
        %v1615 = vpop.f32.mrf.mxu0
        %v1616 = vadd.f32 %v1085, %v1615
        %v1617 = vpop.f32.mrf.mxu0
        %v1618 = vadd.f32 %v1089, %v1617
        %1619 = vmatprep.mubr.bf16.mxu0 %v996
        %1620 = vmatmul.mubr.bf16.gmra.mxu0 %v995
        %v1621 = vpop.f32.mrf.mxu0
        %v1622 = vadd.f32 %v1085, %v1621
        %v1623 = vpop.f32.mrf.mxu0
        %v1624 = vadd.f32 %v1089, %v1623
        %v1625 = vpop.f32.mrf.mxu0
        %v1626 = vadd.f32 %v1085, %v1625
        %v1627 = vpop.f32.mrf.mxu0
        %v1628 = vadd.f32 %v1089, %v1627
        %1629 = vmatprep.mubr.bf16.mxu0 %v999
        %1630 = vmatmul.mubr.bf16.gmra.mxu0 %v998
        %v1631 = vpop.f32.mrf.mxu0
        %v1632 = vadd.f32 %v1085, %v1631
        %v1633 = vpop.f32.mrf.mxu0
        %v1634 = vadd.f32 %v1089, %v1633
        %v1635 = vpop.f32.mrf.mxu0
        %v1636 = vadd.f32 %v1085, %v1635
        %v1637 = vpop.f32.mrf.mxu0
        %v1638 = vadd.f32 %v1089, %v1637
        %1639 = vmatprep.mubr.bf16.mxu0 %v1002
        %1640 = vmatmul.mubr.bf16.gmra.mxu0 %v1001
        %v1641 = vpop.f32.mrf.mxu0
        %v1642 = vadd.f32 %v1085, %v1641
        %v1643 = vpop.f32.mrf.mxu0
        %v1644 = vadd.f32 %v1089, %v1643
        %v1645 = vpop.f32.mrf.mxu0
        %v1646 = vadd.f32 %v1085, %v1645
        %v1647 = vpop.f32.mrf.mxu0
        %v1648 = vadd.f32 %v1089, %v1647
        %1649 = vdwg.mxu0
        %1650 = vmatprep.subr.bf16.mxu0 0
        %1651 = vmatpush1.bf16.msra.mxu0 0
        %1652 = vmatprep.subr.bf16.mxu0 0
        %1653 = vmatpush1.bf16.msra.mxu0 0
        %1654 = vmatprep.subr.bf16.mxu0 0
        %1655 = vmatpush1.bf16.msra.mxu0 0
        %1656 = vmatprep.subr.bf16.mxu0 0
        %1657 = vmatpush1.bf16.msra.mxu0 0
        %1658 = vmatprep.subr.bf16.mxu0 0
        %1659 = vmatpush1.bf16.msra.mxu0 0
        %1660 = vmatprep.subr.bf16.mxu0 %v1452
        %1661 = vmatpush1.bf16.msra.mxu0 %v1449
        %1662 = vmatprep.subr.bf16.mxu0 %v1339
        %1663 = vmatpush1.bf16.msra.mxu0 %v1338
        %1664 = vmatprep.subr.bf16.mxu0 %v1336
        %1665 = vmatpush1.bf16.msra.mxu0 %v1335
        %1666 = vmatprep.subr.bf16.mxu0 0
        %1667 = vmatpush2.bf16.msra.mxu0 0
        %1668 = vmatprep.subr.bf16.mxu0 0
        %1669 = vmatpush2.bf16.msra.mxu0 0
        %1670 = vmatprep.subr.bf16.mxu0 0
        %1671 = vmatpush2.bf16.msra.mxu0 0
        %1672 = vmatprep.subr.bf16.mxu0 0
        %1673 = vmatpush2.bf16.msra.mxu0 0
        %1674 = vmatprep.subr.bf16.mxu0 0
        %1675 = vmatpush2.bf16.msra.mxu0 0
        %1676 = vmatprep.subr.bf16.mxu0 0
        %1677 = vmatpush2.bf16.msra.mxu0 0
        %1678 = vmatprep.subr.bf16.mxu0 0
        %1679 = vmatpush2.bf16.msra.mxu0 0
        %1680 = vmatprep.subr.bf16.mxu0 0
        %1681 = vmatpush2.bf16.msra.mxu0 0
        %1682 = vmatprep.mubr.bf16.mxu0 0
        %1683 = vmatmul.mubr.bf16.gmra.mxu0 %v1400
        %v1684 = vpop.f32.mrf.mxu0
        %v1685 = vadd.f32 %v1492, %v1684
        %v1686 = vpop.f32.mrf.mxu0
        %v1687 = vadd.f32 %v1494, %v1686
        %v1688 = vpop.f32.mrf.mxu0
        %v1689 = vadd.f32 %v1496, %v1688
        %v1690 = vpop.f32.mrf.mxu0
        %v1691 = vadd.f32 %v1498, %v1690
        %1692 = vmatprep.mubr.bf16.mxu0 0
        %1693 = vmatmul.mubr.bf16.gmra.mxu0 %v1403
        %v1694 = vpop.f32.mrf.mxu0
        %v1695 = vadd.f32 %v1502, %v1694
        %v1696 = vpop.f32.mrf.mxu0
        %v1697 = vadd.f32 %v1504, %v1696
        %v1698 = vpop.f32.mrf.mxu0
        %v1699 = vadd.f32 %v1506, %v1698
        %v1700 = vpop.f32.mrf.mxu0
        %v1701 = vadd.f32 %v1508, %v1700
        %1702 = vmatprep.mubr.bf16.mxu0 0
        %1703 = vmatmul.mubr.bf16.gmra.mxu0 %v1406
        %v1704 = vpop.f32.mrf.mxu0
        %v1705 = vadd.f32 %v1512, %v1704
        %v1706 = vpop.f32.mrf.mxu0
        %v1707 = vadd.f32 %v1514, %v1706
        %v1708 = vpop.f32.mrf.mxu0
        %v1709 = vadd.f32 %v1516, %v1708
        %v1710 = vpop.f32.mrf.mxu0
        %v1711 = vadd.f32 %v1518, %v1710
        %1712 = vmatprep.mubr.bf16.mxu0 0
        %1713 = vmatmul.mubr.bf16.gmra.mxu0 %v1409
        %v1714 = vpop.f32.mrf.mxu0
        %v1715 = vadd.f32 %v1522, %v1714
        %v1716 = vpop.f32.mrf.mxu0
        %v1717 = vadd.f32 %v1524, %v1716
        %v1718 = vpop.f32.mrf.mxu0
        %v1719 = vadd.f32 %v1526, %v1718
        %v1720 = vpop.f32.mrf.mxu0
        %v1721 = vadd.f32 %v1528, %v1720
        %1722 = vmatprep.mubr.bf16.mxu0 0
        %1723 = vmatmul.mubr.bf16.gmra.mxu0 %v1412
        %v1724 = vpop.f32.mrf.mxu0
        %v1725 = vadd.f32 %v1532, %v1724
        %v1726 = vpop.f32.mrf.mxu0
        %v1727 = vadd.f32 %v1534, %v1726
        %v1728 = vpop.f32.mrf.mxu0
        %v1729 = vadd.f32 %v1536, %v1728
        %v1730 = vpop.f32.mrf.mxu0
        %v1731 = vadd.f32 %v1538, %v1730
        %1732 = vmatprep.mubr.bf16.mxu0 0
        %1733 = vmatmul.mubr.bf16.gmra.mxu0 %v1415
        %v1734 = vpop.f32.mrf.mxu0
        %v1735 = vadd.f32 %v1542, %v1734
        %v1736 = vpop.f32.mrf.mxu0
        %v1737 = vadd.f32 %v1544, %v1736
        %v1738 = vpop.f32.mrf.mxu0
        %v1739 = vadd.f32 %v1546, %v1738
        %v1740 = vpop.f32.mrf.mxu0
        %v1741 = vadd.f32 %v1548, %v1740
        %1742 = vmatprep.mubr.bf16.mxu0 0
        %1743 = vmatmul.mubr.bf16.gmra.mxu0 %v1418
        %v1744 = vpop.f32.mrf.mxu0
        %v1745 = vadd.f32 %v1552, %v1744
        %v1746 = vpop.f32.mrf.mxu0
        %v1747 = vadd.f32 %v1554, %v1746
        %v1748 = vpop.f32.mrf.mxu0
        %v1749 = vadd.f32 %v1556, %v1748
        %v1750 = vpop.f32.mrf.mxu0
        %v1751 = vadd.f32 %v1558, %v1750
        %1752 = vmatprep.mubr.bf16.mxu0 0
        %1753 = vmatmul.mubr.bf16.gmra.mxu0 %v1421
        %v1754 = vpop.f32.mrf.mxu0
        %v1755 = vadd.f32 %v1562, %v1754
        %v1756 = vpop.f32.mrf.mxu0
        %v1757 = vadd.f32 %v1564, %v1756
        %v1758 = vpop.f32.mrf.mxu0
        %v1759 = vadd.f32 %v1566, %v1758
        %v1760 = vpop.f32.mrf.mxu0
        %v1761 = vadd.f32 %v1568, %v1760
        %1762 = vmatprep.mubr.bf16.mxu0 0
        %1763 = vmatmul.mubr.bf16.gmra.mxu0 %v1424
        %v1764 = vpop.f32.mrf.mxu0
        %v1765 = vadd.f32 %v1572, %v1764
        %v1766 = vpop.f32.mrf.mxu0
        %v1767 = vadd.f32 %v1574, %v1766
        %v1768 = vpop.f32.mrf.mxu0
        %v1769 = vadd.f32 %v1576, %v1768
        %v1770 = vpop.f32.mrf.mxu0
        %v1771 = vadd.f32 %v1578, %v1770
        %1772 = vmatprep.mubr.bf16.mxu0 0
        %1773 = vmatmul.mubr.bf16.gmra.mxu0 %v1427
        %v1774 = vpop.f32.mrf.mxu0
        %v1775 = vadd.f32 %v1582, %v1774
        %v1776 = vpop.f32.mrf.mxu0
        %v1777 = vadd.f32 %v1584, %v1776
        %v1778 = vpop.f32.mrf.mxu0
        %v1779 = vadd.f32 %v1586, %v1778
        %v1780 = vpop.f32.mrf.mxu0
        %v1781 = vadd.f32 %v1588, %v1780
        %1782 = vmatprep.mubr.bf16.mxu0 0
        %1783 = vmatmul.mubr.bf16.gmra.mxu0 %v1430
        %v1784 = vpop.f32.mrf.mxu0
        %v1785 = vadd.f32 %v1592, %v1784
        %v1786 = vpop.f32.mrf.mxu0
        %v1787 = vadd.f32 %v1594, %v1786
        %v1788 = vpop.f32.mrf.mxu0
        %v1789 = vadd.f32 %v1596, %v1788
        %v1790 = vpop.f32.mrf.mxu0
        %v1791 = vadd.f32 %v1598, %v1790
        %1792 = vmatprep.mubr.bf16.mxu0 0
        %1793 = vmatmul.mubr.bf16.gmra.mxu0 %v1433
        %v1794 = vpop.f32.mrf.mxu0
        %v1795 = vadd.f32 %v1602, %v1794
        %v1796 = vpop.f32.mrf.mxu0
        %v1797 = vadd.f32 %v1604, %v1796
        %v1798 = vpop.f32.mrf.mxu0
        %v1799 = vadd.f32 %v1606, %v1798
        %v1800 = vpop.f32.mrf.mxu0
        %v1801 = vadd.f32 %v1608, %v1800
        %1802 = vmatprep.mubr.bf16.mxu0 0
        %1803 = vmatmul.mubr.bf16.gmra.mxu0 %v1436
        %v1804 = vpop.f32.mrf.mxu0
        %v1805 = vadd.f32 %v1612, %v1804
        %v1806 = vpop.f32.mrf.mxu0
        %v1807 = vadd.f32 %v1614, %v1806
        %v1808 = vpop.f32.mrf.mxu0
        %v1809 = vadd.f32 %v1616, %v1808
        %v1810 = vpop.f32.mrf.mxu0
        %v1811 = vadd.f32 %v1618, %v1810
        %1812 = vmatprep.mubr.bf16.mxu0 0
        %1813 = vmatmul.mubr.bf16.gmra.mxu0 %v1439
        %v1814 = vpop.f32.mrf.mxu0
        %v1815 = vadd.f32 %v1622, %v1814
        %v1816 = vpop.f32.mrf.mxu0
        %v1817 = vadd.f32 %v1624, %v1816
        %v1818 = vpop.f32.mrf.mxu0
        %v1819 = vadd.f32 %v1626, %v1818
        %v1820 = vpop.f32.mrf.mxu0
        %v1821 = vadd.f32 %v1628, %v1820
        %1822 = vmatprep.mubr.bf16.mxu0 0
        %1823 = vmatmul.mubr.bf16.gmra.mxu0 %v1442
        %v1824 = vpop.f32.mrf.mxu0
        %v1825 = vadd.f32 %v1632, %v1824
        %v1826 = vpop.f32.mrf.mxu0
        %v1827 = vadd.f32 %v1634, %v1826
        %v1828 = vpop.f32.mrf.mxu0
        %v1829 = vadd.f32 %v1636, %v1828
        %v1830 = vpop.f32.mrf.mxu0
        %v1831 = vadd.f32 %v1638, %v1830
        %1832 = vmatprep.mubr.bf16.mxu0 0
        %1833 = vmatmul.mubr.bf16.gmra.mxu0 %v1445
        %v1834 = vpop.f32.mrf.mxu0
        %v1835 = vadd.f32 %v1642, %v1834
        %v1836 = vpop.f32.mrf.mxu0
        %v1837 = vadd.f32 %v1644, %v1836
        %v1838 = vpop.f32.mrf.mxu0
        %v1839 = vadd.f32 %v1646, %v1838
        %v1840 = vpop.f32.mrf.mxu0
        %v1841 = vadd.f32 %v1648, %v1840
        %1842 = vdwg.mxu0
        %1843 = vmatprep.subr.bf16.mxu0 0
        %1844 = vmatpush1.bf16.msra.mxu0 %v1310
        %1845 = vmatprep.subr.bf16.mxu0 0
        %1846 = vmatpush1.bf16.msra.mxu0 %v1307
        %1847 = vmatprep.subr.bf16.mxu0 0
        %1848 = vmatpush1.bf16.msra.mxu0 %v1304
        %1849 = vmatprep.subr.bf16.mxu0 0
        %1850 = vmatpush1.bf16.msra.mxu0 %v1301
        %1851 = vmatprep.subr.bf16.mxu0 0
        %1852 = vmatpush1.bf16.msra.mxu0 %v1298
        %1853 = vmatprep.subr.bf16.mxu0 0
        %1854 = vmatpush1.bf16.msra.mxu0 %v1295
        %1855 = vmatprep.subr.bf16.mxu0 0
        %1856 = vmatpush1.bf16.msra.mxu0 %v1292
        %1857 = vmatprep.subr.bf16.mxu0 0
        %1858 = vmatpush1.bf16.msra.mxu0 %v1289
        %1859 = vmatprep.subr.bf16.mxu0 0
        %1860 = vmatpush2.bf16.msra.mxu0 %v1334
        %1861 = vmatprep.subr.bf16.mxu0 0
        %1862 = vmatpush2.bf16.msra.mxu0 %v1331
        %1863 = vmatprep.subr.bf16.mxu0 0
        %1864 = vmatpush2.bf16.msra.mxu0 %v1328
        %1865 = vmatprep.subr.bf16.mxu0 0
        %1866 = vmatpush2.bf16.msra.mxu0 %v1325
        %1867 = vmatprep.subr.bf16.mxu0 0
        %1868 = vmatpush2.bf16.msra.mxu0 %v1322
        %1869 = vmatprep.subr.bf16.mxu0 0
        %1870 = vmatpush2.bf16.msra.mxu0 %v1319
        %1871 = vmatprep.subr.bf16.mxu0 0
        %1872 = vmatpush2.bf16.msra.mxu0 %v1316
        %1873 = vmatprep.subr.bf16.mxu0 0
        %1874 = vmatpush2.bf16.msra.mxu0 %v1313
        %1875 = vmatprep.mubr.bf16.mxu0 %v957
        %1876 = vmatmul.mubr.bf16.gmra.mxu0 %v956
        %v1877 = vpop.f32.mrf.mxu0
        %v1878 = vadd.f32 %v1093, %v1877
        %v1879 = vpop.f32.mrf.mxu0
        %v1880 = vpop.f32.mrf.mxu0
        %v1881 = vadd.f32 %v1093, %v1880
        %v1882 = vpop.f32.mrf.mxu0
        %1883 = vmatprep.mubr.bf16.mxu0 %v960
        %1884 = vmatmul.mubr.bf16.gmra.mxu0 %v959
        %v1885 = vpop.f32.mrf.mxu0
        %v1886 = vadd.f32 %v1093, %v1885
        %v1887 = vpop.f32.mrf.mxu0
        %v1888 = vpop.f32.mrf.mxu0
        %v1889 = vadd.f32 %v1093, %v1888
        %v1890 = vpop.f32.mrf.mxu0
        %1891 = vmatprep.mubr.bf16.mxu0 %v963
        %1892 = vmatmul.mubr.bf16.gmra.mxu0 %v962
        %v1893 = vpop.f32.mrf.mxu0
        %v1894 = vadd.f32 %v1093, %v1893
        %v1895 = vpop.f32.mrf.mxu0
        %v1896 = vpop.f32.mrf.mxu0
        %v1897 = vadd.f32 %v1093, %v1896
        %v1898 = vpop.f32.mrf.mxu0
        %1899 = vmatprep.mubr.bf16.mxu0 %v966
        %1900 = vmatmul.mubr.bf16.gmra.mxu0 %v965
        %v1901 = vpop.f32.mrf.mxu0
        %v1902 = vadd.f32 %v1093, %v1901
        %v1903 = vpop.f32.mrf.mxu0
        %v1904 = vpop.f32.mrf.mxu0
        %v1905 = vadd.f32 %v1093, %v1904
        %v1906 = vpop.f32.mrf.mxu0
        %1907 = vmatprep.mubr.bf16.mxu0 %v969
        %1908 = vmatmul.mubr.bf16.gmra.mxu0 %v968
        %v1909 = vpop.f32.mrf.mxu0
        %v1910 = vadd.f32 %v1093, %v1909
        %v1911 = vpop.f32.mrf.mxu0
        %v1912 = vpop.f32.mrf.mxu0
        %v1913 = vadd.f32 %v1093, %v1912
        %v1914 = vpop.f32.mrf.mxu0
        %1915 = vmatprep.mubr.bf16.mxu0 %v972
        %1916 = vmatmul.mubr.bf16.gmra.mxu0 %v971
        %v1917 = vpop.f32.mrf.mxu0
        %v1918 = vadd.f32 %v1093, %v1917
        %v1919 = vpop.f32.mrf.mxu0
        %v1920 = vpop.f32.mrf.mxu0
        %v1921 = vadd.f32 %v1093, %v1920
        %v1922 = vpop.f32.mrf.mxu0
        %1923 = vmatprep.mubr.bf16.mxu0 %v975
        %1924 = vmatmul.mubr.bf16.gmra.mxu0 %v974
        %v1925 = vpop.f32.mrf.mxu0
        %v1926 = vadd.f32 %v1093, %v1925
        %v1927 = vpop.f32.mrf.mxu0
        %v1928 = vpop.f32.mrf.mxu0
        %v1929 = vadd.f32 %v1093, %v1928
        %v1930 = vpop.f32.mrf.mxu0
        %1931 = vmatprep.mubr.bf16.mxu0 %v978
        %1932 = vmatmul.mubr.bf16.gmra.mxu0 %v977
        %v1933 = vpop.f32.mrf.mxu0
        %v1934 = vadd.f32 %v1093, %v1933
        %v1935 = vpop.f32.mrf.mxu0
        %v1936 = vpop.f32.mrf.mxu0
        %v1937 = vadd.f32 %v1093, %v1936
        %v1938 = vpop.f32.mrf.mxu0
        %1939 = vmatprep.mubr.bf16.mxu0 %v981
        %1940 = vmatmul.mubr.bf16.gmra.mxu0 %v980
        %v1941 = vpop.f32.mrf.mxu0
        %v1942 = vadd.f32 %v1093, %v1941
        %v1943 = vpop.f32.mrf.mxu0
        %v1944 = vpop.f32.mrf.mxu0
        %v1945 = vadd.f32 %v1093, %v1944
        %v1946 = vpop.f32.mrf.mxu0
        %1947 = vmatprep.mubr.bf16.mxu0 %v984
        %1948 = vmatmul.mubr.bf16.gmra.mxu0 %v983
        %v1949 = vpop.f32.mrf.mxu0
        %v1950 = vadd.f32 %v1093, %v1949
        %v1951 = vpop.f32.mrf.mxu0
        %v1952 = vpop.f32.mrf.mxu0
        %v1953 = vadd.f32 %v1093, %v1952
        %v1954 = vpop.f32.mrf.mxu0
        %1955 = vmatprep.mubr.bf16.mxu0 %v987
        %1956 = vmatmul.mubr.bf16.gmra.mxu0 %v986
        %v1957 = vpop.f32.mrf.mxu0
        %v1958 = vadd.f32 %v1093, %v1957
        %v1959 = vpop.f32.mrf.mxu0
        %v1960 = vpop.f32.mrf.mxu0
        %v1961 = vadd.f32 %v1093, %v1960
        %v1962 = vpop.f32.mrf.mxu0
        %1963 = vmatprep.mubr.bf16.mxu0 %v990
        %1964 = vmatmul.mubr.bf16.gmra.mxu0 %v989
        %v1965 = vpop.f32.mrf.mxu0
        %v1966 = vadd.f32 %v1093, %v1965
        %v1967 = vpop.f32.mrf.mxu0
        %v1968 = vpop.f32.mrf.mxu0
        %v1969 = vadd.f32 %v1093, %v1968
        %v1970 = vpop.f32.mrf.mxu0
        %1971 = vmatprep.mubr.bf16.mxu0 %v993
        %1972 = vmatmul.mubr.bf16.gmra.mxu0 %v992
        %v1973 = vpop.f32.mrf.mxu0
        %v1974 = vadd.f32 %v1093, %v1973
        %v1975 = vpop.f32.mrf.mxu0
        %v1976 = vpop.f32.mrf.mxu0
        %v1977 = vadd.f32 %v1093, %v1976
        %v1978 = vpop.f32.mrf.mxu0
        %1979 = vmatprep.mubr.bf16.mxu0 %v996
        %1980 = vmatmul.mubr.bf16.gmra.mxu0 %v995
        %v1981 = vpop.f32.mrf.mxu0
        %v1982 = vadd.f32 %v1093, %v1981
        %v1983 = vpop.f32.mrf.mxu0
        %v1984 = vpop.f32.mrf.mxu0
        %v1985 = vadd.f32 %v1093, %v1984
        %v1986 = vpop.f32.mrf.mxu0
        %1987 = vmatprep.mubr.bf16.mxu0 %v999
        %1988 = vmatmul.mubr.bf16.gmra.mxu0 %v998
        %v1989 = vpop.f32.mrf.mxu0
        %v1990 = vadd.f32 %v1093, %v1989
        %v1991 = vpop.f32.mrf.mxu0
        %v1992 = vpop.f32.mrf.mxu0
        %v1993 = vadd.f32 %v1093, %v1992
        %v1994 = vpop.f32.mrf.mxu0
        %1995 = vmatprep.mubr.bf16.mxu0 %v1002
        %1996 = vmatmul.mubr.bf16.gmra.mxu0 %v1001
        %v1997 = vpop.f32.mrf.mxu0
        %v1998 = vadd.f32 %v1093, %v1997
        %v1999 = vpop.f32.mrf.mxu0
        %v2000 = vpop.f32.mrf.mxu0
        %v2001 = vadd.f32 %v1093, %v2000
        %v2002 = vpop.f32.mrf.mxu0
        %2003 = vdwg.mxu0
        %2004 = vmatprep.subr.bf16.mxu0 0
        %2005 = vmatpush1.bf16.msra.mxu0 0
        %2006 = vmatprep.subr.bf16.mxu0 0
        %2007 = vmatpush1.bf16.msra.mxu0 0
        %2008 = vmatprep.subr.bf16.mxu0 0
        %2009 = vmatpush1.bf16.msra.mxu0 0
        %2010 = vmatprep.subr.bf16.mxu0 0
        %2011 = vmatpush1.bf16.msra.mxu0 0
        %2012 = vmatprep.subr.bf16.mxu0 0
        %2013 = vmatpush1.bf16.msra.mxu0 0
        %2014 = vmatprep.subr.bf16.mxu0 0
        %2015 = vmatpush1.bf16.msra.mxu0 %v1455
        %2016 = vmatprep.subr.bf16.mxu0 0
        %2017 = vmatpush1.bf16.msra.mxu0 %v1340
        %2018 = vmatprep.subr.bf16.mxu0 0
        %2019 = vmatpush1.bf16.msra.mxu0 %v1337
        %2020 = vmatprep.subr.bf16.mxu0 0
        %2021 = vmatpush2.bf16.msra.mxu0 0
        %2022 = vmatprep.subr.bf16.mxu0 0
        %2023 = vmatpush2.bf16.msra.mxu0 0
        %2024 = vmatprep.subr.bf16.mxu0 0
        %2025 = vmatpush2.bf16.msra.mxu0 0
        %2026 = vmatprep.subr.bf16.mxu0 0
        %2027 = vmatpush2.bf16.msra.mxu0 0
        %2028 = vmatprep.subr.bf16.mxu0 0
        %2029 = vmatpush2.bf16.msra.mxu0 0
        %2030 = vmatprep.subr.bf16.mxu0 0
        %2031 = vmatpush2.bf16.msra.mxu0 0
        %2032 = vmatprep.subr.bf16.mxu0 0
        %2033 = vmatpush2.bf16.msra.mxu0 0
        %2034 = vmatprep.subr.bf16.mxu0 0
        %2035 = vmatpush2.bf16.msra.mxu0 0
        %2036 = vmatprep.mubr.bf16.mxu0 0
        %2037 = vmatmul.mubr.bf16.gmra.mxu0 %v1400
        %v2038 = vpop.f32.mrf.mxu0
        %v2039 = vadd.f32 %v1878, %v2038
        %v2040 = vpop.f32.mrf.mxu0
        %v2041 = vpop.f32.mrf.mxu0
        %v2042 = vadd.f32 %v1881, %v2041
        %v2043 = vpop.f32.mrf.mxu0
        %2044 = vmatprep.mubr.bf16.mxu0 0
        %2045 = vmatmul.mubr.bf16.gmra.mxu0 %v1403
        %v2046 = vpop.f32.mrf.mxu0
        %v2047 = vadd.f32 %v1886, %v2046
        %v2048 = vpop.f32.mrf.mxu0
        %v2049 = vpop.f32.mrf.mxu0
        %v2050 = vadd.f32 %v1889, %v2049
        %v2051 = vpop.f32.mrf.mxu0
        %2052 = vmatprep.mubr.bf16.mxu0 0
        %2053 = vmatmul.mubr.bf16.gmra.mxu0 %v1406
        %v2054 = vpop.f32.mrf.mxu0
        %v2055 = vadd.f32 %v1894, %v2054
        %v2056 = vpop.f32.mrf.mxu0
        %v2057 = vpop.f32.mrf.mxu0
        %v2058 = vadd.f32 %v1897, %v2057
        %v2059 = vpop.f32.mrf.mxu0
        %2060 = vmatprep.mubr.bf16.mxu0 0
        %2061 = vmatmul.mubr.bf16.gmra.mxu0 %v1409
        %v2062 = vpop.f32.mrf.mxu0
        %v2063 = vadd.f32 %v1902, %v2062
        %v2064 = vpop.f32.mrf.mxu0
        %v2065 = vpop.f32.mrf.mxu0
        %v2066 = vadd.f32 %v1905, %v2065
        %v2067 = vpop.f32.mrf.mxu0
        %2068 = vmatprep.mubr.bf16.mxu0 0
        %2069 = vmatmul.mubr.bf16.gmra.mxu0 %v1412
        %v2070 = vpop.f32.mrf.mxu0
        %v2071 = vadd.f32 %v1910, %v2070
        %v2072 = vpop.f32.mrf.mxu0
        %v2073 = vpop.f32.mrf.mxu0
        %v2074 = vadd.f32 %v1913, %v2073
        %v2075 = vpop.f32.mrf.mxu0
        %2076 = vmatprep.mubr.bf16.mxu0 0
        %2077 = vmatmul.mubr.bf16.gmra.mxu0 %v1415
        %v2078 = vpop.f32.mrf.mxu0
        %v2079 = vadd.f32 %v1918, %v2078
        %v2080 = vpop.f32.mrf.mxu0
        %v2081 = vpop.f32.mrf.mxu0
        %v2082 = vadd.f32 %v1921, %v2081
        %v2083 = vpop.f32.mrf.mxu0
        %2084 = vmatprep.mubr.bf16.mxu0 0
        %2085 = vmatmul.mubr.bf16.gmra.mxu0 %v1418
        %v2086 = vpop.f32.mrf.mxu0
        %v2087 = vadd.f32 %v1926, %v2086
        %v2088 = vpop.f32.mrf.mxu0
        %v2089 = vpop.f32.mrf.mxu0
        %v2090 = vadd.f32 %v1929, %v2089
        %v2091 = vpop.f32.mrf.mxu0
        %2092 = vmatprep.mubr.bf16.mxu0 0
        %2093 = vmatmul.mubr.bf16.gmra.mxu0 %v1421
        %v2094 = vpop.f32.mrf.mxu0
        %v2095 = vadd.f32 %v1934, %v2094
        %v2096 = vpop.f32.mrf.mxu0
        %v2097 = vpop.f32.mrf.mxu0
        %v2098 = vadd.f32 %v1937, %v2097
        %v2099 = vpop.f32.mrf.mxu0
        %2100 = vmatprep.mubr.bf16.mxu0 0
        %2101 = vmatmul.mubr.bf16.gmra.mxu0 %v1424
        %v2102 = vpop.f32.mrf.mxu0
        %v2103 = vadd.f32 %v1942, %v2102
        %v2104 = vpop.f32.mrf.mxu0
        %v2105 = vpop.f32.mrf.mxu0
        %v2106 = vadd.f32 %v1945, %v2105
        %v2107 = vpop.f32.mrf.mxu0
        %2108 = vmatprep.mubr.bf16.mxu0 0
        %2109 = vmatmul.mubr.bf16.gmra.mxu0 %v1427
        %v2110 = vpop.f32.mrf.mxu0
        %v2111 = vadd.f32 %v1950, %v2110
        %v2112 = vpop.f32.mrf.mxu0
        %v2113 = vpop.f32.mrf.mxu0
        %v2114 = vadd.f32 %v1953, %v2113
        %v2115 = vpop.f32.mrf.mxu0
        %2116 = vmatprep.mubr.bf16.mxu0 0
        %2117 = vmatmul.mubr.bf16.gmra.mxu0 %v1430
        %v2118 = vpop.f32.mrf.mxu0
        %v2119 = vadd.f32 %v1958, %v2118
        %v2120 = vpop.f32.mrf.mxu0
        %v2121 = vpop.f32.mrf.mxu0
        %v2122 = vadd.f32 %v1961, %v2121
        %v2123 = vpop.f32.mrf.mxu0
        %2124 = vmatprep.mubr.bf16.mxu0 0
        %2125 = vmatmul.mubr.bf16.gmra.mxu0 %v1433
        %v2126 = vpop.f32.mrf.mxu0
        %v2127 = vadd.f32 %v1966, %v2126
        %v2128 = vpop.f32.mrf.mxu0
        %v2129 = vpop.f32.mrf.mxu0
        %v2130 = vadd.f32 %v1969, %v2129
        %v2131 = vpop.f32.mrf.mxu0
        %2132 = vmatprep.mubr.bf16.mxu0 0
        %2133 = vmatmul.mubr.bf16.gmra.mxu0 %v1436
        %v2134 = vpop.f32.mrf.mxu0
        %v2135 = vadd.f32 %v1974, %v2134
        %v2136 = vpop.f32.mrf.mxu0
        %v2137 = vpop.f32.mrf.mxu0
        %v2138 = vadd.f32 %v1977, %v2137
        %v2139 = vpop.f32.mrf.mxu0
        %2140 = vmatprep.mubr.bf16.mxu0 0
        %2141 = vmatmul.mubr.bf16.gmra.mxu0 %v1439
        %v2142 = vpop.f32.mrf.mxu0
        %v2143 = vadd.f32 %v1982, %v2142
        %v2144 = vpop.f32.mrf.mxu0
        %v2145 = vpop.f32.mrf.mxu0
        %v2146 = vadd.f32 %v1985, %v2145
        %v2147 = vpop.f32.mrf.mxu0
        %2148 = vmatprep.mubr.bf16.mxu0 0
        %2149 = vmatmul.mubr.bf16.gmra.mxu0 %v1442
        %v2150 = vpop.f32.mrf.mxu0
        %v2151 = vadd.f32 %v1990, %v2150
        %v2152 = vpop.f32.mrf.mxu0
        %v2153 = vpop.f32.mrf.mxu0
        %v2154 = vadd.f32 %v1993, %v2153
        %v2155 = vpop.f32.mrf.mxu0
        %2156 = vmatprep.mubr.bf16.mxu0 0
        %2157 = vmatmul.mubr.bf16.gmra.mxu0 %v1445
        %v2158 = vpop.f32.mrf.mxu0
        %v2159 = vadd.f32 %v1998, %v2158
        %v2160 = vpop.f32.mrf.mxu0
        %v2161 = vpop.f32.mrf.mxu0
        %v2162 = vadd.f32 %v2001, %v2161
        %v2163 = vpop.f32.mrf.mxu0
        %2164 = vdwg.mxu0
        %v2165 = vtanh.pop %v1685
        %v2166 = vtanh.pop %v1687
        %v2167 = vtanh.pop %v2039
        %v2168 = vtanh.pop %v1689
        %v2169 = vtanh.pop %v1691
        %v2170 = vtanh.pop %v2042
        %v2171 = vtanh.pop %v1695
        %v2172 = vtanh.pop %v1697
        %v2173 = vtanh.pop %v2047
        %v2174 = vtanh.pop %v1699
        %v2175 = vtanh.pop %v1701
        %v2176 = vtanh.pop %v2050
        %v2177 = vtanh.pop %v1705
        %v2178 = vtanh.pop %v1707
        %v2179 = vtanh.pop %v2055
        %v2180 = vtanh.pop %v1709
        %v2181 = vtanh.pop %v1711
        %v2182 = vtanh.pop %v2058
        %v2183 = vtanh.pop %v1715
        %v2184 = vtanh.pop %v1717
        %v2185 = vtanh.pop %v2063
        %v2186 = vtanh.pop %v1719
        %v2187 = vtanh.pop %v1721
        %v2188 = vtanh.pop %v2066
        %v2189 = vtanh.pop %v1725
        %v2190 = vtanh.pop %v1727
        %v2191 = vtanh.pop %v2071
        %v2192 = vtanh.pop %v1729
        %v2193 = vtanh.pop %v1731
        %v2194 = vtanh.pop %v2074
        %v2195 = vtanh.pop %v1735
        %v2196 = vtanh.pop %v1737
        %v2197 = vtanh.pop %v2079
        %v2198 = vtanh.pop %v1739
        %v2199 = vtanh.pop %v1741
        %v2200 = vtanh.pop %v2082
        %v2201 = vtanh.pop %v1745
        %v2202 = vtanh.pop %v1747
        %v2203 = vtanh.pop %v2087
        %v2204 = vtanh.pop %v1749
        %v2205 = vtanh.pop %v1751
        %v2206 = vtanh.pop %v2090
        %v2207 = vtanh.pop %v1755
        %v2208 = vtanh.pop %v1757
        %v2209 = vtanh.pop %v2095
        %v2210 = vtanh.pop %v1759
        %v2211 = vtanh.pop %v1761
        %v2212 = vtanh.pop %v2098
        %v2213 = vtanh.pop %v1765
        %v2214 = vtanh.pop %v1767
        %v2215 = vtanh.pop %v2103
        %v2216 = vtanh.pop %v1769
        %v2217 = vtanh.pop %v1771
        %v2218 = vtanh.pop %v2106
        %v2219 = vtanh.pop %v1775
        %v2220 = vtanh.pop %v1777
        %v2221 = vtanh.pop %v2111
        %v2222 = vtanh.pop %v1779
        %v2223 = vtanh.pop %v1781
        %v2224 = vtanh.pop %v2114
        %v2225 = vtanh.pop %v1785
        %v2226 = vtanh.pop %v1787
        %v2227 = vtanh.pop %v2119
        %v2228 = vtanh.pop %v1789
        %v2229 = vtanh.pop %v1791
        %v2230 = vtanh.pop %v2122
        %v2231 = vtanh.pop %v1795
        %v2232 = vtanh.pop %v1797
        %v2233 = vtanh.pop %v2127
        %v2234 = vtanh.pop %v1799
        %v2235 = vtanh.pop %v1801
        %v2236 = vtanh.pop %v2130
        %v2237 = vtanh.pop %v1805
        %v2238 = vtanh.pop %v1807
        %v2239 = vtanh.pop %v2135
        %v2240 = vtanh.pop %v1809
        %v2241 = vtanh.pop %v1811
        %v2242 = vtanh.pop %v2138
        %v2243 = vtanh.pop %v1815
        %v2244 = vtanh.pop %v1817
        %v2245 = vtanh.pop %v2143
        %v2246 = vtanh.pop %v1819
        %v2247 = vtanh.pop %v1821
        %v2248 = vtanh.pop %v2146
        %v2249 = vtanh.pop %v1825
        %v2250 = vtanh.pop %v1827
        %v2251 = vtanh.pop %v2151
        %v2252 = vtanh.pop %v1829
        %v2253 = vtanh.pop %v1831
        %v2254 = vtanh.pop %v2154
        %v2255 = vtanh.pop %v1835
        %v2256 = vtanh.pop %v1837
        %v2257 = vtanh.pop %v2159
        %v2258 = vtanh.pop %v1839
        %v2259 = vtanh.pop %v1841
        %v2260 = vtanh.pop %v2162
        %v2261 = vpack.c.bf16 %v2168, %v2165
        %v2262 = vpack.c.bf16 %v2169, %v2166
        %v2263 = vpack.c.bf16 %v2170, %v2167
        %v2264 = vpack.c.bf16 %v2174, %v2171
        %v2265 = vpack.c.bf16 %v2175, %v2172
        %v2266 = vpack.c.bf16 %v2176, %v2173
        %v2267 = vpack.c.bf16 %v2180, %v2177
        %v2268 = vpack.c.bf16 %v2181, %v2178
        %v2269 = vpack.c.bf16 %v2182, %v2179
        %v2270 = vpack.c.bf16 %v2186, %v2183
        %v2271 = vpack.c.bf16 %v2187, %v2184
        %v2272 = vpack.c.bf16 %v2188, %v2185
        %v2273 = vpack.c.bf16 %v2192, %v2189
        %v2274 = vpack.c.bf16 %v2193, %v2190
        %v2275 = vpack.c.bf16 %v2194, %v2191
        %v2276 = vpack.c.bf16 %v2198, %v2195
        %v2277 = vpack.c.bf16 %v2199, %v2196
        %v2278 = vpack.c.bf16 %v2200, %v2197
        %v2279 = vpack.c.bf16 %v2204, %v2201
        %v2280 = vpack.c.bf16 %v2205, %v2202
        %v2281 = vpack.c.bf16 %v2206, %v2203
        %v2282 = vpack.c.bf16 %v2210, %v2207
        %v2283 = vpack.c.bf16 %v2211, %v2208
        %v2284 = vpack.c.bf16 %v2212, %v2209
        %v2285 = vpack.c.bf16 %v2216, %v2213
        %v2286 = vpack.c.bf16 %v2217, %v2214
        %v2287 = vpack.c.bf16 %v2218, %v2215
        %v2288 = vpack.c.bf16 %v2222, %v2219
        %v2289 = vpack.c.bf16 %v2223, %v2220
        %v2290 = vpack.c.bf16 %v2224, %v2221
        %v2291 = vpack.c.bf16 %v2228, %v2225
        %v2292 = vpack.c.bf16 %v2229, %v2226
        %v2293 = vpack.c.bf16 %v2230, %v2227
        %v2294 = vpack.c.bf16 %v2234, %v2231
        %v2295 = vpack.c.bf16 %v2235, %v2232
        %v2296 = vpack.c.bf16 %v2236, %v2233
        %v2297 = vpack.c.bf16 %v2240, %v2237
        %v2298 = vpack.c.bf16 %v2241, %v2238
        %v2299 = vpack.c.bf16 %v2242, %v2239
        %v2300 = vpack.c.bf16 %v2246, %v2243
        %v2301 = vpack.c.bf16 %v2247, %v2244
        %v2302 = vpack.c.bf16 %v2248, %v2245
        %v2303 = vpack.c.bf16 %v2252, %v2249
        %v2304 = vpack.c.bf16 %v2253, %v2250
        %v2305 = vpack.c.bf16 %v2254, %v2251
        %v2306 = vpack.c.bf16 %v2258, %v2255
        %v2307 = vpack.c.bf16 %v2259, %v2256
        %v2308 = vpack.c.bf16 %v2260, %v2257
        %v2309 = vld [vmem:[#allocation2] sm:$0xff]
        %v2310 = vld [vmem:[#allocation2 + $0x8] sm:$0xf]
        %v2311 = vld [vmem:[#allocation2 + $0xc] sm:$0xff]
        %v2312 = vld [vmem:[#allocation2 + $0x14] sm:$0xf]
        %v2313 = vld [vmem:[#allocation2 + $0x18] sm:$0xff]
        %v2314 = vld [vmem:[#allocation2 + $0x20] sm:$0xf]
        %v2315 = vld [vmem:[#allocation2 + $0x24] sm:$0xff]
        %v2316 = vld [vmem:[#allocation2 + $0x2c] sm:$0xf]
        %v2317 = vld [vmem:[#allocation2 + $0x30] sm:$0xff]
        %v2318 = vld [vmem:[#allocation2 + $0x38] sm:$0xf]
        %v2319 = vld [vmem:[#allocation2 + $0x3c] sm:$0xff]
        %v2320 = vld [vmem:[#allocation2 + $0x44] sm:$0xf]
        %v2321 = vld [vmem:[#allocation2 + $0x48] sm:$0xff]
        %v2322 = vld [vmem:[#allocation2 + $0x50] sm:$0xf]
        %v2323 = vld [vmem:[#allocation2 + $0x54] sm:$0xff]
        %v2324 = vld [vmem:[#allocation2 + $0x5c] sm:$0xf]
        %v2325 = vld [vmem:[#allocation2 + $0x60] sm:$0xff]
        %v2326 = vld [vmem:[#allocation2 + $0x68] sm:$0xf]
        %v2327 = vld [vmem:[#allocation2 + $0x6c] sm:$0xff]
        %v2328 = vld [vmem:[#allocation2 + $0x74] sm:$0xf]
        %v2329 = vld [vmem:[#allocation2 + $0x78] sm:$0xff]
        %v2330 = vld [vmem:[#allocation2 + $0x80] sm:$0xf]
        %v2331 = vld [vmem:[#allocation2 + $0x84] sm:$0xff]
        %v2332 = vld [vmem:[#allocation2 + $0x8c] sm:$0xf]
        %v2333 = vld [vmem:[#allocation2 + $0x90] sm:$0xff]
        %v2334 = vld [vmem:[#allocation2 + $0x98] sm:$0xf]
        %v2335 = vld [vmem:[#allocation2 + $0x9c] sm:$0xff]
        %v2336 = vld [vmem:[#allocation2 + $0xa4] sm:$0xf]
        %v2337 = vld [vmem:[#allocation2 + $0xa8] sm:$0xff]
        %v2338 = vld [vmem:[#allocation2 + $0xb0] sm:$0xf]
        %v2339 = vld [vmem:[#allocation2 + $0xb4] sm:$0xff]
        %v2340 = vld [vmem:[#allocation2 + $0xbc] sm:$0xf]
        %v2341 = vld [vmem:[#allocation2 + $0xc0] sm:$0xff]
        %v2342 = vld [vmem:[#allocation2 + $0xc8] sm:$0xf]
        %v2343 = vld [vmem:[#allocation2 + $0xcc] sm:$0xff]
        %v2344 = vld [vmem:[#allocation2 + $0xd4] sm:$0xf]
        %v2345 = vld [vmem:[#allocation2 + $0xd8] sm:$0xff]
        %v2346 = vld [vmem:[#allocation2 + $0xe0] sm:$0xf]
        %v2347 = vld [vmem:[#allocation2 + $0xe4] sm:$0xff]
        %v2348 = vld [vmem:[#allocation2 + $0xec] sm:$0xf]
        %v2349 = vld [vmem:[#allocation2 + $0xf0] sm:$0xff]
        %v2350 = vld [vmem:[#allocation2 + $0xf8] sm:$0xf]
        %v2351 = vld [vmem:[#allocation2 + $0xfc] sm:$0xff]
        %v2352 = vld [vmem:[#allocation2 + $0x104] sm:$0xf]
        %v2353 = vld [vmem:[#allocation2 + $0x108] sm:$0xff]
        %v2354 = vld [vmem:[#allocation2 + $0x110] sm:$0xf]
        %v2355 = vld [vmem:[#allocation2 + $0x114] sm:$0xff]
        %v2356 = vld [vmem:[#allocation2 + $0x11c] sm:$0xf]
        %v2357 = vld [vmem:[#allocation2 + $0x120] sm:$0xff]
        %v2358 = vld [vmem:[#allocation2 + $0x128] sm:$0xf]
        %v2359 = vld [vmem:[#allocation2 + $0x12c] sm:$0xff]
        %v2360 = vld [vmem:[#allocation2 + $0x134] sm:$0xf]
        %v2361 = vld [vmem:[#allocation2 + $0x138] sm:$0xff]
        %v2362 = vld [vmem:[#allocation2 + $0x140] sm:$0xf]
        %v2363 = vld [vmem:[#allocation2 + $0x144] sm:$0xff]
        %v2364 = vld [vmem:[#allocation2 + $0x14c] sm:$0xf]
        %v2365 = vld [vmem:[#allocation2 + $0x150] sm:$0xff]
        %v2366 = vld [vmem:[#allocation2 + $0x158] sm:$0xf]
        %v2367 = vld [vmem:[#allocation2 + $0x15c] sm:$0xff]
        %v2368 = vld [vmem:[#allocation2 + $0x164] sm:$0xf]
        %v2369 = vld [vmem:[#allocation2 + $0x168] sm:$0xff]
        %v2370 = vld [vmem:[#allocation2 + $0x170] sm:$0xf]
        %v2371 = vld [vmem:[#allocation2 + $0x174] sm:$0xff]
        %v2372 = vld [vmem:[#allocation2 + $0x17c] sm:$0xf]
        %v2373 = vld [vmem:[#allocation2 + $0x180] sm:$0xff]
        %v2374 = vld [vmem:[#allocation2 + $0x188] sm:$0xf]
        %v2375 = vld [vmem:[#allocation2 + $0x18c] sm:$0xff]
        %v2376 = vld [vmem:[#allocation2 + $0x194] sm:$0xf]
        %v2377 = vld [vmem:[#allocation2 + $0x198] sm:$0xff]
        %v2378 = vld [vmem:[#allocation2 + $0x1a0] sm:$0xf]
        %v2379 = vld [vmem:[#allocation2 + $0x1a4] sm:$0xff]
        %v2380 = vld [vmem:[#allocation2 + $0x1ac] sm:$0xf]
        %v2381 = vld [vmem:[#allocation2 + $0x1b0] sm:$0xff]
        %v2382 = vld [vmem:[#allocation2 + $0x1b8] sm:$0xf]
        %v2383 = vld [vmem:[#allocation2 + $0x1bc] sm:$0x33]
        %v2384 = vld [vmem:[#allocation2 + $0x1c4] sm:$0x3]
        %v2385 = vld [vmem:[%s6] sm:$0x7]
        %v2387 = vlaneseq
        %v2388 = vshrl.u32 %v2387, 7
        %v2389 = vsub.s32 0, %v2388
        %v2390 = vrot.slane %v2385, %v2389
        %v2391 = vlaneseq
        %v2392 = vshrl.u32 %v2391, 7
        %v2393 = vsub.s32 1, %v2392
        %v2394 = vrot.slane %v2385, %v2393
        %v2395 = vlaneseq
        %v2396 = vshrl.u32 %v2395, 7
        %v2397 = vsub.s32 2, %v2396
        %v2398 = vrot.slane %v2385, %v2397
        %v2478 = vunpack.c.l.b16 %v2309
        %v2479 = vunpack.c.h.b16 %v2309
        %v2480 = vunpack.c.l.b16 %v2310
        %v2481 = vunpack.c.l.b16 %v2311
        %v2482 = vunpack.c.h.b16 %v2311
        %v2483 = vunpack.c.l.b16 %v2312
        %v2484 = vunpack.c.l.b16 %v2313
        %v2485 = vunpack.c.h.b16 %v2313
        %v2486 = vunpack.c.l.b16 %v2314
        %v2487 = vunpack.c.l.b16 %v2315
        %v2488 = vunpack.c.h.b16 %v2315
        %v2489 = vunpack.c.l.b16 %v2316
        %v2490 = vunpack.c.l.b16 %v2317
        %v2491 = vunpack.c.h.b16 %v2317
        %v2492 = vunpack.c.l.b16 %v2318
        %v2493 = vunpack.c.l.b16 %v2319
        %v2494 = vunpack.c.h.b16 %v2319
        %v2495 = vunpack.c.l.b16 %v2320
        %v2496 = vunpack.c.l.b16 %v2321
        %v2497 = vunpack.c.h.b16 %v2321
        %v2498 = vunpack.c.l.b16 %v2322
        %v2499 = vunpack.c.l.b16 %v2323
        %v2500 = vunpack.c.h.b16 %v2323
        %v2501 = vunpack.c.l.b16 %v2324
        %v2502 = vunpack.c.l.b16 %v2325
        %v2503 = vunpack.c.h.b16 %v2325
        %v2504 = vunpack.c.l.b16 %v2326
        %v2505 = vunpack.c.l.b16 %v2327
        %v2506 = vunpack.c.h.b16 %v2327
        %v2507 = vunpack.c.l.b16 %v2328
        %v2508 = vunpack.c.l.b16 %v2329
        %v2509 = vunpack.c.h.b16 %v2329
        %v2510 = vunpack.c.l.b16 %v2330
        %v2511 = vunpack.c.l.b16 %v2331
        %v2512 = vunpack.c.h.b16 %v2331
        %v2513 = vunpack.c.l.b16 %v2332
        %v2514 = vunpack.c.l.b16 %v2333
        %v2515 = vunpack.c.h.b16 %v2333
        %v2516 = vunpack.c.l.b16 %v2334
        %v2517 = vunpack.c.l.b16 %v2335
        %v2518 = vunpack.c.h.b16 %v2335
        %v2519 = vunpack.c.l.b16 %v2336
        %v2520 = vunpack.c.l.b16 %v2337
        %v2521 = vunpack.c.h.b16 %v2337
        %v2522 = vunpack.c.l.b16 %v2338
        %v2523 = vunpack.c.l.b16 %v2339
        %v2524 = vunpack.c.h.b16 %v2339
        %v2525 = vunpack.c.l.b16 %v2340
        %v2526 = vunpack.c.l.b16 %v2341
        %v2527 = vunpack.c.h.b16 %v2341
        %v2528 = vunpack.c.l.b16 %v2342
        %v2529 = vunpack.c.l.b16 %v2343
        %v2530 = vunpack.c.h.b16 %v2343
        %v2531 = vunpack.c.l.b16 %v2344
        %v2532 = vunpack.c.l.b16 %v2345
        %v2533 = vunpack.c.h.b16 %v2345
        %v2534 = vunpack.c.l.b16 %v2346
        %v2535 = vunpack.c.l.b16 %v2347
        %v2536 = vunpack.c.h.b16 %v2347
        %v2537 = vunpack.c.l.b16 %v2348
        %v2538 = vunpack.c.l.b16 %v2349
        %v2539 = vunpack.c.h.b16 %v2349
        %v2540 = vunpack.c.l.b16 %v2350
        %v2541 = vunpack.c.l.b16 %v2351
        %v2542 = vunpack.c.h.b16 %v2351
        %v2543 = vunpack.c.l.b16 %v2352
        %v2544 = vunpack.c.l.b16 %v2353
        %v2545 = vunpack.c.h.b16 %v2353
        %v2546 = vunpack.c.l.b16 %v2354
        %v2547 = vunpack.c.l.b16 %v2355
        %v2548 = vunpack.c.h.b16 %v2355
        %v2549 = vunpack.c.l.b16 %v2356
        %v2550 = vunpack.c.l.b16 %v2357
        %v2551 = vunpack.c.h.b16 %v2357
        %v2552 = vunpack.c.l.b16 %v2358
        %v2553 = vunpack.c.l.b16 %v2359
        %v2554 = vunpack.c.h.b16 %v2359
        %v2555 = vunpack.c.l.b16 %v2360
        %v2556 = vunpack.c.l.b16 %v2361
        %v2557 = vunpack.c.h.b16 %v2361
        %v2558 = vunpack.c.l.b16 %v2362
        %v2559 = vunpack.c.l.b16 %v2363
        %v2560 = vunpack.c.h.b16 %v2363
        %v2561 = vunpack.c.l.b16 %v2364
        %v2562 = vunpack.c.l.b16 %v2365
        %v2563 = vunpack.c.h.b16 %v2365
        %v2564 = vunpack.c.l.b16 %v2366
        %v2565 = vunpack.c.l.b16 %v2367
        %v2566 = vunpack.c.h.b16 %v2367
        %v2567 = vunpack.c.l.b16 %v2368
        %v2568 = vunpack.c.l.b16 %v2369
        %v2569 = vunpack.c.h.b16 %v2369
        %v2570 = vunpack.c.l.b16 %v2370
        %v2571 = vunpack.c.l.b16 %v2371
        %v2572 = vunpack.c.h.b16 %v2371
        %v2573 = vunpack.c.l.b16 %v2372
        %v2574 = vunpack.c.l.b16 %v2373
        %v2575 = vunpack.c.h.b16 %v2373
        %v2576 = vunpack.c.l.b16 %v2374
        %v2577 = vunpack.c.l.b16 %v2375
        %v2578 = vunpack.c.h.b16 %v2375
        %v2579 = vunpack.c.l.b16 %v2376
        %v2580 = vunpack.c.l.b16 %v2377
        %v2581 = vunpack.c.h.b16 %v2377
        %v2582 = vunpack.c.l.b16 %v2378
        %v2583 = vunpack.c.l.b16 %v2379
        %v2584 = vunpack.c.h.b16 %v2379
        %v2585 = vunpack.c.l.b16 %v2380
        %v2586 = vunpack.c.l.b16 %v2381
        %v2587 = vunpack.c.h.b16 %v2381
        %v2588 = vunpack.c.l.b16 %v2382
        %v2589 = vunpack.c.l.b16 %v2383
        %v2590 = vunpack.c.h.b16 %v2383
        %v2591 = vunpack.c.l.b16 %v2384
        %v2592 = vpack.c.b16 %v2481, %v2478
        %v2593 = vpack.c.b16 %v2482, %v2479
        %v2594 = vpack.c.b16 %v2483, %v2480
        %v2595 = vpack.c.b16 %v2487, %v2484
        %v2596 = vpack.c.b16 %v2488, %v2485
        %v2597 = vpack.c.b16 %v2489, %v2486
        %v2598 = vpack.c.b16 %v2493, %v2490
        %v2599 = vpack.c.b16 %v2494, %v2491
        %v2600 = vpack.c.b16 %v2495, %v2492
        %v2601 = vpack.c.b16 %v2499, %v2496
        %v2602 = vpack.c.b16 %v2500, %v2497
        %v2603 = vpack.c.b16 %v2501, %v2498
        %v2604 = vpack.c.b16 %v2505, %v2502
        %v2605 = vpack.c.b16 %v2506, %v2503
        %v2606 = vpack.c.b16 %v2507, %v2504
        %v2607 = vpack.c.b16 %v2511, %v2508
        %v2608 = vpack.c.b16 %v2512, %v2509
        %v2609 = vpack.c.b16 %v2513, %v2510
        %v2610 = vpack.c.b16 %v2517, %v2514
        %v2611 = vpack.c.b16 %v2518, %v2515
        %v2612 = vpack.c.b16 %v2519, %v2516
        %v2613 = vpack.c.b16 %v2523, %v2520
        %v2614 = vpack.c.b16 %v2524, %v2521
        %v2615 = vpack.c.b16 %v2525, %v2522
        %v2616 = vpack.c.b16 %v2529, %v2526
        %v2617 = vpack.c.b16 %v2530, %v2527
        %v2618 = vpack.c.b16 %v2531, %v2528
        %v2619 = vpack.c.b16 %v2535, %v2532
        %v2620 = vpack.c.b16 %v2536, %v2533
        %v2621 = vpack.c.b16 %v2537, %v2534
        %v2622 = vpack.c.b16 %v2541, %v2538
        %v2623 = vpack.c.b16 %v2542, %v2539
        %v2624 = vpack.c.b16 %v2543, %v2540
        %v2625 = vpack.c.b16 %v2547, %v2544
        %v2626 = vpack.c.b16 %v2548, %v2545
        %v2627 = vpack.c.b16 %v2549, %v2546
        %v2628 = vpack.c.b16 %v2553, %v2550
        %v2629 = vpack.c.b16 %v2554, %v2551
        %v2630 = vpack.c.b16 %v2555, %v2552
        %v2631 = vpack.c.b16 %v2559, %v2556
        %v2632 = vpack.c.b16 %v2560, %v2557
        %v2633 = vpack.c.b16 %v2561, %v2558
        %v2634 = vpack.c.b16 %v2565, %v2562
        %v2635 = vpack.c.b16 %v2566, %v2563
        %v2636 = vpack.c.b16 %v2567, %v2564
        %v2637 = vpack.c.b16 %v2571, %v2568
        %v2638 = vpack.c.b16 %v2572, %v2569
        %v2639 = vpack.c.b16 %v2573, %v2570
        %v2640 = vpack.c.b16 %v2577, %v2574
        %v2641 = vpack.c.b16 %v2578, %v2575
        %v2642 = vpack.c.b16 %v2579, %v2576
        %v2643 = vpack.c.b16 %v2583, %v2580
        %v2644 = vpack.c.b16 %v2584, %v2581
        %v2645 = vpack.c.b16 %v2585, %v2582
        %v2646 = vpack.c.b16 %v2589, %v2586
        %v2647 = vpack.c.b16 %v2590, %v2587
        %v2648 = vpack.c.b16 %v2591, %v2588
        %v2704 = vsel %vm1398, %v2263, 0
        %v2707 = vsel %vm1398, %v2266, 0
        %v2710 = vsel %vm1398, %v2269, 0
        %v2713 = vsel %vm1398, %v2272, 0
        %v2716 = vsel %vm1398, %v2275, 0
        %v2719 = vsel %vm1398, %v2278, 0
        %v2722 = vsel %vm1398, %v2281, 0
        %v2725 = vsel %vm1398, %v2284, 0
        %v2728 = vsel %vm1398, %v2287, 0
        %v2731 = vsel %vm1398, %v2290, 0
        %v2734 = vsel %vm1398, %v2293, 0
        %v2737 = vsel %vm1398, %v2296, 0
        %v2740 = vsel %vm1398, %v2299, 0
        %v2743 = vsel %vm1398, %v2302, 0
        %v2746 = vsel %vm1398, %v2305, 0
        %v2749 = vsel %vm1398, %v2308, 0
        %v2752 = vsel %vm1447, %v2646, 0
        %v2755 = vsel %vm1447, %v2647, 0
        %v2758 = vsel %vm1447, %v2648, 0
        %2760 = vmatprep.subr.bf16.mxu0 %v2614
        %2761 = vmatpush1.bf16.msra.mxu0 %v2613
        %2762 = vmatprep.subr.bf16.mxu0 %v2611
        %2763 = vmatpush1.bf16.msra.mxu0 %v2610
        %2764 = vmatprep.subr.bf16.mxu0 %v2608
        %2765 = vmatpush1.bf16.msra.mxu0 %v2607
        %2766 = vmatprep.subr.bf16.mxu0 %v2605
        %2767 = vmatpush1.bf16.msra.mxu0 %v2604
        %2768 = vmatprep.subr.bf16.mxu0 %v2602
        %2769 = vmatpush1.bf16.msra.mxu0 %v2601
        %2770 = vmatprep.subr.bf16.mxu0 %v2599
        %2771 = vmatpush1.bf16.msra.mxu0 %v2598
        %2772 = vmatprep.subr.bf16.mxu0 %v2596
        %2773 = vmatpush1.bf16.msra.mxu0 %v2595
        %2774 = vmatprep.subr.bf16.mxu0 %v2593
        %2775 = vmatpush1.bf16.msra.mxu0 %v2592
        %2776 = vmatprep.subr.bf16.mxu0 %v2638
        %2777 = vmatpush2.bf16.msra.mxu0 %v2637
        %2778 = vmatprep.subr.bf16.mxu0 %v2635
        %2779 = vmatpush2.bf16.msra.mxu0 %v2634
        %2780 = vmatprep.subr.bf16.mxu0 %v2632
        %2781 = vmatpush2.bf16.msra.mxu0 %v2631
        %2782 = vmatprep.subr.bf16.mxu0 %v2629
        %2783 = vmatpush2.bf16.msra.mxu0 %v2628
        %2784 = vmatprep.subr.bf16.mxu0 %v2626
        %2785 = vmatpush2.bf16.msra.mxu0 %v2625
        %2786 = vmatprep.subr.bf16.mxu0 %v2623
        %2787 = vmatpush2.bf16.msra.mxu0 %v2622
        %2788 = vmatprep.subr.bf16.mxu0 %v2620
        %2789 = vmatpush2.bf16.msra.mxu0 %v2619
        %2790 = vmatprep.subr.bf16.mxu0 %v2617
        %2791 = vmatpush2.bf16.msra.mxu0 %v2616
        %2792 = vmatprep.mubr.bf16.mxu0 %v2262
        %2793 = vmatmul.mubr.bf16.gmra.mxu0 %v2261
        %v2794 = vpop.f32.mrf.mxu0
        %v2795 = vadd.f32 %v2390, %v2794
        %v2796 = vpop.f32.mrf.mxu0
        %v2797 = vadd.f32 %v2394, %v2796
        %v2798 = vpop.f32.mrf.mxu0
        %v2799 = vadd.f32 %v2390, %v2798
        %v2800 = vpop.f32.mrf.mxu0
        %v2801 = vadd.f32 %v2394, %v2800
        %2802 = vmatprep.mubr.bf16.mxu0 %v2265
        %2803 = vmatmul.mubr.bf16.gmra.mxu0 %v2264
        %v2804 = vpop.f32.mrf.mxu0
        %v2805 = vadd.f32 %v2390, %v2804
        %v2806 = vpop.f32.mrf.mxu0
        %v2807 = vadd.f32 %v2394, %v2806
        %v2808 = vpop.f32.mrf.mxu0
        %v2809 = vadd.f32 %v2390, %v2808
        %v2810 = vpop.f32.mrf.mxu0
        %v2811 = vadd.f32 %v2394, %v2810
        %2812 = vmatprep.mubr.bf16.mxu0 %v2268
        %2813 = vmatmul.mubr.bf16.gmra.mxu0 %v2267
        %v2814 = vpop.f32.mrf.mxu0
        %v2815 = vadd.f32 %v2390, %v2814
        %v2816 = vpop.f32.mrf.mxu0
        %v2817 = vadd.f32 %v2394, %v2816
        %v2818 = vpop.f32.mrf.mxu0
        %v2819 = vadd.f32 %v2390, %v2818
        %v2820 = vpop.f32.mrf.mxu0
        %v2821 = vadd.f32 %v2394, %v2820
        %2822 = vmatprep.mubr.bf16.mxu0 %v2271
        %2823 = vmatmul.mubr.bf16.gmra.mxu0 %v2270
        %v2824 = vpop.f32.mrf.mxu0
        %v2825 = vadd.f32 %v2390, %v2824
        %v2826 = vpop.f32.mrf.mxu0
        %v2827 = vadd.f32 %v2394, %v2826
        %v2828 = vpop.f32.mrf.mxu0
        %v2829 = vadd.f32 %v2390, %v2828
        %v2830 = vpop.f32.mrf.mxu0
        %v2831 = vadd.f32 %v2394, %v2830
        %2832 = vmatprep.mubr.bf16.mxu0 %v2274
        %2833 = vmatmul.mubr.bf16.gmra.mxu0 %v2273
        %v2834 = vpop.f32.mrf.mxu0
        %v2835 = vadd.f32 %v2390, %v2834
        %v2836 = vpop.f32.mrf.mxu0
        %v2837 = vadd.f32 %v2394, %v2836
        %v2838 = vpop.f32.mrf.mxu0
        %v2839 = vadd.f32 %v2390, %v2838
        %v2840 = vpop.f32.mrf.mxu0
        %v2841 = vadd.f32 %v2394, %v2840
        %2842 = vmatprep.mubr.bf16.mxu0 %v2277
        %2843 = vmatmul.mubr.bf16.gmra.mxu0 %v2276
        %v2844 = vpop.f32.mrf.mxu0
        %v2845 = vadd.f32 %v2390, %v2844
        %v2846 = vpop.f32.mrf.mxu0
        %v2847 = vadd.f32 %v2394, %v2846
        %v2848 = vpop.f32.mrf.mxu0
        %v2849 = vadd.f32 %v2390, %v2848
        %v2850 = vpop.f32.mrf.mxu0
        %v2851 = vadd.f32 %v2394, %v2850
        %2852 = vmatprep.mubr.bf16.mxu0 %v2280
        %2853 = vmatmul.mubr.bf16.gmra.mxu0 %v2279
        %v2854 = vpop.f32.mrf.mxu0
        %v2855 = vadd.f32 %v2390, %v2854
        %v2856 = vpop.f32.mrf.mxu0
        %v2857 = vadd.f32 %v2394, %v2856
        %v2858 = vpop.f32.mrf.mxu0
        %v2859 = vadd.f32 %v2390, %v2858
        %v2860 = vpop.f32.mrf.mxu0
        %v2861 = vadd.f32 %v2394, %v2860
        %2862 = vmatprep.mubr.bf16.mxu0 %v2283
        %2863 = vmatmul.mubr.bf16.gmra.mxu0 %v2282
        %v2864 = vpop.f32.mrf.mxu0
        %v2865 = vadd.f32 %v2390, %v2864
        %v2866 = vpop.f32.mrf.mxu0
        %v2867 = vadd.f32 %v2394, %v2866
        %v2868 = vpop.f32.mrf.mxu0
        %v2869 = vadd.f32 %v2390, %v2868
        %v2870 = vpop.f32.mrf.mxu0
        %v2871 = vadd.f32 %v2394, %v2870
        %2872 = vmatprep.mubr.bf16.mxu0 %v2286
        %2873 = vmatmul.mubr.bf16.gmra.mxu0 %v2285
        %v2874 = vpop.f32.mrf.mxu0
        %v2875 = vadd.f32 %v2390, %v2874
        %v2876 = vpop.f32.mrf.mxu0
        %v2877 = vadd.f32 %v2394, %v2876
        %v2878 = vpop.f32.mrf.mxu0
        %v2879 = vadd.f32 %v2390, %v2878
        %v2880 = vpop.f32.mrf.mxu0
        %v2881 = vadd.f32 %v2394, %v2880
        %2882 = vmatprep.mubr.bf16.mxu0 %v2289
        %2883 = vmatmul.mubr.bf16.gmra.mxu0 %v2288
        %v2884 = vpop.f32.mrf.mxu0
        %v2885 = vadd.f32 %v2390, %v2884
        %v2886 = vpop.f32.mrf.mxu0
        %v2887 = vadd.f32 %v2394, %v2886
        %v2888 = vpop.f32.mrf.mxu0
        %v2889 = vadd.f32 %v2390, %v2888
        %v2890 = vpop.f32.mrf.mxu0
        %v2891 = vadd.f32 %v2394, %v2890
        %2892 = vmatprep.mubr.bf16.mxu0 %v2292
        %2893 = vmatmul.mubr.bf16.gmra.mxu0 %v2291
        %v2894 = vpop.f32.mrf.mxu0
        %v2895 = vadd.f32 %v2390, %v2894
        %v2896 = vpop.f32.mrf.mxu0
        %v2897 = vadd.f32 %v2394, %v2896
        %v2898 = vpop.f32.mrf.mxu0
        %v2899 = vadd.f32 %v2390, %v2898
        %v2900 = vpop.f32.mrf.mxu0
        %v2901 = vadd.f32 %v2394, %v2900
        %2902 = vmatprep.mubr.bf16.mxu0 %v2295
        %2903 = vmatmul.mubr.bf16.gmra.mxu0 %v2294
        %v2904 = vpop.f32.mrf.mxu0
        %v2905 = vadd.f32 %v2390, %v2904
        %v2906 = vpop.f32.mrf.mxu0
        %v2907 = vadd.f32 %v2394, %v2906
        %v2908 = vpop.f32.mrf.mxu0
        %v2909 = vadd.f32 %v2390, %v2908
        %v2910 = vpop.f32.mrf.mxu0
        %v2911 = vadd.f32 %v2394, %v2910
        %2912 = vmatprep.mubr.bf16.mxu0 %v2298
        %2913 = vmatmul.mubr.bf16.gmra.mxu0 %v2297
        %v2914 = vpop.f32.mrf.mxu0
        %v2915 = vadd.f32 %v2390, %v2914
        %v2916 = vpop.f32.mrf.mxu0
        %v2917 = vadd.f32 %v2394, %v2916
        %v2918 = vpop.f32.mrf.mxu0
        %v2919 = vadd.f32 %v2390, %v2918
        %v2920 = vpop.f32.mrf.mxu0
        %v2921 = vadd.f32 %v2394, %v2920
        %2922 = vmatprep.mubr.bf16.mxu0 %v2301
        %2923 = vmatmul.mubr.bf16.gmra.mxu0 %v2300
        %v2924 = vpop.f32.mrf.mxu0
        %v2925 = vadd.f32 %v2390, %v2924
        %v2926 = vpop.f32.mrf.mxu0
        %v2927 = vadd.f32 %v2394, %v2926
        %v2928 = vpop.f32.mrf.mxu0
        %v2929 = vadd.f32 %v2390, %v2928
        %v2930 = vpop.f32.mrf.mxu0
        %v2931 = vadd.f32 %v2394, %v2930
        %2932 = vmatprep.mubr.bf16.mxu0 %v2304
        %2933 = vmatmul.mubr.bf16.gmra.mxu0 %v2303
        %v2934 = vpop.f32.mrf.mxu0
        %v2935 = vadd.f32 %v2390, %v2934
        %v2936 = vpop.f32.mrf.mxu0
        %v2937 = vadd.f32 %v2394, %v2936
        %v2938 = vpop.f32.mrf.mxu0
        %v2939 = vadd.f32 %v2390, %v2938
        %v2940 = vpop.f32.mrf.mxu0
        %v2941 = vadd.f32 %v2394, %v2940
        %2942 = vmatprep.mubr.bf16.mxu0 %v2307
        %2943 = vmatmul.mubr.bf16.gmra.mxu0 %v2306
        %v2944 = vpop.f32.mrf.mxu0
        %v2945 = vadd.f32 %v2390, %v2944
        %v2946 = vpop.f32.mrf.mxu0
        %v2947 = vadd.f32 %v2394, %v2946
        %v2948 = vpop.f32.mrf.mxu0
        %v2949 = vadd.f32 %v2390, %v2948
        %v2950 = vpop.f32.mrf.mxu0
        %v2951 = vadd.f32 %v2394, %v2950
        %2952 = vdwg.mxu0
        %2953 = vmatprep.subr.bf16.mxu0 0
        %2954 = vmatpush1.bf16.msra.mxu0 0
        %2955 = vmatprep.subr.bf16.mxu0 0
        %2956 = vmatpush1.bf16.msra.mxu0 0
        %2957 = vmatprep.subr.bf16.mxu0 0
        %2958 = vmatpush1.bf16.msra.mxu0 0
        %2959 = vmatprep.subr.bf16.mxu0 0
        %2960 = vmatpush1.bf16.msra.mxu0 0
        %2961 = vmatprep.subr.bf16.mxu0 0
        %2962 = vmatpush1.bf16.msra.mxu0 0
        %2963 = vmatprep.subr.bf16.mxu0 %v2755
        %2964 = vmatpush1.bf16.msra.mxu0 %v2752
        %2965 = vmatprep.subr.bf16.mxu0 %v2644
        %2966 = vmatpush1.bf16.msra.mxu0 %v2643
        %2967 = vmatprep.subr.bf16.mxu0 %v2641
        %2968 = vmatpush1.bf16.msra.mxu0 %v2640
        %2969 = vmatprep.subr.bf16.mxu0 0
        %2970 = vmatpush2.bf16.msra.mxu0 0
        %2971 = vmatprep.subr.bf16.mxu0 0
        %2972 = vmatpush2.bf16.msra.mxu0 0
        %2973 = vmatprep.subr.bf16.mxu0 0
        %2974 = vmatpush2.bf16.msra.mxu0 0
        %2975 = vmatprep.subr.bf16.mxu0 0
        %2976 = vmatpush2.bf16.msra.mxu0 0
        %2977 = vmatprep.subr.bf16.mxu0 0
        %2978 = vmatpush2.bf16.msra.mxu0 0
        %2979 = vmatprep.subr.bf16.mxu0 0
        %2980 = vmatpush2.bf16.msra.mxu0 0
        %2981 = vmatprep.subr.bf16.mxu0 0
        %2982 = vmatpush2.bf16.msra.mxu0 0
        %2983 = vmatprep.subr.bf16.mxu0 0
        %2984 = vmatpush2.bf16.msra.mxu0 0
        %2985 = vmatprep.mubr.bf16.mxu0 0
        %2986 = vmatmul.mubr.bf16.gmra.mxu0 %v2704
        %v2987 = vpop.f32.mrf.mxu0
        %v2988 = vadd.f32 %v2795, %v2987
        %v2989 = vpop.f32.mrf.mxu0
        %v2990 = vadd.f32 %v2797, %v2989
        %v2991 = vpop.f32.mrf.mxu0
        %v2992 = vadd.f32 %v2799, %v2991
        %v2993 = vpop.f32.mrf.mxu0
        %v2994 = vadd.f32 %v2801, %v2993
        %2995 = vmatprep.mubr.bf16.mxu0 0
        %2996 = vmatmul.mubr.bf16.gmra.mxu0 %v2707
        %v2997 = vpop.f32.mrf.mxu0
        %v2998 = vadd.f32 %v2805, %v2997
        %v2999 = vpop.f32.mrf.mxu0
        %v3000 = vadd.f32 %v2807, %v2999
        %v3001 = vpop.f32.mrf.mxu0
        %v3002 = vadd.f32 %v2809, %v3001
        %v3003 = vpop.f32.mrf.mxu0
        %v3004 = vadd.f32 %v2811, %v3003
        %3005 = vmatprep.mubr.bf16.mxu0 0
        %3006 = vmatmul.mubr.bf16.gmra.mxu0 %v2710
        %v3007 = vpop.f32.mrf.mxu0
        %v3008 = vadd.f32 %v2815, %v3007
        %v3009 = vpop.f32.mrf.mxu0
        %v3010 = vadd.f32 %v2817, %v3009
        %v3011 = vpop.f32.mrf.mxu0
        %v3012 = vadd.f32 %v2819, %v3011
        %v3013 = vpop.f32.mrf.mxu0
        %v3014 = vadd.f32 %v2821, %v3013
        %3015 = vmatprep.mubr.bf16.mxu0 0
        %3016 = vmatmul.mubr.bf16.gmra.mxu0 %v2713
        %v3017 = vpop.f32.mrf.mxu0
        %v3018 = vadd.f32 %v2825, %v3017
        %v3019 = vpop.f32.mrf.mxu0
        %v3020 = vadd.f32 %v2827, %v3019
        %v3021 = vpop.f32.mrf.mxu0
        %v3022 = vadd.f32 %v2829, %v3021
        %v3023 = vpop.f32.mrf.mxu0
        %v3024 = vadd.f32 %v2831, %v3023
        %3025 = vmatprep.mubr.bf16.mxu0 0
        %3026 = vmatmul.mubr.bf16.gmra.mxu0 %v2716
        %v3027 = vpop.f32.mrf.mxu0
        %v3028 = vadd.f32 %v2835, %v3027
        %v3029 = vpop.f32.mrf.mxu0
        %v3030 = vadd.f32 %v2837, %v3029
        %v3031 = vpop.f32.mrf.mxu0
        %v3032 = vadd.f32 %v2839, %v3031
        %v3033 = vpop.f32.mrf.mxu0
        %v3034 = vadd.f32 %v2841, %v3033
        %3035 = vmatprep.mubr.bf16.mxu0 0
        %3036 = vmatmul.mubr.bf16.gmra.mxu0 %v2719
        %v3037 = vpop.f32.mrf.mxu0
        %v3038 = vadd.f32 %v2845, %v3037
        %v3039 = vpop.f32.mrf.mxu0
        %v3040 = vadd.f32 %v2847, %v3039
        %v3041 = vpop.f32.mrf.mxu0
        %v3042 = vadd.f32 %v2849, %v3041
        %v3043 = vpop.f32.mrf.mxu0
        %v3044 = vadd.f32 %v2851, %v3043
        %3045 = vmatprep.mubr.bf16.mxu0 0
        %3046 = vmatmul.mubr.bf16.gmra.mxu0 %v2722
        %v3047 = vpop.f32.mrf.mxu0
        %v3048 = vadd.f32 %v2855, %v3047
        %v3049 = vpop.f32.mrf.mxu0
        %v3050 = vadd.f32 %v2857, %v3049
        %v3051 = vpop.f32.mrf.mxu0
        %v3052 = vadd.f32 %v2859, %v3051
        %v3053 = vpop.f32.mrf.mxu0
        %v3054 = vadd.f32 %v2861, %v3053
        %3055 = vmatprep.mubr.bf16.mxu0 0
        %3056 = vmatmul.mubr.bf16.gmra.mxu0 %v2725
        %v3057 = vpop.f32.mrf.mxu0
        %v3058 = vadd.f32 %v2865, %v3057
        %v3059 = vpop.f32.mrf.mxu0
        %v3060 = vadd.f32 %v2867, %v3059
        %v3061 = vpop.f32.mrf.mxu0
        %v3062 = vadd.f32 %v2869, %v3061
        %v3063 = vpop.f32.mrf.mxu0
        %v3064 = vadd.f32 %v2871, %v3063
        %3065 = vmatprep.mubr.bf16.mxu0 0
        %3066 = vmatmul.mubr.bf16.gmra.mxu0 %v2728
        %v3067 = vpop.f32.mrf.mxu0
        %v3068 = vadd.f32 %v2875, %v3067
        %v3069 = vpop.f32.mrf.mxu0
        %v3070 = vadd.f32 %v2877, %v3069
        %v3071 = vpop.f32.mrf.mxu0
        %v3072 = vadd.f32 %v2879, %v3071
        %v3073 = vpop.f32.mrf.mxu0
        %v3074 = vadd.f32 %v2881, %v3073
        %3075 = vmatprep.mubr.bf16.mxu0 0
        %3076 = vmatmul.mubr.bf16.gmra.mxu0 %v2731
        %v3077 = vpop.f32.mrf.mxu0
        %v3078 = vadd.f32 %v2885, %v3077
        %v3079 = vpop.f32.mrf.mxu0
        %v3080 = vadd.f32 %v2887, %v3079
        %v3081 = vpop.f32.mrf.mxu0
        %v3082 = vadd.f32 %v2889, %v3081
        %v3083 = vpop.f32.mrf.mxu0
        %v3084 = vadd.f32 %v2891, %v3083
        %3085 = vmatprep.mubr.bf16.mxu0 0
        %3086 = vmatmul.mubr.bf16.gmra.mxu0 %v2734
        %v3087 = vpop.f32.mrf.mxu0
        %v3088 = vadd.f32 %v2895, %v3087
        %v3089 = vpop.f32.mrf.mxu0
        %v3090 = vadd.f32 %v2897, %v3089
        %v3091 = vpop.f32.mrf.mxu0
        %v3092 = vadd.f32 %v2899, %v3091
        %v3093 = vpop.f32.mrf.mxu0
        %v3094 = vadd.f32 %v2901, %v3093
        %3095 = vmatprep.mubr.bf16.mxu0 0
        %3096 = vmatmul.mubr.bf16.gmra.mxu0 %v2737
        %v3097 = vpop.f32.mrf.mxu0
        %v3098 = vadd.f32 %v2905, %v3097
        %v3099 = vpop.f32.mrf.mxu0
        %v3100 = vadd.f32 %v2907, %v3099
        %v3101 = vpop.f32.mrf.mxu0
        %v3102 = vadd.f32 %v2909, %v3101
        %v3103 = vpop.f32.mrf.mxu0
        %v3104 = vadd.f32 %v2911, %v3103
        %3105 = vmatprep.mubr.bf16.mxu0 0
        %3106 = vmatmul.mubr.bf16.gmra.mxu0 %v2740
        %v3107 = vpop.f32.mrf.mxu0
        %v3108 = vadd.f32 %v2915, %v3107
        %v3109 = vpop.f32.mrf.mxu0
        %v3110 = vadd.f32 %v2917, %v3109
        %v3111 = vpop.f32.mrf.mxu0
        %v3112 = vadd.f32 %v2919, %v3111
        %v3113 = vpop.f32.mrf.mxu0
        %v3114 = vadd.f32 %v2921, %v3113
        %3115 = vmatprep.mubr.bf16.mxu0 0
        %3116 = vmatmul.mubr.bf16.gmra.mxu0 %v2743
        %v3117 = vpop.f32.mrf.mxu0
        %v3118 = vadd.f32 %v2925, %v3117
        %v3119 = vpop.f32.mrf.mxu0
        %v3120 = vadd.f32 %v2927, %v3119
        %v3121 = vpop.f32.mrf.mxu0
        %v3122 = vadd.f32 %v2929, %v3121
        %v3123 = vpop.f32.mrf.mxu0
        %v3124 = vadd.f32 %v2931, %v3123
        %3125 = vmatprep.mubr.bf16.mxu0 0
        %3126 = vmatmul.mubr.bf16.gmra.mxu0 %v2746
        %v3127 = vpop.f32.mrf.mxu0
        %v3128 = vadd.f32 %v2935, %v3127
        %v3129 = vpop.f32.mrf.mxu0
        %v3130 = vadd.f32 %v2937, %v3129
        %v3131 = vpop.f32.mrf.mxu0
        %v3132 = vadd.f32 %v2939, %v3131
        %v3133 = vpop.f32.mrf.mxu0
        %v3134 = vadd.f32 %v2941, %v3133
        %3135 = vmatprep.mubr.bf16.mxu0 0
        %3136 = vmatmul.mubr.bf16.gmra.mxu0 %v2749
        %v3137 = vpop.f32.mrf.mxu0
        %v3138 = vadd.f32 %v2945, %v3137
        %v3139 = vpop.f32.mrf.mxu0
        %v3140 = vadd.f32 %v2947, %v3139
        %v3141 = vpop.f32.mrf.mxu0
        %v3142 = vadd.f32 %v2949, %v3141
        %v3143 = vpop.f32.mrf.mxu0
        %v3144 = vadd.f32 %v2951, %v3143
        %3145 = vdwg.mxu0
        %3146 = vmatprep.subr.bf16.mxu0 0
        %3147 = vmatpush1.bf16.msra.mxu0 %v2615
        %3148 = vmatprep.subr.bf16.mxu0 0
        %3149 = vmatpush1.bf16.msra.mxu0 %v2612
        %3150 = vmatprep.subr.bf16.mxu0 0
        %3151 = vmatpush1.bf16.msra.mxu0 %v2609
        %3152 = vmatprep.subr.bf16.mxu0 0
        %3153 = vmatpush1.bf16.msra.mxu0 %v2606
        %3154 = vmatprep.subr.bf16.mxu0 0
        %3155 = vmatpush1.bf16.msra.mxu0 %v2603
        %3156 = vmatprep.subr.bf16.mxu0 0
        %3157 = vmatpush1.bf16.msra.mxu0 %v2600
        %3158 = vmatprep.subr.bf16.mxu0 0
        %3159 = vmatpush1.bf16.msra.mxu0 %v2597
        %3160 = vmatprep.subr.bf16.mxu0 0
        %3161 = vmatpush1.bf16.msra.mxu0 %v2594
        %3162 = vmatprep.subr.bf16.mxu0 0
        %3163 = vmatpush2.bf16.msra.mxu0 %v2639
        %3164 = vmatprep.subr.bf16.mxu0 0
        %3165 = vmatpush2.bf16.msra.mxu0 %v2636
        %3166 = vmatprep.subr.bf16.mxu0 0
        %3167 = vmatpush2.bf16.msra.mxu0 %v2633
        %3168 = vmatprep.subr.bf16.mxu0 0
        %3169 = vmatpush2.bf16.msra.mxu0 %v2630
        %3170 = vmatprep.subr.bf16.mxu0 0
        %3171 = vmatpush2.bf16.msra.mxu0 %v2627
        %3172 = vmatprep.subr.bf16.mxu0 0
        %3173 = vmatpush2.bf16.msra.mxu0 %v2624
        %3174 = vmatprep.subr.bf16.mxu0 0
        %3175 = vmatpush2.bf16.msra.mxu0 %v2621
        %3176 = vmatprep.subr.bf16.mxu0 0
        %3177 = vmatpush2.bf16.msra.mxu0 %v2618
        %3178 = vmatprep.mubr.bf16.mxu0 %v2262
        %3179 = vmatmul.mubr.bf16.gmra.mxu0 %v2261
        %v3180 = vpop.f32.mrf.mxu0
        %v3181 = vadd.f32 %v2398, %v3180
        %v3182 = vpop.f32.mrf.mxu0
        %v3183 = vpop.f32.mrf.mxu0
        %v3184 = vadd.f32 %v2398, %v3183
        %v3185 = vpop.f32.mrf.mxu0
        %3186 = vmatprep.mubr.bf16.mxu0 %v2265
        %3187 = vmatmul.mubr.bf16.gmra.mxu0 %v2264
        %v3188 = vpop.f32.mrf.mxu0
        %v3189 = vadd.f32 %v2398, %v3188
        %v3190 = vpop.f32.mrf.mxu0
        %v3191 = vpop.f32.mrf.mxu0
        %v3192 = vadd.f32 %v2398, %v3191
        %v3193 = vpop.f32.mrf.mxu0
        %3194 = vmatprep.mubr.bf16.mxu0 %v2268
        %3195 = vmatmul.mubr.bf16.gmra.mxu0 %v2267
        %v3196 = vpop.f32.mrf.mxu0
        %v3197 = vadd.f32 %v2398, %v3196
        %v3198 = vpop.f32.mrf.mxu0
        %v3199 = vpop.f32.mrf.mxu0
        %v3200 = vadd.f32 %v2398, %v3199
        %v3201 = vpop.f32.mrf.mxu0
        %3202 = vmatprep.mubr.bf16.mxu0 %v2271
        %3203 = vmatmul.mubr.bf16.gmra.mxu0 %v2270
        %v3204 = vpop.f32.mrf.mxu0
        %v3205 = vadd.f32 %v2398, %v3204
        %v3206 = vpop.f32.mrf.mxu0
        %v3207 = vpop.f32.mrf.mxu0
        %v3208 = vadd.f32 %v2398, %v3207
        %v3209 = vpop.f32.mrf.mxu0
        %3210 = vmatprep.mubr.bf16.mxu0 %v2274
        %3211 = vmatmul.mubr.bf16.gmra.mxu0 %v2273
        %v3212 = vpop.f32.mrf.mxu0
        %v3213 = vadd.f32 %v2398, %v3212
        %v3214 = vpop.f32.mrf.mxu0
        %v3215 = vpop.f32.mrf.mxu0
        %v3216 = vadd.f32 %v2398, %v3215
        %v3217 = vpop.f32.mrf.mxu0
        %3218 = vmatprep.mubr.bf16.mxu0 %v2277
        %3219 = vmatmul.mubr.bf16.gmra.mxu0 %v2276
        %v3220 = vpop.f32.mrf.mxu0
        %v3221 = vadd.f32 %v2398, %v3220
        %v3222 = vpop.f32.mrf.mxu0
        %v3223 = vpop.f32.mrf.mxu0
        %v3224 = vadd.f32 %v2398, %v3223
        %v3225 = vpop.f32.mrf.mxu0
        %3226 = vmatprep.mubr.bf16.mxu0 %v2280
        %3227 = vmatmul.mubr.bf16.gmra.mxu0 %v2279
        %v3228 = vpop.f32.mrf.mxu0
        %v3229 = vadd.f32 %v2398, %v3228
        %v3230 = vpop.f32.mrf.mxu0
        %v3231 = vpop.f32.mrf.mxu0
        %v3232 = vadd.f32 %v2398, %v3231
        %v3233 = vpop.f32.mrf.mxu0
        %3234 = vmatprep.mubr.bf16.mxu0 %v2283
        %3235 = vmatmul.mubr.bf16.gmra.mxu0 %v2282
        %v3236 = vpop.f32.mrf.mxu0
        %v3237 = vadd.f32 %v2398, %v3236
        %v3238 = vpop.f32.mrf.mxu0
        %v3239 = vpop.f32.mrf.mxu0
        %v3240 = vadd.f32 %v2398, %v3239
        %v3241 = vpop.f32.mrf.mxu0
        %3242 = vmatprep.mubr.bf16.mxu0 %v2286
        %3243 = vmatmul.mubr.bf16.gmra.mxu0 %v2285
        %v3244 = vpop.f32.mrf.mxu0
        %v3245 = vadd.f32 %v2398, %v3244
        %v3246 = vpop.f32.mrf.mxu0
        %v3247 = vpop.f32.mrf.mxu0
        %v3248 = vadd.f32 %v2398, %v3247
        %v3249 = vpop.f32.mrf.mxu0
        %3250 = vmatprep.mubr.bf16.mxu0 %v2289
        %3251 = vmatmul.mubr.bf16.gmra.mxu0 %v2288
        %v3252 = vpop.f32.mrf.mxu0
        %v3253 = vadd.f32 %v2398, %v3252
        %v3254 = vpop.f32.mrf.mxu0
        %v3255 = vpop.f32.mrf.mxu0
        %v3256 = vadd.f32 %v2398, %v3255
        %v3257 = vpop.f32.mrf.mxu0
        %3258 = vmatprep.mubr.bf16.mxu0 %v2292
        %3259 = vmatmul.mubr.bf16.gmra.mxu0 %v2291
        %v3260 = vpop.f32.mrf.mxu0
        %v3261 = vadd.f32 %v2398, %v3260
        %v3262 = vpop.f32.mrf.mxu0
        %v3263 = vpop.f32.mrf.mxu0
        %v3264 = vadd.f32 %v2398, %v3263
        %v3265 = vpop.f32.mrf.mxu0
        %3266 = vmatprep.mubr.bf16.mxu0 %v2295
        %3267 = vmatmul.mubr.bf16.gmra.mxu0 %v2294
        %v3268 = vpop.f32.mrf.mxu0
        %v3269 = vadd.f32 %v2398, %v3268
        %v3270 = vpop.f32.mrf.mxu0
        %v3271 = vpop.f32.mrf.mxu0
        %v3272 = vadd.f32 %v2398, %v3271
        %v3273 = vpop.f32.mrf.mxu0
        %3274 = vmatprep.mubr.bf16.mxu0 %v2298
        %3275 = vmatmul.mubr.bf16.gmra.mxu0 %v2297
        %v3276 = vpop.f32.mrf.mxu0
        %v3277 = vadd.f32 %v2398, %v3276
        %v3278 = vpop.f32.mrf.mxu0
        %v3279 = vpop.f32.mrf.mxu0
        %v3280 = vadd.f32 %v2398, %v3279
        %v3281 = vpop.f32.mrf.mxu0
        %3282 = vmatprep.mubr.bf16.mxu0 %v2301
        %3283 = vmatmul.mubr.bf16.gmra.mxu0 %v2300
        %v3284 = vpop.f32.mrf.mxu0
        %v3285 = vadd.f32 %v2398, %v3284
        %v3286 = vpop.f32.mrf.mxu0
        %v3287 = vpop.f32.mrf.mxu0
        %v3288 = vadd.f32 %v2398, %v3287
        %v3289 = vpop.f32.mrf.mxu0
        %3290 = vmatprep.mubr.bf16.mxu0 %v2304
        %3291 = vmatmul.mubr.bf16.gmra.mxu0 %v2303
        %v3292 = vpop.f32.mrf.mxu0
        %v3293 = vadd.f32 %v2398, %v3292
        %v3294 = vpop.f32.mrf.mxu0
        %v3295 = vpop.f32.mrf.mxu0
        %v3296 = vadd.f32 %v2398, %v3295
        %v3297 = vpop.f32.mrf.mxu0
        %3298 = vmatprep.mubr.bf16.mxu0 %v2307
        %3299 = vmatmul.mubr.bf16.gmra.mxu0 %v2306
        %v3300 = vpop.f32.mrf.mxu0
        %v3301 = vadd.f32 %v2398, %v3300
        %v3302 = vpop.f32.mrf.mxu0
        %v3303 = vpop.f32.mrf.mxu0
        %v3304 = vadd.f32 %v2398, %v3303
        %v3305 = vpop.f32.mrf.mxu0
        %3306 = vdwg.mxu0
        %3307 = vmatprep.subr.bf16.mxu0 0
        %3308 = vmatpush1.bf16.msra.mxu0 0
        %3309 = vmatprep.subr.bf16.mxu0 0
        %3310 = vmatpush1.bf16.msra.mxu0 0
        %3311 = vmatprep.subr.bf16.mxu0 0
        %3312 = vmatpush1.bf16.msra.mxu0 0
        %3313 = vmatprep.subr.bf16.mxu0 0
        %3314 = vmatpush1.bf16.msra.mxu0 0
        %3315 = vmatprep.subr.bf16.mxu0 0
        %3316 = vmatpush1.bf16.msra.mxu0 0
        %3317 = vmatprep.subr.bf16.mxu0 0
        %3318 = vmatpush1.bf16.msra.mxu0 %v2758
        %3319 = vmatprep.subr.bf16.mxu0 0
        %3320 = vmatpush1.bf16.msra.mxu0 %v2645
        %3321 = vmatprep.subr.bf16.mxu0 0
        %3322 = vmatpush1.bf16.msra.mxu0 %v2642
        %3323 = vmatprep.subr.bf16.mxu0 0
        %3324 = vmatpush2.bf16.msra.mxu0 0
        %3325 = vmatprep.subr.bf16.mxu0 0
        %3326 = vmatpush2.bf16.msra.mxu0 0
        %3327 = vmatprep.subr.bf16.mxu0 0
        %3328 = vmatpush2.bf16.msra.mxu0 0
        %3329 = vmatprep.subr.bf16.mxu0 0
        %3330 = vmatpush2.bf16.msra.mxu0 0
        %3331 = vmatprep.subr.bf16.mxu0 0
        %3332 = vmatpush2.bf16.msra.mxu0 0
        %3333 = vmatprep.subr.bf16.mxu0 0
        %3334 = vmatpush2.bf16.msra.mxu0 0
        %3335 = vmatprep.subr.bf16.mxu0 0
        %3336 = vmatpush2.bf16.msra.mxu0 0
        %3337 = vmatprep.subr.bf16.mxu0 0
        %3338 = vmatpush2.bf16.msra.mxu0 0
        %3339 = vmatprep.mubr.bf16.mxu0 0
        %3340 = vmatmul.mubr.bf16.gmra.mxu0 %v2704
        %v3341 = vpop.f32.mrf.mxu0
        %v3342 = vadd.f32 %v3181, %v3341
        %v3343 = vpop.f32.mrf.mxu0
        %v3344 = vpop.f32.mrf.mxu0
        %v3345 = vadd.f32 %v3184, %v3344
        %v3346 = vpop.f32.mrf.mxu0
        %3347 = vmatprep.mubr.bf16.mxu0 0
        %3348 = vmatmul.mubr.bf16.gmra.mxu0 %v2707
        %v3349 = vpop.f32.mrf.mxu0
        %v3350 = vadd.f32 %v3189, %v3349
        %v3351 = vpop.f32.mrf.mxu0
        %v3352 = vpop.f32.mrf.mxu0
        %v3353 = vadd.f32 %v3192, %v3352
        %v3354 = vpop.f32.mrf.mxu0
        %3355 = vmatprep.mubr.bf16.mxu0 0
        %3356 = vmatmul.mubr.bf16.gmra.mxu0 %v2710
        %v3357 = vpop.f32.mrf.mxu0
        %v3358 = vadd.f32 %v3197, %v3357
        %v3359 = vpop.f32.mrf.mxu0
        %v3360 = vpop.f32.mrf.mxu0
        %v3361 = vadd.f32 %v3200, %v3360
        %v3362 = vpop.f32.mrf.mxu0
        %3363 = vmatprep.mubr.bf16.mxu0 0
        %3364 = vmatmul.mubr.bf16.gmra.mxu0 %v2713
        %v3365 = vpop.f32.mrf.mxu0
        %v3366 = vadd.f32 %v3205, %v3365
        %v3367 = vpop.f32.mrf.mxu0
        %v3368 = vpop.f32.mrf.mxu0
        %v3369 = vadd.f32 %v3208, %v3368
        %v3370 = vpop.f32.mrf.mxu0
        %3371 = vmatprep.mubr.bf16.mxu0 0
        %3372 = vmatmul.mubr.bf16.gmra.mxu0 %v2716
        %v3373 = vpop.f32.mrf.mxu0
        %v3374 = vadd.f32 %v3213, %v3373
        %v3375 = vpop.f32.mrf.mxu0
        %v3376 = vpop.f32.mrf.mxu0
        %v3377 = vadd.f32 %v3216, %v3376
        %v3378 = vpop.f32.mrf.mxu0
        %3379 = vmatprep.mubr.bf16.mxu0 0
        %3380 = vmatmul.mubr.bf16.gmra.mxu0 %v2719
        %v3381 = vpop.f32.mrf.mxu0
        %v3382 = vadd.f32 %v3221, %v3381
        %v3383 = vpop.f32.mrf.mxu0
        %v3384 = vpop.f32.mrf.mxu0
        %v3385 = vadd.f32 %v3224, %v3384
        %v3386 = vpop.f32.mrf.mxu0
        %3387 = vmatprep.mubr.bf16.mxu0 0
        %3388 = vmatmul.mubr.bf16.gmra.mxu0 %v2722
        %v3389 = vpop.f32.mrf.mxu0
        %v3390 = vadd.f32 %v3229, %v3389
        %v3391 = vpop.f32.mrf.mxu0
        %v3392 = vpop.f32.mrf.mxu0
        %v3393 = vadd.f32 %v3232, %v3392
        %v3394 = vpop.f32.mrf.mxu0
        %3395 = vmatprep.mubr.bf16.mxu0 0
        %3396 = vmatmul.mubr.bf16.gmra.mxu0 %v2725
        %v3397 = vpop.f32.mrf.mxu0
        %v3398 = vadd.f32 %v3237, %v3397
        %v3399 = vpop.f32.mrf.mxu0
        %v3400 = vpop.f32.mrf.mxu0
        %v3401 = vadd.f32 %v3240, %v3400
        %v3402 = vpop.f32.mrf.mxu0
        %3403 = vmatprep.mubr.bf16.mxu0 0
        %3404 = vmatmul.mubr.bf16.gmra.mxu0 %v2728
        %v3405 = vpop.f32.mrf.mxu0
        %v3406 = vadd.f32 %v3245, %v3405
        %v3407 = vpop.f32.mrf.mxu0
        %v3408 = vpop.f32.mrf.mxu0
        %v3409 = vadd.f32 %v3248, %v3408
        %v3410 = vpop.f32.mrf.mxu0
        %3411 = vmatprep.mubr.bf16.mxu0 0
        %3412 = vmatmul.mubr.bf16.gmra.mxu0 %v2731
        %v3413 = vpop.f32.mrf.mxu0
        %v3414 = vadd.f32 %v3253, %v3413
        %v3415 = vpop.f32.mrf.mxu0
        %v3416 = vpop.f32.mrf.mxu0
        %v3417 = vadd.f32 %v3256, %v3416
        %v3418 = vpop.f32.mrf.mxu0
        %3419 = vmatprep.mubr.bf16.mxu0 0
        %3420 = vmatmul.mubr.bf16.gmra.mxu0 %v2734
        %v3421 = vpop.f32.mrf.mxu0
        %v3422 = vadd.f32 %v3261, %v3421
        %v3423 = vpop.f32.mrf.mxu0
        %v3424 = vpop.f32.mrf.mxu0
        %v3425 = vadd.f32 %v3264, %v3424
        %v3426 = vpop.f32.mrf.mxu0
        %3427 = vmatprep.mubr.bf16.mxu0 0
        %3428 = vmatmul.mubr.bf16.gmra.mxu0 %v2737
        %v3429 = vpop.f32.mrf.mxu0
        %v3430 = vadd.f32 %v3269, %v3429
        %v3431 = vpop.f32.mrf.mxu0
        %v3432 = vpop.f32.mrf.mxu0
        %v3433 = vadd.f32 %v3272, %v3432
        %v3434 = vpop.f32.mrf.mxu0
        %3435 = vmatprep.mubr.bf16.mxu0 0
        %3436 = vmatmul.mubr.bf16.gmra.mxu0 %v2740
        %v3437 = vpop.f32.mrf.mxu0
        %v3438 = vadd.f32 %v3277, %v3437
        %v3439 = vpop.f32.mrf.mxu0
        %v3440 = vpop.f32.mrf.mxu0
        %v3441 = vadd.f32 %v3280, %v3440
        %v3442 = vpop.f32.mrf.mxu0
        %3443 = vmatprep.mubr.bf16.mxu0 0
        %3444 = vmatmul.mubr.bf16.gmra.mxu0 %v2743
        %v3445 = vpop.f32.mrf.mxu0
        %v3446 = vadd.f32 %v3285, %v3445
        %v3447 = vpop.f32.mrf.mxu0
        %v3448 = vpop.f32.mrf.mxu0
        %v3449 = vadd.f32 %v3288, %v3448
        %v3450 = vpop.f32.mrf.mxu0
        %3451 = vmatprep.mubr.bf16.mxu0 0
        %3452 = vmatmul.mubr.bf16.gmra.mxu0 %v2746
        %v3453 = vpop.f32.mrf.mxu0
        %v3454 = vadd.f32 %v3293, %v3453
        %v3455 = vpop.f32.mrf.mxu0
        %v3456 = vpop.f32.mrf.mxu0
        %v3457 = vadd.f32 %v3296, %v3456
        %v3458 = vpop.f32.mrf.mxu0
        %3459 = vmatprep.mubr.bf16.mxu0 0
        %3460 = vmatmul.mubr.bf16.gmra.mxu0 %v2749
        %v3461 = vpop.f32.mrf.mxu0
        %v3462 = vadd.f32 %v3301, %v3461
        %v3463 = vpop.f32.mrf.mxu0
        %v3464 = vpop.f32.mrf.mxu0
        %v3465 = vadd.f32 %v3304, %v3464
        %v3466 = vpop.f32.mrf.mxu0
        %3467 = vdwg.mxu0
        %v3468 = vtanh.pop %v2988
        %v3469 = vtanh.pop %v2990
        %v3470 = vtanh.pop %v3342
        %v3471 = vtanh.pop %v2992
        %v3472 = vtanh.pop %v2994
        %v3473 = vtanh.pop %v3345
        %v3474 = vtanh.pop %v2998
        %v3475 = vtanh.pop %v3000
        %v3476 = vtanh.pop %v3350
        %v3477 = vtanh.pop %v3002
        %v3478 = vtanh.pop %v3004
        %v3479 = vtanh.pop %v3353
        %v3480 = vtanh.pop %v3008
        %v3481 = vtanh.pop %v3010
        %v3482 = vtanh.pop %v3358
        %v3483 = vtanh.pop %v3012
        %v3484 = vtanh.pop %v3014
        %v3485 = vtanh.pop %v3361
        %v3486 = vtanh.pop %v3018
        %v3487 = vtanh.pop %v3020
        %v3488 = vtanh.pop %v3366
        %v3489 = vtanh.pop %v3022
        %v3490 = vtanh.pop %v3024
        %v3491 = vtanh.pop %v3369
        %v3492 = vtanh.pop %v3028
        %v3493 = vtanh.pop %v3030
        %v3494 = vtanh.pop %v3374
        %v3495 = vtanh.pop %v3032
        %v3496 = vtanh.pop %v3034
        %v3497 = vtanh.pop %v3377
        %v3498 = vtanh.pop %v3038
        %v3499 = vtanh.pop %v3040
        %v3500 = vtanh.pop %v3382
        %v3501 = vtanh.pop %v3042
        %v3502 = vtanh.pop %v3044
        %v3503 = vtanh.pop %v3385
        %v3504 = vtanh.pop %v3048
        %v3505 = vtanh.pop %v3050
        %v3506 = vtanh.pop %v3390
        %v3507 = vtanh.pop %v3052
        %v3508 = vtanh.pop %v3054
        %v3509 = vtanh.pop %v3393
        %v3510 = vtanh.pop %v3058
        %v3511 = vtanh.pop %v3060
        %v3512 = vtanh.pop %v3398
        %v3513 = vtanh.pop %v3062
        %v3514 = vtanh.pop %v3064
        %v3515 = vtanh.pop %v3401
        %v3516 = vtanh.pop %v3068
        %v3517 = vtanh.pop %v3070
        %v3518 = vtanh.pop %v3406
        %v3519 = vtanh.pop %v3072
        %v3520 = vtanh.pop %v3074
        %v3521 = vtanh.pop %v3409
        %v3522 = vtanh.pop %v3078
        %v3523 = vtanh.pop %v3080
        %v3524 = vtanh.pop %v3414
        %v3525 = vtanh.pop %v3082
        %v3526 = vtanh.pop %v3084
        %v3527 = vtanh.pop %v3417
        %v3528 = vtanh.pop %v3088
        %v3529 = vtanh.pop %v3090
        %v3530 = vtanh.pop %v3422
        %v3531 = vtanh.pop %v3092
        %v3532 = vtanh.pop %v3094
        %v3533 = vtanh.pop %v3425
        %v3534 = vtanh.pop %v3098
        %v3535 = vtanh.pop %v3100
        %v3536 = vtanh.pop %v3430
        %v3537 = vtanh.pop %v3102
        %v3538 = vtanh.pop %v3104
        %v3539 = vtanh.pop %v3433
        %v3540 = vtanh.pop %v3108
        %v3541 = vtanh.pop %v3110
        %v3542 = vtanh.pop %v3438
        %v3543 = vtanh.pop %v3112
        %v3544 = vtanh.pop %v3114
        %v3545 = vtanh.pop %v3441
        %v3546 = vtanh.pop %v3118
        %v3547 = vtanh.pop %v3120
        %v3548 = vtanh.pop %v3446
        %v3549 = vtanh.pop %v3122
        %v3550 = vtanh.pop %v3124
        %v3551 = vtanh.pop %v3449
        %v3552 = vtanh.pop %v3128
        %v3553 = vtanh.pop %v3130
        %v3554 = vtanh.pop %v3454
        %v3555 = vtanh.pop %v3132
        %v3556 = vtanh.pop %v3134
        %v3557 = vtanh.pop %v3457
        %v3558 = vtanh.pop %v3138
        %v3559 = vtanh.pop %v3140
        %v3560 = vtanh.pop %v3462
        %v3561 = vtanh.pop %v3142
        %v3562 = vtanh.pop %v3144
        %v3563 = vtanh.pop %v3465
        %v3564 = vpack.c.bf16 %v3471, %v3468
        %v3565 = vpack.c.bf16 %v3472, %v3469
        %v3566 = vpack.c.bf16 %v3473, %v3470
        %v3567 = vpack.c.bf16 %v3477, %v3474
        %v3568 = vpack.c.bf16 %v3478, %v3475
        %v3569 = vpack.c.bf16 %v3479, %v3476
        %v3570 = vpack.c.bf16 %v3483, %v3480
        %v3571 = vpack.c.bf16 %v3484, %v3481
        %v3572 = vpack.c.bf16 %v3485, %v3482
        %v3573 = vpack.c.bf16 %v3489, %v3486
        %v3574 = vpack.c.bf16 %v3490, %v3487
        %v3575 = vpack.c.bf16 %v3491, %v3488
        %v3576 = vpack.c.bf16 %v3495, %v3492
        %v3577 = vpack.c.bf16 %v3496, %v3493
        %v3578 = vpack.c.bf16 %v3497, %v3494
        %v3579 = vpack.c.bf16 %v3501, %v3498
        %v3580 = vpack.c.bf16 %v3502, %v3499
        %v3581 = vpack.c.bf16 %v3503, %v3500
        %v3582 = vpack.c.bf16 %v3507, %v3504
        %v3583 = vpack.c.bf16 %v3508, %v3505
        %v3584 = vpack.c.bf16 %v3509, %v3506
        %v3585 = vpack.c.bf16 %v3513, %v3510
        %v3586 = vpack.c.bf16 %v3514, %v3511
        %v3587 = vpack.c.bf16 %v3515, %v3512
        %v3588 = vpack.c.bf16 %v3519, %v3516
        %v3589 = vpack.c.bf16 %v3520, %v3517
        %v3590 = vpack.c.bf16 %v3521, %v3518
        %v3591 = vpack.c.bf16 %v3525, %v3522
        %v3592 = vpack.c.bf16 %v3526, %v3523
        %v3593 = vpack.c.bf16 %v3527, %v3524
        %v3594 = vpack.c.bf16 %v3531, %v3528
        %v3595 = vpack.c.bf16 %v3532, %v3529
        %v3596 = vpack.c.bf16 %v3533, %v3530
        %v3597 = vpack.c.bf16 %v3537, %v3534
        %v3598 = vpack.c.bf16 %v3538, %v3535
        %v3599 = vpack.c.bf16 %v3539, %v3536
        %v3600 = vpack.c.bf16 %v3543, %v3540
        %v3601 = vpack.c.bf16 %v3544, %v3541
        %v3602 = vpack.c.bf16 %v3545, %v3542
        %v3603 = vpack.c.bf16 %v3549, %v3546
        %v3604 = vpack.c.bf16 %v3550, %v3547
        %v3605 = vpack.c.bf16 %v3551, %v3548
        %v3606 = vpack.c.bf16 %v3555, %v3552
        %v3607 = vpack.c.bf16 %v3556, %v3553
        %v3608 = vpack.c.bf16 %v3557, %v3554
        %v3609 = vpack.c.bf16 %v3561, %v3558
        %v3610 = vpack.c.bf16 %v3562, %v3559
        %v3611 = vpack.c.bf16 %v3563, %v3560
        %v3612 = vld [vmem:[%s7] sm:$0xf]
        %v3613 = vld [vmem:[%s7 + $0x4] sm:$0xf]
        %v3614 = vld [vmem:[%s7 + $0x8] sm:$0xf]
        %v3615 = vld [vmem:[%s7 + $0xc] sm:$0xf]
        %v3616 = vld [vmem:[%s7 + $0x10] sm:$0xf]
        %v3617 = vld [vmem:[%s7 + $0x14] sm:$0xf]
        %v3618 = vld [vmem:[%s7 + $0x18] sm:$0xf]
        %v3619 = vld [vmem:[%s7 + $0x1c] sm:$0xf]
        %v3620 = vld [vmem:[%s7 + $0x20] sm:$0xf]
        %v3621 = vld [vmem:[%s7 + $0x24] sm:$0xf]
        %v3622 = vld [vmem:[%s7 + $0x28] sm:$0xf]
        %v3623 = vld [vmem:[%s7 + $0x2c] sm:$0xf]
        %v3624 = vld [vmem:[%s7 + $0x30] sm:$0xf]
        %v3625 = vld [vmem:[%s7 + $0x34] sm:$0xf]
        %v3626 = vld [vmem:[%s7 + $0x38] sm:$0xf]
        %v3627 = vld [vmem:[%s7 + $0x3c] sm:$0xf]
        %v3628 = vld [vmem:[%s7 + $0x40] sm:$0xf]
        %v3629 = vld [vmem:[%s7 + $0x44] sm:$0xf]
        %v3630 = vld [vmem:[%s7 + $0x48] sm:$0xf]
        %v3631 = vld [vmem:[%s7 + $0x4c] sm:$0xf]
        %v3632 = vld [vmem:[%s7 + $0x50] sm:$0xf]
        %v3633 = vld [vmem:[%s7 + $0x54] sm:$0xf]
        %v3634 = vld [vmem:[%s7 + $0x58] sm:$0xf]
        %v3635 = vld [vmem:[%s7 + $0x5c] sm:$0xf]
        %v3636 = vld [vmem:[%s7 + $0x60] sm:$0xf]
        %v3637 = vld [vmem:[%s7 + $0x64] sm:$0xf]
        %v3638 = vld [vmem:[%s7 + $0x68] sm:$0xf]
        %v3639 = vld [vmem:[%s7 + $0x6c] sm:$0xf]
        %v3640 = vld [vmem:[%s7 + $0x70] sm:$0xf]
        %v3641 = vld [vmem:[%s7 + $0x74] sm:$0xf]
        %v3642 = vld [vmem:[%s7 + $0x78] sm:$0xf]
        %v3643 = vld [vmem:[%s7 + $0x7c] sm:$0xf]
        %v3644 = vld [vmem:[%s7 + $0x80] sm:$0xf]
        %v3645 = vld [vmem:[%s7 + $0x84] sm:$0xf]
        %v3646 = vld [vmem:[%s7 + $0x88] sm:$0xf]
        %v3647 = vld [vmem:[%s7 + $0x8c] sm:$0xf]
        %v3648 = vld [vmem:[%s7 + $0x90] sm:$0xf]
        %v3649 = vld [vmem:[%s7 + $0x94] sm:$0x3]
        %v3650 = vld [vmem:[%s8] sm:$0x1]
        %v3652 = vlaneseq
        %v3653 = vshrl.u32 %v3652, 7
        %v3654 = vsub.s32 0, %v3653
        %v3655 = vrot.slane %v3650, %v3654
        %v3695 = vunpack.c.l.b16 %v3612
        %v3696 = vunpack.c.l.b16 %v3613
        %v3697 = vunpack.c.l.b16 %v3614
        %v3698 = vunpack.c.l.b16 %v3615
        %v3699 = vunpack.c.l.b16 %v3616
        %v3700 = vunpack.c.l.b16 %v3617
        %v3701 = vunpack.c.l.b16 %v3618
        %v3702 = vunpack.c.l.b16 %v3619
        %v3703 = vunpack.c.l.b16 %v3620
        %v3704 = vunpack.c.l.b16 %v3621
        %v3705 = vunpack.c.l.b16 %v3622
        %v3706 = vunpack.c.l.b16 %v3623
        %v3707 = vunpack.c.l.b16 %v3624
        %v3708 = vunpack.c.l.b16 %v3625
        %v3709 = vunpack.c.l.b16 %v3626
        %v3710 = vunpack.c.l.b16 %v3627
        %v3711 = vunpack.c.l.b16 %v3628
        %v3712 = vunpack.c.l.b16 %v3629
        %v3713 = vunpack.c.l.b16 %v3630
        %v3714 = vunpack.c.l.b16 %v3631
        %v3715 = vunpack.c.l.b16 %v3632
        %v3716 = vunpack.c.l.b16 %v3633
        %v3717 = vunpack.c.l.b16 %v3634
        %v3718 = vunpack.c.l.b16 %v3635
        %v3719 = vunpack.c.l.b16 %v3636
        %v3720 = vunpack.c.l.b16 %v3637
        %v3721 = vunpack.c.l.b16 %v3638
        %v3722 = vunpack.c.l.b16 %v3639
        %v3723 = vunpack.c.l.b16 %v3640
        %v3724 = vunpack.c.l.b16 %v3641
        %v3725 = vunpack.c.l.b16 %v3642
        %v3726 = vunpack.c.l.b16 %v3643
        %v3727 = vunpack.c.l.b16 %v3644
        %v3728 = vunpack.c.l.b16 %v3645
        %v3729 = vunpack.c.l.b16 %v3646
        %v3730 = vunpack.c.l.b16 %v3647
        %v3731 = vunpack.c.l.b16 %v3648
        %v3732 = vunpack.c.l.b16 %v3649
        %v3733 = vpack.c.b16 %v3696, %v3695
        %v3734 = vpack.c.b16 %v3698, %v3697
        %v3735 = vpack.c.b16 %v3700, %v3699
        %v3736 = vpack.c.b16 %v3702, %v3701
        %v3737 = vpack.c.b16 %v3704, %v3703
        %v3738 = vpack.c.b16 %v3706, %v3705
        %v3739 = vpack.c.b16 %v3708, %v3707
        %v3740 = vpack.c.b16 %v3710, %v3709
        %v3741 = vpack.c.b16 %v3712, %v3711
        %v3742 = vpack.c.b16 %v3714, %v3713
        %v3743 = vpack.c.b16 %v3716, %v3715
        %v3744 = vpack.c.b16 %v3718, %v3717
        %v3745 = vpack.c.b16 %v3720, %v3719
        %v3746 = vpack.c.b16 %v3722, %v3721
        %v3747 = vpack.c.b16 %v3724, %v3723
        %v3748 = vpack.c.b16 %v3726, %v3725
        %v3749 = vpack.c.b16 %v3728, %v3727
        %v3750 = vpack.c.b16 %v3730, %v3729
        %v3751 = vpack.c.b16 %v3732, %v3731
        %v3771 = vsel %vm1398, %v3566, 0
        %v3774 = vsel %vm1398, %v3569, 0
        %v3777 = vsel %vm1398, %v3572, 0
        %v3780 = vsel %vm1398, %v3575, 0
        %v3783 = vsel %vm1398, %v3578, 0
        %v3786 = vsel %vm1398, %v3581, 0
        %v3789 = vsel %vm1398, %v3584, 0
        %v3792 = vsel %vm1398, %v3587, 0
        %v3795 = vsel %vm1398, %v3590, 0
        %v3798 = vsel %vm1398, %v3593, 0
        %v3801 = vsel %vm1398, %v3596, 0
        %v3804 = vsel %vm1398, %v3599, 0
        %v3807 = vsel %vm1398, %v3602, 0
        %v3810 = vsel %vm1398, %v3605, 0
        %v3813 = vsel %vm1398, %v3608, 0
        %v3816 = vsel %vm1398, %v3611, 0
        %v3819 = vsel %vm1447, %v3751, 0
        %3821 = vmatprep.subr.bf16.mxu0 0
        %3822 = vmatpush1.bf16.msra.mxu0 %v3740
        %3823 = vmatprep.subr.bf16.mxu0 0
        %3824 = vmatpush1.bf16.msra.mxu0 %v3739
        %3825 = vmatprep.subr.bf16.mxu0 0
        %3826 = vmatpush1.bf16.msra.mxu0 %v3738
        %3827 = vmatprep.subr.bf16.mxu0 0
        %3828 = vmatpush1.bf16.msra.mxu0 %v3737
        %3829 = vmatprep.subr.bf16.mxu0 0
        %3830 = vmatpush1.bf16.msra.mxu0 %v3736
        %3831 = vmatprep.subr.bf16.mxu0 0
        %3832 = vmatpush1.bf16.msra.mxu0 %v3735
        %3833 = vmatprep.subr.bf16.mxu0 0
        %3834 = vmatpush1.bf16.msra.mxu0 %v3734
        %3835 = vmatprep.subr.bf16.mxu0 0
        %3836 = vmatpush1.bf16.msra.mxu0 %v3733
        %3837 = vmatprep.subr.bf16.mxu0 0
        %3838 = vmatpush2.bf16.msra.mxu0 %v3748
        %3839 = vmatprep.subr.bf16.mxu0 0
        %3840 = vmatpush2.bf16.msra.mxu0 %v3747
        %3841 = vmatprep.subr.bf16.mxu0 0
        %3842 = vmatpush2.bf16.msra.mxu0 %v3746
        %3843 = vmatprep.subr.bf16.mxu0 0
        %3844 = vmatpush2.bf16.msra.mxu0 %v3745
        %3845 = vmatprep.subr.bf16.mxu0 0
        %3846 = vmatpush2.bf16.msra.mxu0 %v3744
        %3847 = vmatprep.subr.bf16.mxu0 0
        %3848 = vmatpush2.bf16.msra.mxu0 %v3743
        %3849 = vmatprep.subr.bf16.mxu0 0
        %3850 = vmatpush2.bf16.msra.mxu0 %v3742
        %3851 = vmatprep.subr.bf16.mxu0 0
        %3852 = vmatpush2.bf16.msra.mxu0 %v3741
        %3853 = vmatprep.mubr.bf16.mxu0 %v3565
        %3854 = vmatmul.mubr.bf16.gmra.mxu0 %v3564
        %v3855 = vpop.f32.mrf.mxu0
        %v3856 = vadd.f32 %v3655, %v3855
        %v3857 = vpop.f32.mrf.mxu0
        %v3858 = vpop.f32.mrf.mxu0
        %v3859 = vadd.f32 %v3655, %v3858
        %v3860 = vpop.f32.mrf.mxu0
        %3861 = vmatprep.mubr.bf16.mxu0 %v3568
        %3862 = vmatmul.mubr.bf16.gmra.mxu0 %v3567
        %v3863 = vpop.f32.mrf.mxu0
        %v3864 = vadd.f32 %v3655, %v3863
        %v3865 = vpop.f32.mrf.mxu0
        %v3866 = vpop.f32.mrf.mxu0
        %v3867 = vadd.f32 %v3655, %v3866
        %v3868 = vpop.f32.mrf.mxu0
        %3869 = vmatprep.mubr.bf16.mxu0 %v3571
        %3870 = vmatmul.mubr.bf16.gmra.mxu0 %v3570
        %v3871 = vpop.f32.mrf.mxu0
        %v3872 = vadd.f32 %v3655, %v3871
        %v3873 = vpop.f32.mrf.mxu0
        %v3874 = vpop.f32.mrf.mxu0
        %v3875 = vadd.f32 %v3655, %v3874
        %v3876 = vpop.f32.mrf.mxu0
        %3877 = vmatprep.mubr.bf16.mxu0 %v3574
        %3878 = vmatmul.mubr.bf16.gmra.mxu0 %v3573
        %v3879 = vpop.f32.mrf.mxu0
        %v3880 = vadd.f32 %v3655, %v3879
        %v3881 = vpop.f32.mrf.mxu0
        %v3882 = vpop.f32.mrf.mxu0
        %v3883 = vadd.f32 %v3655, %v3882
        %v3884 = vpop.f32.mrf.mxu0
        %3885 = vmatprep.mubr.bf16.mxu0 %v3577
        %3886 = vmatmul.mubr.bf16.gmra.mxu0 %v3576
        %v3887 = vpop.f32.mrf.mxu0
        %v3888 = vadd.f32 %v3655, %v3887
        %v3889 = vpop.f32.mrf.mxu0
        %v3890 = vpop.f32.mrf.mxu0
        %v3891 = vadd.f32 %v3655, %v3890
        %v3892 = vpop.f32.mrf.mxu0
        %3893 = vmatprep.mubr.bf16.mxu0 %v3580
        %3894 = vmatmul.mubr.bf16.gmra.mxu0 %v3579
        %v3895 = vpop.f32.mrf.mxu0
        %v3896 = vadd.f32 %v3655, %v3895
        %v3897 = vpop.f32.mrf.mxu0
        %v3898 = vpop.f32.mrf.mxu0
        %v3899 = vadd.f32 %v3655, %v3898
        %v3900 = vpop.f32.mrf.mxu0
        %3901 = vmatprep.mubr.bf16.mxu0 %v3583
        %3902 = vmatmul.mubr.bf16.gmra.mxu0 %v3582
        %v3903 = vpop.f32.mrf.mxu0
        %v3904 = vadd.f32 %v3655, %v3903
        %v3905 = vpop.f32.mrf.mxu0
        %v3906 = vpop.f32.mrf.mxu0
        %v3907 = vadd.f32 %v3655, %v3906
        %v3908 = vpop.f32.mrf.mxu0
        %3909 = vmatprep.mubr.bf16.mxu0 %v3586
        %3910 = vmatmul.mubr.bf16.gmra.mxu0 %v3585
        %v3911 = vpop.f32.mrf.mxu0
        %v3912 = vadd.f32 %v3655, %v3911
        %v3913 = vpop.f32.mrf.mxu0
        %v3914 = vpop.f32.mrf.mxu0
        %v3915 = vadd.f32 %v3655, %v3914
        %v3916 = vpop.f32.mrf.mxu0
        %3917 = vmatprep.mubr.bf16.mxu0 %v3589
        %3918 = vmatmul.mubr.bf16.gmra.mxu0 %v3588
        %v3919 = vpop.f32.mrf.mxu0
        %v3920 = vadd.f32 %v3655, %v3919
        %v3921 = vpop.f32.mrf.mxu0
        %v3922 = vpop.f32.mrf.mxu0
        %v3923 = vadd.f32 %v3655, %v3922
        %v3924 = vpop.f32.mrf.mxu0
        %3925 = vmatprep.mubr.bf16.mxu0 %v3592
        %3926 = vmatmul.mubr.bf16.gmra.mxu0 %v3591
        %v3927 = vpop.f32.mrf.mxu0
        %v3928 = vadd.f32 %v3655, %v3927
        %v3929 = vpop.f32.mrf.mxu0
        %v3930 = vpop.f32.mrf.mxu0
        %v3931 = vadd.f32 %v3655, %v3930
        %v3932 = vpop.f32.mrf.mxu0
        %3933 = vmatprep.mubr.bf16.mxu0 %v3595
        %3934 = vmatmul.mubr.bf16.gmra.mxu0 %v3594
        %v3935 = vpop.f32.mrf.mxu0
        %v3936 = vadd.f32 %v3655, %v3935
        %v3937 = vpop.f32.mrf.mxu0
        %v3938 = vpop.f32.mrf.mxu0
        %v3939 = vadd.f32 %v3655, %v3938
        %v3940 = vpop.f32.mrf.mxu0
        %3941 = vmatprep.mubr.bf16.mxu0 %v3598
        %3942 = vmatmul.mubr.bf16.gmra.mxu0 %v3597
        %v3943 = vpop.f32.mrf.mxu0
        %v3944 = vadd.f32 %v3655, %v3943
        %v3945 = vpop.f32.mrf.mxu0
        %v3946 = vpop.f32.mrf.mxu0
        %v3947 = vadd.f32 %v3655, %v3946
        %v3948 = vpop.f32.mrf.mxu0
        %3949 = vmatprep.mubr.bf16.mxu0 %v3601
        %3950 = vmatmul.mubr.bf16.gmra.mxu0 %v3600
        %v3951 = vpop.f32.mrf.mxu0
        %v3952 = vadd.f32 %v3655, %v3951
        %v3953 = vpop.f32.mrf.mxu0
        %v3954 = vpop.f32.mrf.mxu0
        %v3955 = vadd.f32 %v3655, %v3954
        %v3956 = vpop.f32.mrf.mxu0
        %3957 = vmatprep.mubr.bf16.mxu0 %v3604
        %3958 = vmatmul.mubr.bf16.gmra.mxu0 %v3603
        %v3959 = vpop.f32.mrf.mxu0
        %v3960 = vadd.f32 %v3655, %v3959
        %v3961 = vpop.f32.mrf.mxu0
        %v3962 = vpop.f32.mrf.mxu0
        %v3963 = vadd.f32 %v3655, %v3962
        %v3964 = vpop.f32.mrf.mxu0
        %3965 = vmatprep.mubr.bf16.mxu0 %v3607
        %3966 = vmatmul.mubr.bf16.gmra.mxu0 %v3606
        %v3967 = vpop.f32.mrf.mxu0
        %v3968 = vadd.f32 %v3655, %v3967
        %v3969 = vpop.f32.mrf.mxu0
        %v3970 = vpop.f32.mrf.mxu0
        %v3971 = vadd.f32 %v3655, %v3970
        %v3972 = vpop.f32.mrf.mxu0
        %3973 = vmatprep.mubr.bf16.mxu0 %v3610
        %3974 = vmatmul.mubr.bf16.gmra.mxu0 %v3609
        %v3975 = vpop.f32.mrf.mxu0
        %v3976 = vadd.f32 %v3655, %v3975
        %v3977 = vpop.f32.mrf.mxu0
        %v3978 = vpop.f32.mrf.mxu0
        %v3979 = vadd.f32 %v3655, %v3978
        %v3980 = vpop.f32.mrf.mxu0
        %3981 = vdwg.mxu0
        %3982 = vmatprep.subr.bf16.mxu0 0
        %3983 = vmatpush1.bf16.msra.mxu0 0
        %3984 = vmatprep.subr.bf16.mxu0 0
        %3985 = vmatpush1.bf16.msra.mxu0 0
        %3986 = vmatprep.subr.bf16.mxu0 0
        %3987 = vmatpush1.bf16.msra.mxu0 0
        %3988 = vmatprep.subr.bf16.mxu0 0
        %3989 = vmatpush1.bf16.msra.mxu0 0
        %3990 = vmatprep.subr.bf16.mxu0 0
        %3991 = vmatpush1.bf16.msra.mxu0 0
        %3992 = vmatprep.subr.bf16.mxu0 0
        %3993 = vmatpush1.bf16.msra.mxu0 %v3819
        %3994 = vmatprep.subr.bf16.mxu0 0
        %3995 = vmatpush1.bf16.msra.mxu0 %v3750
        %3996 = vmatprep.subr.bf16.mxu0 0
        %3997 = vmatpush1.bf16.msra.mxu0 %v3749
        %3998 = vmatprep.subr.bf16.mxu0 0
        %3999 = vmatpush2.bf16.msra.mxu0 0
        %4000 = vmatprep.subr.bf16.mxu0 0
        %4001 = vmatpush2.bf16.msra.mxu0 0
        %4002 = vmatprep.subr.bf16.mxu0 0
        %4003 = vmatpush2.bf16.msra.mxu0 0
        %4004 = vmatprep.subr.bf16.mxu0 0
        %4005 = vmatpush2.bf16.msra.mxu0 0
        %4006 = vmatprep.subr.bf16.mxu0 0
        %4007 = vmatpush2.bf16.msra.mxu0 0
        %4008 = vmatprep.subr.bf16.mxu0 0
        %4009 = vmatpush2.bf16.msra.mxu0 0
        %4010 = vmatprep.subr.bf16.mxu0 0
        %4011 = vmatpush2.bf16.msra.mxu0 0
        %4012 = vmatprep.subr.bf16.mxu0 0
        %4013 = vmatpush2.bf16.msra.mxu0 0
        %4014 = vmatprep.mubr.bf16.mxu0 0
        %4015 = vmatmul.mubr.bf16.gmra.mxu0 %v3771
        %v4016 = vpop.f32.mrf.mxu0
        %v4017 = vadd.f32 %v3856, %v4016
        %v4018 = vpop.f32.mrf.mxu0
        %v4019 = vpop.f32.mrf.mxu0
        %v4020 = vadd.f32 %v3859, %v4019
        %v4021 = vpop.f32.mrf.mxu0
        %4022 = vmatprep.mubr.bf16.mxu0 0
        %4023 = vmatmul.mubr.bf16.gmra.mxu0 %v3774
        %v4024 = vpop.f32.mrf.mxu0
        %v4025 = vadd.f32 %v3864, %v4024
        %v4026 = vpop.f32.mrf.mxu0
        %v4027 = vpop.f32.mrf.mxu0
        %v4028 = vadd.f32 %v3867, %v4027
        %v4029 = vpop.f32.mrf.mxu0
        %4030 = vmatprep.mubr.bf16.mxu0 0
        %4031 = vmatmul.mubr.bf16.gmra.mxu0 %v3777
        %v4032 = vpop.f32.mrf.mxu0
        %v4033 = vadd.f32 %v3872, %v4032
        %v4034 = vpop.f32.mrf.mxu0
        %v4035 = vpop.f32.mrf.mxu0
        %v4036 = vadd.f32 %v3875, %v4035
        %v4037 = vpop.f32.mrf.mxu0
        %4038 = vmatprep.mubr.bf16.mxu0 0
        %4039 = vmatmul.mubr.bf16.gmra.mxu0 %v3780
        %v4040 = vpop.f32.mrf.mxu0
        %v4041 = vadd.f32 %v3880, %v4040
        %v4042 = vpop.f32.mrf.mxu0
        %v4043 = vpop.f32.mrf.mxu0
        %v4044 = vadd.f32 %v3883, %v4043
        %v4045 = vpop.f32.mrf.mxu0
        %4046 = vmatprep.mubr.bf16.mxu0 0
        %4047 = vmatmul.mubr.bf16.gmra.mxu0 %v3783
        %v4048 = vpop.f32.mrf.mxu0
        %v4049 = vadd.f32 %v3888, %v4048
        %v4050 = vpop.f32.mrf.mxu0
        %v4051 = vpop.f32.mrf.mxu0
        %v4052 = vadd.f32 %v3891, %v4051
        %v4053 = vpop.f32.mrf.mxu0
        %4054 = vmatprep.mubr.bf16.mxu0 0
        %4055 = vmatmul.mubr.bf16.gmra.mxu0 %v3786
        %v4056 = vpop.f32.mrf.mxu0
        %v4057 = vadd.f32 %v3896, %v4056
        %v4058 = vpop.f32.mrf.mxu0
        %v4059 = vpop.f32.mrf.mxu0
        %v4060 = vadd.f32 %v3899, %v4059
        %v4061 = vpop.f32.mrf.mxu0
        %4062 = vmatprep.mubr.bf16.mxu0 0
        %4063 = vmatmul.mubr.bf16.gmra.mxu0 %v3789
        %v4064 = vpop.f32.mrf.mxu0
        %v4065 = vadd.f32 %v3904, %v4064
        %v4066 = vpop.f32.mrf.mxu0
        %v4067 = vpop.f32.mrf.mxu0
        %v4068 = vadd.f32 %v3907, %v4067
        %v4069 = vpop.f32.mrf.mxu0
        %4070 = vmatprep.mubr.bf16.mxu0 0
        %4071 = vmatmul.mubr.bf16.gmra.mxu0 %v3792
        %v4072 = vpop.f32.mrf.mxu0
        %v4073 = vadd.f32 %v3912, %v4072
        %v4074 = vpop.f32.mrf.mxu0
        %v4075 = vpop.f32.mrf.mxu0
        %v4076 = vadd.f32 %v3915, %v4075
        %v4077 = vpop.f32.mrf.mxu0
        %4078 = vmatprep.mubr.bf16.mxu0 0
        %4079 = vmatmul.mubr.bf16.gmra.mxu0 %v3795
        %v4080 = vpop.f32.mrf.mxu0
        %v4081 = vadd.f32 %v3920, %v4080
        %v4082 = vpop.f32.mrf.mxu0
        %v4083 = vpop.f32.mrf.mxu0
        %v4084 = vadd.f32 %v3923, %v4083
        %v4085 = vpop.f32.mrf.mxu0
        %4086 = vmatprep.mubr.bf16.mxu0 0
        %4087 = vmatmul.mubr.bf16.gmra.mxu0 %v3798
        %v4088 = vpop.f32.mrf.mxu0
        %v4089 = vadd.f32 %v3928, %v4088
        %v4090 = vpop.f32.mrf.mxu0
        %v4091 = vpop.f32.mrf.mxu0
        %v4092 = vadd.f32 %v3931, %v4091
        %v4093 = vpop.f32.mrf.mxu0
        %4094 = vmatprep.mubr.bf16.mxu0 0
        %4095 = vmatmul.mubr.bf16.gmra.mxu0 %v3801
        %v4096 = vpop.f32.mrf.mxu0
        %v4097 = vadd.f32 %v3936, %v4096
        %v4098 = vpop.f32.mrf.mxu0
        %v4099 = vpop.f32.mrf.mxu0
        %v4100 = vadd.f32 %v3939, %v4099
        %v4101 = vpop.f32.mrf.mxu0
        %4102 = vmatprep.mubr.bf16.mxu0 0
        %4103 = vmatmul.mubr.bf16.gmra.mxu0 %v3804
        %v4104 = vpop.f32.mrf.mxu0
        %v4105 = vadd.f32 %v3944, %v4104
        %v4106 = vpop.f32.mrf.mxu0
        %v4107 = vpop.f32.mrf.mxu0
        %v4108 = vadd.f32 %v3947, %v4107
        %v4109 = vpop.f32.mrf.mxu0
        %4110 = vmatprep.mubr.bf16.mxu0 0
        %4111 = vmatmul.mubr.bf16.gmra.mxu0 %v3807
        %v4112 = vpop.f32.mrf.mxu0
        %v4113 = vadd.f32 %v3952, %v4112
        %v4114 = vpop.f32.mrf.mxu0
        %v4115 = vpop.f32.mrf.mxu0
        %v4116 = vadd.f32 %v3955, %v4115
        %v4117 = vpop.f32.mrf.mxu0
        %4118 = vmatprep.mubr.bf16.mxu0 0
        %4119 = vmatmul.mubr.bf16.gmra.mxu0 %v3810
        %v4120 = vpop.f32.mrf.mxu0
        %v4121 = vadd.f32 %v3960, %v4120
        %v4122 = vpop.f32.mrf.mxu0
        %v4123 = vpop.f32.mrf.mxu0
        %v4124 = vadd.f32 %v3963, %v4123
        %v4125 = vpop.f32.mrf.mxu0
        %4126 = vmatprep.mubr.bf16.mxu0 0
        %4127 = vmatmul.mubr.bf16.gmra.mxu0 %v3813
        %v4128 = vpop.f32.mrf.mxu0
        %v4129 = vadd.f32 %v3968, %v4128
        %v4130 = vpop.f32.mrf.mxu0
        %v4131 = vpop.f32.mrf.mxu0
        %v4132 = vadd.f32 %v3971, %v4131
        %v4133 = vpop.f32.mrf.mxu0
        %4134 = vmatprep.mubr.bf16.mxu0 0
        %4135 = vmatmul.mubr.bf16.gmra.mxu0 %v3816
        %v4136 = vpop.f32.mrf.mxu0
        %v4137 = vadd.f32 %v3976, %v4136
        %v4138 = vpop.f32.mrf.mxu0
        %v4139 = vpop.f32.mrf.mxu0
        %v4140 = vadd.f32 %v3979, %v4139
        %v4141 = vpop.f32.mrf.mxu0
        %4142 = vdwg.mxu0
        %vm4143 = vcmask 15360
        %v4144 = vsel %vm4143, %v4017, -inf
        %4145 = vmax.xlane.f32.xlu0 %v4144
        %v4146 = vpop.xlane.xlu0 %4145
        %v4147 = vsel %vm4143, %v4020, -inf
        %4148 = vmax.xlane.f32.xlu0 %v4147
        %v4149 = vpop.xlane.xlu0 %4148
        %v4150 = vsel %vm4143, %v4025, -inf
        %4151 = vmax.xlane.f32.xlu0 %v4150
        %v4152 = vpop.xlane.xlu0 %4151
        %v4153 = vsel %vm4143, %v4028, -inf
        %4154 = vmax.xlane.f32.xlu0 %v4153
        %v4155 = vpop.xlane.xlu0 %4154
        %v4156 = vsel %vm4143, %v4033, -inf
        %4157 = vmax.xlane.f32.xlu0 %v4156
        %v4158 = vpop.xlane.xlu0 %4157
        %v4159 = vsel %vm4143, %v4036, -inf
        %4160 = vmax.xlane.f32.xlu0 %v4159
        %v4161 = vpop.xlane.xlu0 %4160
        %v4162 = vsel %vm4143, %v4041, -inf
        %4163 = vmax.xlane.f32.xlu0 %v4162
        %v4164 = vpop.xlane.xlu0 %4163
        %v4165 = vsel %vm4143, %v4044, -inf
        %4166 = vmax.xlane.f32.xlu0 %v4165
        %v4167 = vpop.xlane.xlu0 %4166
        %v4168 = vsel %vm4143, %v4049, -inf
        %4169 = vmax.xlane.f32.xlu0 %v4168
        %v4170 = vpop.xlane.xlu0 %4169
        %v4171 = vsel %vm4143, %v4052, -inf
        %4172 = vmax.xlane.f32.xlu0 %v4171
        %v4173 = vpop.xlane.xlu0 %4172
        %v4174 = vsel %vm4143, %v4057, -inf
        %4175 = vmax.xlane.f32.xlu0 %v4174
        %v4176 = vpop.xlane.xlu0 %4175
        %v4177 = vsel %vm4143, %v4060, -inf
        %4178 = vmax.xlane.f32.xlu0 %v4177
        %v4179 = vpop.xlane.xlu0 %4178
        %v4180 = vsel %vm4143, %v4065, -inf
        %4181 = vmax.xlane.f32.xlu0 %v4180
        %v4182 = vpop.xlane.xlu0 %4181
        %v4183 = vsel %vm4143, %v4068, -inf
        %4184 = vmax.xlane.f32.xlu0 %v4183
        %v4185 = vpop.xlane.xlu0 %4184
        %v4186 = vsel %vm4143, %v4073, -inf
        %4187 = vmax.xlane.f32.xlu0 %v4186
        %v4188 = vpop.xlane.xlu0 %4187
        %v4189 = vsel %vm4143, %v4076, -inf
        %4190 = vmax.xlane.f32.xlu0 %v4189
        %v4191 = vpop.xlane.xlu0 %4190
        %v4192 = vsel %vm4143, %v4081, -inf
        %4193 = vmax.xlane.f32.xlu0 %v4192
        %v4194 = vpop.xlane.xlu0 %4193
        %v4195 = vsel %vm4143, %v4084, -inf
        %4196 = vmax.xlane.f32.xlu0 %v4195
        %v4197 = vpop.xlane.xlu0 %4196
        %v4198 = vsel %vm4143, %v4089, -inf
        %4199 = vmax.xlane.f32.xlu0 %v4198
        %v4200 = vpop.xlane.xlu0 %4199
        %v4201 = vsel %vm4143, %v4092, -inf
        %4202 = vmax.xlane.f32.xlu0 %v4201
        %v4203 = vpop.xlane.xlu0 %4202
        %v4204 = vsel %vm4143, %v4097, -inf
        %4205 = vmax.xlane.f32.xlu0 %v4204
        %v4206 = vpop.xlane.xlu0 %4205
        %v4207 = vsel %vm4143, %v4100, -inf
        %4208 = vmax.xlane.f32.xlu0 %v4207
        %v4209 = vpop.xlane.xlu0 %4208
        %v4210 = vsel %vm4143, %v4105, -inf
        %4211 = vmax.xlane.f32.xlu0 %v4210
        %v4212 = vpop.xlane.xlu0 %4211
        %v4213 = vsel %vm4143, %v4108, -inf
        %4214 = vmax.xlane.f32.xlu0 %v4213
        %v4215 = vpop.xlane.xlu0 %4214
        %v4216 = vsel %vm4143, %v4113, -inf
        %4217 = vmax.xlane.f32.xlu0 %v4216
        %v4218 = vpop.xlane.xlu0 %4217
        %v4219 = vsel %vm4143, %v4116, -inf
        %4220 = vmax.xlane.f32.xlu0 %v4219
        %v4221 = vpop.xlane.xlu0 %4220
        %v4222 = vsel %vm4143, %v4121, -inf
        %4223 = vmax.xlane.f32.xlu0 %v4222
        %v4224 = vpop.xlane.xlu0 %4223
        %v4225 = vsel %vm4143, %v4124, -inf
        %4226 = vmax.xlane.f32.xlu0 %v4225
        %v4227 = vpop.xlane.xlu0 %4226
        %v4228 = vsel %vm4143, %v4129, -inf
        %4229 = vmax.xlane.f32.xlu0 %v4228
        %v4230 = vpop.xlane.xlu0 %4229
        %v4231 = vsel %vm4143, %v4132, -inf
        %4232 = vmax.xlane.f32.xlu0 %v4231
        %v4233 = vpop.xlane.xlu0 %4232
        %v4234 = vsel %vm4143, %v4137, -inf
        %4235 = vmax.xlane.f32.xlu0 %v4234
        %v4236 = vpop.xlane.xlu0 %4235
        %v4237 = vsel %vm4143, %v4140, -inf
        %4238 = vmax.xlane.f32.xlu0 %v4237
        %v4239 = vpop.xlane.xlu0 %4238
        %v4240 = vsub.f32 %v4017, %v4146
        %v4241 = vsub.f32 %v4020, %v4149
        %v4242 = vsub.f32 %v4025, %v4152
        %v4243 = vsub.f32 %v4028, %v4155
        %v4244 = vsub.f32 %v4033, %v4158
        %v4245 = vsub.f32 %v4036, %v4161
        %v4246 = vsub.f32 %v4041, %v4164
        %v4247 = vsub.f32 %v4044, %v4167
        %v4248 = vsub.f32 %v4049, %v4170
        %v4249 = vsub.f32 %v4052, %v4173
        %v4250 = vsub.f32 %v4057, %v4176
        %v4251 = vsub.f32 %v4060, %v4179
        %v4252 = vsub.f32 %v4065, %v4182
        %v4253 = vsub.f32 %v4068, %v4185
        %v4254 = vsub.f32 %v4073, %v4188
        %v4255 = vsub.f32 %v4076, %v4191
        %v4256 = vsub.f32 %v4081, %v4194
        %v4257 = vsub.f32 %v4084, %v4197
        %v4258 = vsub.f32 %v4089, %v4200
        %v4259 = vsub.f32 %v4092, %v4203
        %v4260 = vsub.f32 %v4097, %v4206
        %v4261 = vsub.f32 %v4100, %v4209
        %v4262 = vsub.f32 %v4105, %v4212
        %v4263 = vsub.f32 %v4108, %v4215
        %v4264 = vsub.f32 %v4113, %v4218
        %v4265 = vsub.f32 %v4116, %v4221
        %v4266 = vsub.f32 %v4121, %v4224
        %v4267 = vsub.f32 %v4124, %v4227
        %v4268 = vsub.f32 %v4129, %v4230
        %v4269 = vsub.f32 %v4132, %v4233
        %v4270 = vsub.f32 %v4137, %v4236
        %v4271 = vsub.f32 %v4140, %v4239
        %v4272 = vmul.f32 %v4240, 1.442695
        %v4273 = vpow.pop %v4272
        %v4274 = vmul.f32 %v4241, 1.442695
        %v4275 = vpow.pop %v4274
        %v4276 = vmul.f32 %v4242, 1.442695
        %v4277 = vpow.pop %v4276
        %v4278 = vmul.f32 %v4243, 1.442695
        %v4279 = vpow.pop %v4278
        %v4280 = vmul.f32 %v4244, 1.442695
        %v4281 = vpow.pop %v4280
        %v4282 = vmul.f32 %v4245, 1.442695
        %v4283 = vpow.pop %v4282
        %v4284 = vmul.f32 %v4246, 1.442695
        %v4285 = vpow.pop %v4284
        %v4286 = vmul.f32 %v4247, 1.442695
        %v4287 = vpow.pop %v4286
        %v4288 = vmul.f32 %v4248, 1.442695
        %v4289 = vpow.pop %v4288
        %v4290 = vmul.f32 %v4249, 1.442695
        %v4291 = vpow.pop %v4290
        %v4292 = vmul.f32 %v4250, 1.442695
        %v4293 = vpow.pop %v4292
        %v4294 = vmul.f32 %v4251, 1.442695
        %v4295 = vpow.pop %v4294
        %v4296 = vmul.f32 %v4252, 1.442695
        %v4297 = vpow.pop %v4296
        %v4298 = vmul.f32 %v4253, 1.442695
        %v4299 = vpow.pop %v4298
        %v4300 = vmul.f32 %v4254, 1.442695
        %v4301 = vpow.pop %v4300
        %v4302 = vmul.f32 %v4255, 1.442695
        %v4303 = vpow.pop %v4302
        %v4304 = vmul.f32 %v4256, 1.442695
        %v4305 = vpow.pop %v4304
        %v4306 = vmul.f32 %v4257, 1.442695
        %v4307 = vpow.pop %v4306
        %v4308 = vmul.f32 %v4258, 1.442695
        %v4309 = vpow.pop %v4308
        %v4310 = vmul.f32 %v4259, 1.442695
        %v4311 = vpow.pop %v4310
        %v4312 = vmul.f32 %v4260, 1.442695
        %v4313 = vpow.pop %v4312
        %v4314 = vmul.f32 %v4261, 1.442695
        %v4315 = vpow.pop %v4314
        %v4316 = vmul.f32 %v4262, 1.442695
        %v4317 = vpow.pop %v4316
        %v4318 = vmul.f32 %v4263, 1.442695
        %v4319 = vpow.pop %v4318
        %v4320 = vmul.f32 %v4264, 1.442695
        %v4321 = vpow.pop %v4320
        %v4322 = vmul.f32 %v4265, 1.442695
        %v4323 = vpow.pop %v4322
        %v4324 = vmul.f32 %v4266, 1.442695
        %v4325 = vpow.pop %v4324
        %v4326 = vmul.f32 %v4267, 1.442695
        %v4327 = vpow.pop %v4326
        %v4328 = vmul.f32 %v4268, 1.442695
        %v4329 = vpow.pop %v4328
        %v4330 = vmul.f32 %v4269, 1.442695
        %v4331 = vpow.pop %v4330
        %v4332 = vmul.f32 %v4270, 1.442695
        %v4333 = vpow.pop %v4332
        %v4334 = vmul.f32 %v4271, 1.442695
        %v4335 = vpow.pop %v4334
        %v4336 = vsel %vm4143, %v4273, 0.0
        %4337 = vadd.xlane.f32.xlu0 %v4336
        %v4338 = vpop.xlane.xlu0 %4337
        %v4339 = vsel %vm4143, %v4275, 0.0
        %4340 = vadd.xlane.f32.xlu0 %v4339
        %v4341 = vpop.xlane.xlu0 %4340
        %v4342 = vsel %vm4143, %v4277, 0.0
        %4343 = vadd.xlane.f32.xlu0 %v4342
        %v4344 = vpop.xlane.xlu0 %4343
        %v4345 = vsel %vm4143, %v4279, 0.0
        %4346 = vadd.xlane.f32.xlu0 %v4345
        %v4347 = vpop.xlane.xlu0 %4346
        %v4348 = vsel %vm4143, %v4281, 0.0
        %4349 = vadd.xlane.f32.xlu0 %v4348
        %v4350 = vpop.xlane.xlu0 %4349
        %v4351 = vsel %vm4143, %v4283, 0.0
        %4352 = vadd.xlane.f32.xlu0 %v4351
        %v4353 = vpop.xlane.xlu0 %4352
        %v4354 = vsel %vm4143, %v4285, 0.0
        %4355 = vadd.xlane.f32.xlu0 %v4354
        %v4356 = vpop.xlane.xlu0 %4355
        %v4357 = vsel %vm4143, %v4287, 0.0
        %4358 = vadd.xlane.f32.xlu0 %v4357
        %v4359 = vpop.xlane.xlu0 %4358
        %v4360 = vsel %vm4143, %v4289, 0.0
        %4361 = vadd.xlane.f32.xlu0 %v4360
        %v4362 = vpop.xlane.xlu0 %4361
        %v4363 = vsel %vm4143, %v4291, 0.0
        %4364 = vadd.xlane.f32.xlu0 %v4363
        %v4365 = vpop.xlane.xlu0 %4364
        %v4366 = vsel %vm4143, %v4293, 0.0
        %4367 = vadd.xlane.f32.xlu0 %v4366
        %v4368 = vpop.xlane.xlu0 %4367
        %v4369 = vsel %vm4143, %v4295, 0.0
        %4370 = vadd.xlane.f32.xlu0 %v4369
        %v4371 = vpop.xlane.xlu0 %4370
        %v4372 = vsel %vm4143, %v4297, 0.0
        %4373 = vadd.xlane.f32.xlu0 %v4372
        %v4374 = vpop.xlane.xlu0 %4373
        %v4375 = vsel %vm4143, %v4299, 0.0
        %4376 = vadd.xlane.f32.xlu0 %v4375
        %v4377 = vpop.xlane.xlu0 %4376
        %v4378 = vsel %vm4143, %v4301, 0.0
        %4379 = vadd.xlane.f32.xlu0 %v4378
        %v4380 = vpop.xlane.xlu0 %4379
        %v4381 = vsel %vm4143, %v4303, 0.0
        %4382 = vadd.xlane.f32.xlu0 %v4381
        %v4383 = vpop.xlane.xlu0 %4382
        %v4384 = vsel %vm4143, %v4305, 0.0
        %4385 = vadd.xlane.f32.xlu0 %v4384
        %v4386 = vpop.xlane.xlu0 %4385
        %v4387 = vsel %vm4143, %v4307, 0.0
        %4388 = vadd.xlane.f32.xlu0 %v4387
        %v4389 = vpop.xlane.xlu0 %4388
        %v4390 = vsel %vm4143, %v4309, 0.0
        %4391 = vadd.xlane.f32.xlu0 %v4390
        %v4392 = vpop.xlane.xlu0 %4391
        %v4393 = vsel %vm4143, %v4311, 0.0
        %4394 = vadd.xlane.f32.xlu0 %v4393
        %v4395 = vpop.xlane.xlu0 %4394
        %v4396 = vsel %vm4143, %v4313, 0.0
        %4397 = vadd.xlane.f32.xlu0 %v4396
        %v4398 = vpop.xlane.xlu0 %4397
        %v4399 = vsel %vm4143, %v4315, 0.0
        %4400 = vadd.xlane.f32.xlu0 %v4399
        %v4401 = vpop.xlane.xlu0 %4400
        %v4402 = vsel %vm4143, %v4317, 0.0
        %4403 = vadd.xlane.f32.xlu0 %v4402
        %v4404 = vpop.xlane.xlu0 %4403
        %v4405 = vsel %vm4143, %v4319, 0.0
        %4406 = vadd.xlane.f32.xlu0 %v4405
        %v4407 = vpop.xlane.xlu0 %4406
        %v4408 = vsel %vm4143, %v4321, 0.0
        %4409 = vadd.xlane.f32.xlu0 %v4408
        %v4410 = vpop.xlane.xlu0 %4409
        %v4411 = vsel %vm4143, %v4323, 0.0
        %4412 = vadd.xlane.f32.xlu0 %v4411
        %v4413 = vpop.xlane.xlu0 %4412
        %v4414 = vsel %vm4143, %v4325, 0.0
        %4415 = vadd.xlane.f32.xlu0 %v4414
        %v4416 = vpop.xlane.xlu0 %4415
        %v4417 = vsel %vm4143, %v4327, 0.0
        %4418 = vadd.xlane.f32.xlu0 %v4417
        %v4419 = vpop.xlane.xlu0 %4418
        %v4420 = vsel %vm4143, %v4329, 0.0
        %4421 = vadd.xlane.f32.xlu0 %v4420
        %v4422 = vpop.xlane.xlu0 %4421
        %v4423 = vsel %vm4143, %v4331, 0.0
        %4424 = vadd.xlane.f32.xlu0 %v4423
        %v4425 = vpop.xlane.xlu0 %4424
        %v4426 = vsel %vm4143, %v4333, 0.0
        %4427 = vadd.xlane.f32.xlu0 %v4426
        %v4428 = vpop.xlane.xlu0 %4427
        %v4429 = vsel %vm4143, %v4335, 0.0
        %4430 = vadd.xlane.f32.xlu0 %v4429
        %v4431 = vpop.xlane.xlu0 %4430
        %v4432 = vrcp.pop %v4338
        %v4433 = vmul.f32 %v4273, %v4432
        %v4434 = vrcp.pop %v4341
        %v4435 = vmul.f32 %v4275, %v4434
        %v4436 = vrcp.pop %v4344
        %v4437 = vmul.f32 %v4277, %v4436
        %v4438 = vrcp.pop %v4347
        %v4439 = vmul.f32 %v4279, %v4438
        %v4440 = vrcp.pop %v4350
        %v4441 = vmul.f32 %v4281, %v4440
        %v4442 = vrcp.pop %v4353
        %v4443 = vmul.f32 %v4283, %v4442
        %v4444 = vrcp.pop %v4356
        %v4445 = vmul.f32 %v4285, %v4444
        %v4446 = vrcp.pop %v4359
        %v4447 = vmul.f32 %v4287, %v4446
        %v4448 = vrcp.pop %v4362
        %v4449 = vmul.f32 %v4289, %v4448
        %v4450 = vrcp.pop %v4365
        %v4451 = vmul.f32 %v4291, %v4450
        %v4452 = vrcp.pop %v4368
        %v4453 = vmul.f32 %v4293, %v4452
        %v4454 = vrcp.pop %v4371
        %v4455 = vmul.f32 %v4295, %v4454
        %v4456 = vrcp.pop %v4374
        %v4457 = vmul.f32 %v4297, %v4456
        %v4458 = vrcp.pop %v4377
        %v4459 = vmul.f32 %v4299, %v4458
        %v4460 = vrcp.pop %v4380
        %v4461 = vmul.f32 %v4301, %v4460
        %v4462 = vrcp.pop %v4383
        %v4463 = vmul.f32 %v4303, %v4462
        %v4464 = vrcp.pop %v4386
        %v4465 = vmul.f32 %v4305, %v4464
        %v4466 = vrcp.pop %v4389
        %v4467 = vmul.f32 %v4307, %v4466
        %v4468 = vrcp.pop %v4392
        %v4469 = vmul.f32 %v4309, %v4468
        %v4470 = vrcp.pop %v4395
        %v4471 = vmul.f32 %v4311, %v4470
        %v4472 = vrcp.pop %v4398
        %v4473 = vmul.f32 %v4313, %v4472
        %v4474 = vrcp.pop %v4401
        %v4475 = vmul.f32 %v4315, %v4474
        %v4476 = vrcp.pop %v4404
        %v4477 = vmul.f32 %v4317, %v4476
        %v4478 = vrcp.pop %v4407
        %v4479 = vmul.f32 %v4319, %v4478
        %v4480 = vrcp.pop %v4410
        %v4481 = vmul.f32 %v4321, %v4480
        %v4482 = vrcp.pop %v4413
        %v4483 = vmul.f32 %v4323, %v4482
        %v4484 = vrcp.pop %v4416
        %v4485 = vmul.f32 %v4325, %v4484
        %v4486 = vrcp.pop %v4419
        %v4487 = vmul.f32 %v4327, %v4486
        %v4488 = vrcp.pop %v4422
        %v4489 = vmul.f32 %v4329, %v4488
        %v4490 = vrcp.pop %v4425
        %v4491 = vmul.f32 %v4331, %v4490
        %v4492 = vrcp.pop %v4428
        %v4493 = vmul.f32 %v4333, %v4492
        %v4494 = vrcp.pop %v4431
        %v4495 = vmul.f32 %v4335, %v4494
        %4496 = vst.msk [vmem:[%s349] sm:$0xff] %vm4143, %v4433
        %4497 = vst.msk [vmem:[%s349 + $0x8] sm:$0xff] %vm4143, %v4435
        %4498 = vst.msk [vmem:[%s349 + $0x10] sm:$0xff] %vm4143, %v4437
        %4499 = vst.msk [vmem:[%s349 + $0x18] sm:$0xff] %vm4143, %v4439
        %4500 = vst.msk [vmem:[%s349 + $0x20] sm:$0xff] %vm4143, %v4441
        %4501 = vst.msk [vmem:[%s349 + $0x28] sm:$0xff] %vm4143, %v4443
        %4502 = vst.msk [vmem:[%s349 + $0x30] sm:$0xff] %vm4143, %v4445
        %4503 = vst.msk [vmem:[%s349 + $0x38] sm:$0xff] %vm4143, %v4447
        %4504 = vst.msk [vmem:[%s349 + $0x40] sm:$0xff] %vm4143, %v4449
        %4505 = vst.msk [vmem:[%s349 + $0x48] sm:$0xff] %vm4143, %v4451
        %4506 = vst.msk [vmem:[%s349 + $0x50] sm:$0xff] %vm4143, %v4453
        %4507 = vst.msk [vmem:[%s349 + $0x58] sm:$0xff] %vm4143, %v4455
        %4508 = vst.msk [vmem:[%s349 + $0x60] sm:$0xff] %vm4143, %v4457
        %4509 = vst.msk [vmem:[%s349 + $0x68] sm:$0xff] %vm4143, %v4459
        %4510 = vst.msk [vmem:[%s349 + $0x70] sm:$0xff] %vm4143, %v4461
        %4511 = vst.msk [vmem:[%s349 + $0x78] sm:$0xff] %vm4143, %v4463
        %4512 = vst.msk [vmem:[%s349 + $0x80] sm:$0xff] %vm4143, %v4465
        %4513 = vst.msk [vmem:[%s349 + $0x88] sm:$0xff] %vm4143, %v4467
        %4514 = vst.msk [vmem:[%s349 + $0x90] sm:$0xff] %vm4143, %v4469
        %4515 = vst.msk [vmem:[%s349 + $0x98] sm:$0xff] %vm4143, %v4471
        %4516 = vst.msk [vmem:[%s349 + $0xa0] sm:$0xff] %vm4143, %v4473
        %4517 = vst.msk [vmem:[%s349 + $0xa8] sm:$0xff] %vm4143, %v4475
        %4518 = vst.msk [vmem:[%s349 + $0xb0] sm:$0xff] %vm4143, %v4477
        %4519 = vst.msk [vmem:[%s349 + $0xb8] sm:$0xff] %vm4143, %v4479
        %4520 = vst.msk [vmem:[%s349 + $0xc0] sm:$0xff] %vm4143, %v4481
        %4521 = vst.msk [vmem:[%s349 + $0xc8] sm:$0xff] %vm4143, %v4483
        %4522 = vst.msk [vmem:[%s349 + $0xd0] sm:$0xff] %vm4143, %v4485
        %4523 = vst.msk [vmem:[%s349 + $0xd8] sm:$0xff] %vm4143, %v4487
        %4524 = vst.msk [vmem:[%s349 + $0xe0] sm:$0xff] %vm4143, %v4489
        %4525 = vst.msk [vmem:[%s349 + $0xe8] sm:$0xff] %vm4143, %v4491
        %4526 = vst.msk [vmem:[%s349 + $0xf0] sm:$0xff] %vm4143, %v4493
        %4527 = vst.msk [vmem:[%s349 + $0xf8] sm:$0xff] %vm4143, %v4495
        %s4528 = smul.u32 32, %s21
        %p4529 = scmp.lt.s32.totalorder %s4528, 63
        %s4530 = scalar_select %p4529, %s4528, 63
        %s4531 = smul.addr %s4530, 8
        %s4532 = scalar_lea.vmem %s9, %s4531
        // Predicated region
        $region61: #{tpu_custom_call.1} parent=55 // pred_check
          %p4533 = pneg %p233
        $region62: #{tpu_custom_call.1} parent=55 // pred_check_branch
          %4535 = sbr.rel (%p4533) target = $region64
        $region63: #{tpu_custom_call.1} parent=55 // pred_region
          %s4536 = smul.u32 32, %s21
        $region64: #{tpu_custom_call.1} parent=55 // pred_fallthru
          _
      $region56: #{tpu_custom_call.1} parent=5 // pred_fallthru
        _
      %p4537 = scmp.le.s32.totalorder 2, %s16
      // Predicated region
      $region65: #{tpu_custom_call.1} parent=5 // pred_check
        %p4538 = pneg %p4537
      $region66: #{tpu_custom_call.1} parent=5 // pred_check_branch
        %4540 = sbr.rel (%p4538) target = $region68
      $region67: #{tpu_custom_call.1} parent=5 // pred_region
        %s4541 = ssub.s32 %s16, 2
        // Predicated region
        $region69: #{tpu_custom_call.1} parent=67 // pred_check
          %p4542 = pneg %p239
        $region70: #{tpu_custom_call.1} parent=67 // pred_check_branch
          %4544 = sbr.rel (%p4542) target = $region72
        $region71: #{tpu_custom_call.1} parent=67 // pred_region
          %s4545 = smul.u32 32, %s22
          %p4546 = scmp.lt.s32.totalorder %s4545, 63
          %s4547 = scalar_select %p4546, %s4545, 63
          %s4548 = smul.addr %s4547, 8
          %s4549 = scalar_lea.vmem %s9, %s4548
        $region72: #{tpu_custom_call.1} parent=67 // pred_fallthru
          _
      $region68: #{tpu_custom_call.1} parent=5 // pred_fallthru
        _
    $region6: #{tpu_custom_call.1} parent=1 // loop_footer
      %s20 = sadd.s32 1, %s16
    $region7: #{tpu_custom_call.1} parent=1 // loop_footer_branch
      %15 = sbr.rel target = $region3
    $region8: #{tpu_custom_call.1} parent=1 // loop_exit
      _
    %4550 = vsyncpa [#allocation3], 1
    %s4551 = scalar_lea.sflag [#allocation3], 1
    %4552 = vsyncpa %s4551, 1

</llo_original>
